<compile_context>
chip_gen: v5e
topology: v5e:2x2
jax: 0.10.0
libtpu: 0.0.40
codegen_flags: <defaults>
</compile_context>

<pallas_src>
import math

import jax
import jax.numpy as jnp
from jax.experimental import pallas as pl
from jax.experimental.pallas import tpu as pltpu

# ----------------------------- model dimensions -----------------------------
B = 2            # batch
N = 8            # tokens per sequence
D = 32           # embedding dim
H = 4            # attention heads
DH = D // H      # head dim
MLP = 4 * D      # MLP hidden dim
NUM_BLOCKS = 4   # blocks per TransformerBlockGroup
LN_EPS = 1e-5
BN = B * N
CMAX = 5         # max sibling classes in any segregation step

# CIFAR-10 hierarchy (hard-coded in place of the XML label tree)
LEVEL1_LABELS = ("animal", "vehicle")
LEVEL2_LABELS = ("heavy", "light", "domestic", "herbivore", "other_animal")
ALL_WORDS = LEVEL1_LABELS + LEVEL2_LABELS
NUM_GROUPS = 1 + len(LEVEL1_LABELS) + len(LEVEL2_LABELS)   # 8 grid steps

# ----------------------------- packed slab layout ----------------------------
W_QKV, W_O, W_1, W_2T = 0, 3 * D, 4 * D, 4 * D + MLP
WSLAB = 4 * D + 2 * MLP                                    # 384 = 3 * 128 lanes

OFF_BQKV, OFF_BO = 0, 3 * D
OFF_LN1G, OFF_LN1B = 4 * D, 5 * D
OFF_LN2G, OFF_LN2B = 6 * D, 7 * D
OFF_B2, OFF_B1 = 8 * D, 9 * D
BVEC_W = 512                                               # padded to 4 * 128 lanes

# persistent activation scratch slots
SLOT_INPUT, SLOT_L1, SLOT_L2A, SLOT_L2V = 0, 1, 2, 3
NUM_SLOTS = 4


# ------------------------------- fused kernel --------------------------------
def fused_kernel(sched_ref, x_ref, qtab_ref, w_ref, bvec_ref, o_ref, act_ref):
    """One grid step = one class group: segregation (identity at level 1) + 4
    pre-LN transformer blocks on the whole (B*N, D) batch slab."""
    g = pl.program_id(0)

    # Stage the external input once; level 1 reads it as its "parent".
    @pl.when(g == 0)
    def _():
        act_ref[SLOT_INPUT] = x_ref[...]

    psl = sched_ref[g, 0]     # parent activation slot
    osl = sched_ref[g, 1]     # output activation slot (levels 1/2 only)
    nsib = sched_ref[g, 2]    # number of sibling classes in this softmax
    cls = sched_ref[g, 3]     # this group's class index among its siblings
    wact = sched_ref[g, 4]    # 1 -> persist result in the activation scratch

    x = act_ref[psl]                                        # (BN, D) f32

    # ---- segregate_samples_within_batch (identity for the level-1 step) ----
    q = qtab_ref[g].astype(jnp.bfloat16)                    # (CMAX, D)
    s = jnp.einsum('nd,cd->nc', x.astype(jnp.bfloat16), q,
                   preferred_element_type=jnp.float32) * (1.0 / math.sqrt(D))
    col = jax.lax.broadcasted_iota(jnp.int32, (BN, CMAX), 1)
    s = jnp.where(col < nsib, s, -1e30)
    s = s - jnp.max(s, axis=-1, keepdims=True)
    e = jnp.exp(s)
    p = e * pl.reciprocal(jnp.sum(e, axis=-1, keepdims=True), approx=True)
    wseg = jnp.sum(jnp.where(col == cls, p, 0.0), axis=-1, keepdims=True)
    x = jnp.where(g == 0, x, x * wseg)

    # ---- TransformerBlockGroup: NUM_BLOCKS pre-LN blocks ----
    scale = 1.0 / math.sqrt(DH)
    bg = bvec_ref[g]                                        # (NB, BVEC_W) f32

    def split_heads(m):                                     # (BN, D) -> (H*B, N, DH)
        hs = [m[:, h * DH:(h + 1) * DH].reshape(B, N, DH) for h in range(H)]
        return jnp.concatenate(hs, axis=0).astype(jnp.bfloat16)

    for blk in range(NUM_BLOCKS):                           # static unroll
        wb = w_ref[g, blk]                                  # (D, WSLAB) bf16
        bv = bg[blk]                                        # (BVEC_W,) f32

        # ---- LayerNorm 1 (f32) ----
        mu = jnp.mean(x, axis=-1, keepdims=True)
        var = jnp.mean(jnp.square(x - mu), axis=-1, keepdims=True)
        xn = (x - mu) * jax.lax.rsqrt(var + LN_EPS)
        xn = xn * bv[OFF_LN1G:OFF_LN1G + D] + bv[OFF_LN1B:OFF_LN1B + D]
        xnb = xn.astype(jnp.bfloat16)

        # ---- fused QKV projection, single 96-lane bias add ----
        qkv = jnp.dot(xnb, wb[:, W_QKV:W_QKV + 3 * D],
                      preferred_element_type=jnp.float32)
        qkv = qkv + bv[OFF_BQKV:OFF_BQKV + 3 * D]           # (BN, 3D)

        # ---- head-batched self-attention: one batched matmul pair ----
        qh = split_heads(qkv[:, 0:D])
        kh = split_heads(qkv[:, D:2 * D])
        vh = split_heads(qkv[:, 2 * D:3 * D])
        st = jnp.einsum('bnd,bmd->bnm', qh, kh,
                        preferred_element_type=jnp.float32) * scale
        st = st - jnp.max(st, axis=-1, keepdims=True)
        et = jnp.exp(st)
        pt = et * pl.reciprocal(jnp.sum(et, axis=-1, keepdims=True), approx=True)
        oh = jnp.einsum('bnm,bmd->bnd', pt.astype(jnp.bfloat16), vh,
                        preferred_element_type=jnp.float32)  # (H*B, N, DH)
        attn = jnp.concatenate(
            [oh[h * B:(h + 1) * B].reshape(BN, DH) for h in range(H)],
            axis=-1).astype(jnp.bfloat16)                    # (BN, D)

        x = x + jnp.dot(attn, wb[:, W_O:W_O + D],
                        preferred_element_type=jnp.float32) + bv[OFF_BO:OFF_BO + D]

        # ---- LayerNorm 2 + GELU MLP (down-proj contracts the MLP axis of w2^T) ----
        mu2 = jnp.mean(x, axis=-1, keepdims=True)
        var2 = jnp.mean(jnp.square(x - mu2), axis=-1, keepdims=True)
        xn2 = (x - mu2) * jax.lax.rsqrt(var2 + LN_EPS)
        xn2 = (xn2 * bv[OFF_LN2G:OFF_LN2G + D]
               + bv[OFF_LN2B:OFF_LN2B + D]).astype(jnp.bfloat16)
        hdn = jnp.dot(xn2, wb[:, W_1:W_1 + MLP],
                      preferred_element_type=jnp.float32) + bv[OFF_B1:OFF_B1 + MLP]
        hdn = jax.nn.gelu(hdn, approximate=True).astype(jnp.bfloat16)
        down = jax.lax.dot_general(hdn, wb[:, W_2T:W_2T + MLP],
                                   (((1,), (1,)), ((), ())),
                                   preferred_element_type=jnp.float32)
        x = x + down + bv[OFF_B2:OFF_B2 + D]

    # persist level-1 / level-2 activations for downstream grid steps
    @pl.when(wact == 1)
    def _():
        act_ref[osl] = x

    o_ref[0] = x.reshape(B, N, D).astype(o_ref.dtype)


# ----------------------------- parameter setup -------------------------------
def init_block_group_params(key):
    ks = jax.random.split(key, 4)

    def w(k, shape, scale=0.02):
        return (scale * jax.random.normal(k, (NUM_BLOCKS,) + shape)).astype(jnp.float32)

    return dict(
        ln1g=jnp.ones((NUM_BLOCKS, D), jnp.float32),
        ln1b=jnp.zeros((NUM_BLOCKS, D), jnp.float32),
        wqkv=w(ks[0], (D, 3 * D)),
        bqkv=jnp.zeros((NUM_BLOCKS, 3 * D), jnp.float32),
        wo=w(ks[1], (D, D)),
        bo=jnp.zeros((NUM_BLOCKS, D), jnp.float32),
        ln2g=jnp.ones((NUM_BLOCKS, D), jnp.float32),
        ln2b=jnp.zeros((NUM_BLOCKS, D), jnp.float32),
        w1=w(ks[2], (D, MLP)),
        b1=jnp.zeros((NUM_BLOCKS, MLP), jnp.float32),
        w2=w(ks[3], (MLP, D)),
        b2=jnp.zeros((NUM_BLOCKS, D), jnp.float32),
    )


def pack_params(dicts):
    """Stack all groups into one 384-lane bf16 weight slab and one 512-lane f32
    bias row per block (lane-dense, loaded once into VMEM)."""
    w_all = jnp.stack([
        jnp.concatenate([p["wqkv"], p["wo"], p["w1"],
                         jnp.swapaxes(p["w2"], -1, -2)], axis=-1)
        for p in dicts
    ]).astype(jnp.bfloat16)                                  # (G, NB, D, WSLAB)
    pad = jnp.zeros((NUM_BLOCKS, BVEC_W - (9 * D + MLP)), jnp.float32)
    bvec = jnp.stack([
        jnp.concatenate([p["bqkv"], p["bo"], p["ln1g"], p["ln1b"],
                         p["ln2g"], p["ln2b"], p["b2"], p["b1"], pad], axis=-1)
        for p in dicts
    ]).astype(jnp.float32)                                   # (G, NB, BVEC_W)
    return w_all, bvec


def make_word_embeddings(key):
    emb = jax.random.normal(key, (len(ALL_WORDS), D), jnp.float32)
    return {w: emb[i] for i, w in enumerate(ALL_WORDS)}


def build_schedule_and_queries(word_emb):
    animal, vehicle = (word_emb[w] for w in LEVEL1_LABELS)
    heavy, light, domestic, herbivore, other = (word_emb[w] for w in LEVEL2_LABELS)
    z = jnp.zeros((D,), jnp.float32)

    def rows(*vs):
        vs = list(vs) + [z] * (CMAX - len(vs))
        return jnp.stack(vs)

    qtab = jnp.stack([
        rows(),                                  # g0: level 1 (no segregation)
        rows(animal, vehicle),                   # g1: animal
        rows(animal, vehicle),                   # g2: vehicle
        rows(heavy, light),                      # g3: heavy   (vehicle children)
        rows(heavy, light),                      # g4: light
        rows(domestic, herbivore, other),        # g5: domestic (animal children)
        rows(domestic, herbivore, other),        # g6: herbivore
        rows(domestic, herbivore, other),        # g7: other_animal
    ])                                           # (G, CMAX, D)

    #                 parent      out        nsib cls wact
    sched = jnp.asarray([
        [SLOT_INPUT, SLOT_L1,  1, 0, 1],         # level 1 trunk
        [SLOT_L1,    SLOT_L2A, 2, 0, 1],         # animal
        [SLOT_L1,    SLOT_L2V, 2, 1, 1],         # vehicle
        [SLOT_L2V,   0,        2, 0, 0],         # heavy
        [SLOT_L2V,   0,        2, 1, 0],         # light
        [SLOT_L2A,   0,        3, 0, 0],         # domestic
        [SLOT_L2A,   0,        3, 1, 0],         # herbivore
        [SLOT_L2A,   0,        3, 2, 0],         # other_animal
    ], dtype=jnp.int32)
    return sched, qtab


def build_model(key):
    k_p, k_w = jax.random.split(key)
    keys = jax.random.split(k_p, NUM_GROUPS)
    groups = [init_block_group_params(keys[i]) for i in range(NUM_GROUPS)]
    w_all, bvec = pack_params(groups)
    sched, qtab = build_schedule_and_queries(make_word_embeddings(k_w))
    return dict(w_all=w_all, bvec=bvec, sched=sched, qtab=qtab)


# --------------------------------- forward -----------------------------------
@jax.jit
def forward(x, model):
    x2d = x.reshape(BN, D)
    grid_spec = pltpu.PrefetchScalarGridSpec(
        num_scalar_prefetch=1,
        grid=(NUM_GROUPS,),
        in_specs=[
            # full-array blocks with constant index_map -> loaded once, VMEM-resident
            pl.BlockSpec((BN, D), lambda g, s: (0, 0)),
            pl.BlockSpec((NUM_GROUPS, CMAX, D), lambda g, s: (0, 0, 0)),
            pl.BlockSpec((NUM_GROUPS, NUM_BLOCKS, D, WSLAB),
                         lambda g, s: (0, 0, 0, 0)),
            pl.BlockSpec((NUM_GROUPS, NUM_BLOCKS, BVEC_W), lambda g, s: (0, 0, 0)),
        ],
        out_specs=pl.BlockSpec((1, B, N, D), lambda g, s: (g, 0, 0, 0)),
        scratch_shapes=[pltpu.VMEM((NUM_SLOTS, BN, D), jnp.float32)],
    )
    out = pl.pallas_call(
        fused_kernel,
        out_shape=jax.ShapeDtypeStruct((NUM_GROUPS, B, N, D), jnp.float32),
        grid_spec=grid_spec,
        # steps carry state through the VMEM scratch -> sequential ("arbitrary").
        compiler_params=pltpu.CompilerParams(dimension_semantics=("arbitrary",)),
    )(model["sched"], x2d, model["qtab"], model["w_all"], model["bvec"])
    # Original PyTorch forward() returns None; return output_2 for checking.
    return {lbl: out[3 + i] for i, lbl in enumerate(LEVEL2_LABELS)}


# ----------------------------------- main ------------------------------------
if __name__ == "__main__":
    key = jax.random.PRNGKey(0)
    k_x, k_m = jax.random.split(key)

    x = jax.random.normal(k_x, (B, N, D), jnp.float32)
    model = build_model(k_m)

    out2 = forward(x, model)

    for v in out2.values():
        jax.block_until_ready(v)
        assert v.shape == (B, N, D)
        assert bool(jnp.all(jnp.isfinite(v)))

    print("KERNEL_OK")
</pallas_src>

<mosaic_0001>
module attributes {stable_mosaic.version = 11 : i64} {
  func.func @fused_kernel(%arg0: i32, %arg1: memref<8x5xi32, #tpu.memory_space<smem>>, %arg2: memref<16x32xf32, #tpu.memory_space<vmem>>, %arg3: memref<8x5x32xf32, #tpu.memory_space<vmem>>, %arg4: memref<8x4x32x384xbf16, #tpu.memory_space<vmem>>, %arg5: memref<8x4x512xf32, #tpu.memory_space<vmem>>, %arg6: memref<1x2x8x32xf32, #tpu.memory_space<vmem>>, %arg7: memref<4x16x32xf32, #tpu.memory_space<vmem>>) attributes {dimension_semantics = [#tpu.dimension_semantics<arbitrary>], iteration_bounds = array<i64: 8>, scalar_prefetch = 1 : i64, scratch_operands = 1 : i64, tpu.core_type = #tpu.core_type<tc>, window_params = [{pipeline_mode = #tpu.pipeline_mode<synchronous>, transform_indices = @transform_0, window_bounds = array<i64: 16, 32>}, {pipeline_mode = #tpu.pipeline_mode<synchronous>, transform_indices = @transform_1, window_bounds = array<i64: 8, 5, 32>}, {pipeline_mode = #tpu.pipeline_mode<synchronous>, transform_indices = @transform_2, window_bounds = array<i64: 8, 4, 32, 384>}, {pipeline_mode = #tpu.pipeline_mode<synchronous>, transform_indices = @transform_3, window_bounds = array<i64: 8, 4, 512>}, {transform_indices = @transform_4, window_bounds = array<i64: 1, 2, 8, 32>}]} {
    %c0_i32 = arith.constant 0 : i32
    %0 = arith.cmpi eq, %arg0, %c0_i32 : i32
    %1 = arith.extui %0 : i1 to i32
    %c0_i32_0 = arith.constant 0 : i32
    %2 = arith.cmpi ne, %1, %c0_i32_0 : i32
    scf.if %2 {
      %c0_123 = arith.constant 0 : index
      %c0_124 = arith.constant 0 : index
      %687 = vector.load %arg2[%c0_123, %c0_124] : memref<16x32xf32, #tpu.memory_space<vmem>>, vector<16x32xf32>
      %c0_125 = arith.constant 0 : index
      %c0_126 = arith.constant 0 : index
      %c0_127 = arith.constant 0 : index
      %688 = vector.load %arg7[%c0_125, %c0_126, %c0_127] : memref<4x16x32xf32, #tpu.memory_space<vmem>>, vector<1x16x32xf32>
      %689 = vector.shape_cast %688 : vector<1x16x32xf32> to vector<16x32xf32>
      %690 = vector.shape_cast %687 : vector<16x32xf32> to vector<1x16x32xf32>
      tpu.vector_store %arg7[%c0_125, %c0_126, %c0_127], %690 {strides = array<i32>} : memref<4x16x32xf32, #tpu.memory_space<vmem>>, vector<1x16x32xf32>,
    } else {
    }
    %3 = arith.index_cast %arg0 : i32 to index
    %c0 = arith.constant 0 : index
    %4 = memref.load %arg1[%3, %c0] : memref<8x5xi32, #tpu.memory_space<smem>>
    %5 = arith.index_cast %arg0 : i32 to index
    %c1 = arith.constant 1 : index
    %6 = memref.load %arg1[%5, %c1] : memref<8x5xi32, #tpu.memory_space<smem>>
    %7 = arith.index_cast %arg0 : i32 to index
    %c2 = arith.constant 2 : index
    %8 = memref.load %arg1[%7, %c2] : memref<8x5xi32, #tpu.memory_space<smem>>
    %9 = arith.index_cast %arg0 : i32 to index
    %c3 = arith.constant 3 : index
    %10 = memref.load %arg1[%9, %c3] : memref<8x5xi32, #tpu.memory_space<smem>>
    %11 = arith.index_cast %arg0 : i32 to index
    %c4 = arith.constant 4 : index
    %12 = memref.load %arg1[%11, %c4] : memref<8x5xi32, #tpu.memory_space<smem>>
    %13 = arith.index_cast %4 : i32 to index
    %c0_1 = arith.constant 0 : index
    %c0_2 = arith.constant 0 : index
    %14 = vector.load %arg7[%13, %c0_1, %c0_2] : memref<4x16x32xf32, #tpu.memory_space<vmem>>, vector<1x16x32xf32>
    %15 = vector.shape_cast %14 : vector<1x16x32xf32> to vector<16x32xf32>
    %16 = arith.index_cast %arg0 : i32 to index
    %c0_3 = arith.constant 0 : index
    %c0_4 = arith.constant 0 : index
    %17 = vector.load %arg3[%16, %c0_3, %c0_4] : memref<8x5x32xf32, #tpu.memory_space<vmem>>, vector<1x5x32xf32>
    %18 = vector.shape_cast %17 : vector<1x5x32xf32> to vector<5x32xf32>
    %19 = arith.truncf %18 : vector<5x32xf32> to vector<5x32xbf16>
    %20 = arith.truncf %15 : vector<16x32xf32> to vector<16x32xbf16>
    "tpu.trace_start"() <{level = 10 : i32, message = "nd,cd->nc"}> : () -> ()
    %cst = arith.constant dense<0.000000e+00> : vector<16x5xf32>
    %21 = tpu.matmul %20, %19, %cst {dimension_numbers = #tpu.dot_dimension_numbers<[1], [1], [0], [0], [0, 0, 1, 0], [], []>} : vector<16x32xbf16>, vector<5x32xbf16>, vector<16x5xf32> -> vector<16x5xf32>
    "tpu.trace_stop"() : () -> ()
    %cst_5 = arith.constant 0.176776692 : f32
    %22 = vector.broadcast %cst_5 : f32 to vector<16x5xf32>
    %23 = arith.mulf %21, %22 : vector<16x5xf32>
    %24 = tpu.iota {dimensions = array<i32: 1>} : vector<16x5xi32>
    %25 = vector.broadcast %8 : i32 to vector<16x5xi32>
    %26 = arith.cmpi slt, %24, %25 : vector<16x5xi32>
    %cst_6 = arith.constant -1.000000e+30 : f32
    %27 = vector.broadcast %cst_6 : f32 to vector<16x5xf32>
    %28 = arith.select %26, %23, %27 : vector<16x5xi1>, vector<16x5xf32>
    %cst_7 = arith.constant dense<0xFF800000> : vector<16xf32>
    %29 = vector.multi_reduction <maximumf>, %28, %cst_7 [1] : vector<16x5xf32> to vector<16xf32>
    %30 = vector.shape_cast %29 : vector<16xf32> to vector<16x1xf32>
    %31 = vector.broadcast %30 : vector<16x1xf32> to vector<16x5xf32>
    %32 = arith.subf %28, %31 : vector<16x5xf32>
    %33 = math.exp %32 : vector<16x5xf32>
    %cst_8 = arith.constant dense<0.000000e+00> : vector<16xf32>
    %34 = vector.multi_reduction <add>, %33, %cst_8 [1] : vector<16x5xf32> to vector<16xf32>
    %35 = vector.shape_cast %34 : vector<16xf32> to vector<16x1xf32>
    %36 = tpu.reciprocal %35 {approx = true} : vector<16x1xf32> -> vector<16x1xf32>
    %37 = vector.broadcast %36 : vector<16x1xf32> to vector<16x5xf32>
    %38 = arith.mulf %33, %37 : vector<16x5xf32>
    %39 = vector.broadcast %10 : i32 to vector<16x5xi32>
    %40 = arith.cmpi eq, %24, %39 : vector<16x5xi32>
    %cst_9 = arith.constant 0.000000e+00 : f32
    %41 = vector.broadcast %cst_9 : f32 to vector<16x5xf32>
    %42 = arith.select %40, %38, %41 : vector<16x5xi1>, vector<16x5xf32>
    %cst_10 = arith.constant dense<0.000000e+00> : vector<16xf32>
    %43 = vector.multi_reduction <add>, %42, %cst_10 [1] : vector<16x5xf32> to vector<16xf32>
    %44 = vector.shape_cast %43 : vector<16xf32> to vector<16x1xf32>
    %c0_i32_11 = arith.constant 0 : i32
    %45 = arith.cmpi eq, %arg0, %c0_i32_11 : i32
    %46 = vector.broadcast %44 : vector<16x1xf32> to vector<16x32xf32>
    %47 = arith.mulf %15, %46 : vector<16x32xf32>
    %48 = arith.select %45, %15, %47 : vector<16x32xf32>
    %49 = arith.index_cast %arg0 : i32 to index
    %c0_12 = arith.constant 0 : index
    %c0_13 = arith.constant 0 : index
    %50 = vector.load %arg5[%49, %c0_12, %c0_13] : memref<8x4x512xf32, #tpu.memory_space<vmem>>, vector<1x4x512xf32>
    %51 = vector.shape_cast %50 : vector<1x4x512xf32> to vector<4x512xf32>
    %52 = arith.index_cast %arg0 : i32 to index
    %c0_14 = arith.constant 0 : index
    %c0_15 = arith.constant 0 : index
    %c0_16 = arith.constant 0 : index
    %53 = vector.load %arg4[%52, %c0_14, %c0_15, %c0_16] : memref<8x4x32x384xbf16, #tpu.memory_space<vmem>>, vector<1x1x32x384xbf16>
    %54 = vector.shape_cast %53 : vector<1x1x32x384xbf16> to vector<32x384xbf16>
    %55 = vector.extract_strided_slice %51 {offsets = [0, 0], sizes = [1, 512], strides = [1, 1]} : vector<4x512xf32> to vector<1x512xf32>
    %56 = vector.shape_cast %55 : vector<1x512xf32> to vector<512xf32>
    %cst_17 = arith.constant dense<0.000000e+00> : vector<16xf32>
    %57 = vector.multi_reduction <add>, %48, %cst_17 [1] : vector<16x32xf32> to vector<16xf32>
    %58 = vector.shape_cast %57 : vector<16xf32> to vector<16x1xf32>
    %cst_18 = arith.constant 3.200000e+01 : f32
    %59 = vector.broadcast %cst_18 : f32 to vector<16x1xf32>
    %60 = arith.divf %58, %59 : vector<16x1xf32>
    %61 = vector.broadcast %60 : vector<16x1xf32> to vector<16x32xf32>
    %62 = arith.subf %48, %61 : vector<16x32xf32>
    %63 = arith.mulf %62, %62 : vector<16x32xf32>
    %cst_19 = arith.constant dense<0.000000e+00> : vector<16xf32>
    %64 = vector.multi_reduction <add>, %63, %cst_19 [1] : vector<16x32xf32> to vector<16xf32>
    %65 = vector.shape_cast %64 : vector<16xf32> to vector<16x1xf32>
    %cst_20 = arith.constant 3.200000e+01 : f32
    %66 = vector.broadcast %cst_20 : f32 to vector<16x1xf32>
    %67 = arith.divf %65, %66 : vector<16x1xf32>
    %68 = vector.broadcast %60 : vector<16x1xf32> to vector<16x32xf32>
    %69 = arith.subf %48, %68 : vector<16x32xf32>
    %cst_21 = arith.constant 9.99999974E-6 : f32
    %70 = vector.broadcast %cst_21 : f32 to vector<16x1xf32>
    %71 = arith.addf %67, %70 : vector<16x1xf32>
    %72 = math.rsqrt %71 : vector<16x1xf32>
    %73 = vector.broadcast %72 : vector<16x1xf32> to vector<16x32xf32>
    %74 = arith.mulf %69, %73 : vector<16x32xf32>
    %75 = vector.extract_strided_slice %56 {offsets = [128], sizes = [32], strides = [1]} : vector<512xf32> to vector<32xf32>
    %76 = vector.shape_cast %75 : vector<32xf32> to vector<1x32xf32>
    %77 = vector.broadcast %76 : vector<1x32xf32> to vector<16x32xf32>
    %78 = arith.mulf %74, %77 : vector<16x32xf32>
    %79 = vector.extract_strided_slice %56 {offsets = [160], sizes = [32], strides = [1]} : vector<512xf32> to vector<32xf32>
    %80 = vector.shape_cast %79 : vector<32xf32> to vector<1x32xf32>
    %81 = vector.broadcast %80 : vector<1x32xf32> to vector<16x32xf32>
    %82 = arith.addf %78, %81 : vector<16x32xf32>
    %83 = arith.truncf %82 : vector<16x32xf32> to vector<16x32xbf16>
    %84 = vector.extract_strided_slice %54 {offsets = [0, 0], sizes = [32, 96], strides = [1, 1]} : vector<32x384xbf16> to vector<32x96xbf16>
    %cst_22 = arith.constant dense<0.000000e+00> : vector<16x96xf32>
    %85 = tpu.matmul %83, %84, %cst_22 {dimension_numbers = #tpu.dot_dimension_numbers<[1], [0], [0], [1], [0, 0, 1, 1], [], []>} : vector<16x32xbf16>, vector<32x96xbf16>, vector<16x96xf32> -> vector<16x96xf32>
    %86 = vector.extract_strided_slice %56 {offsets = [0], sizes = [96], strides = [1]} : vector<512xf32> to vector<96xf32>
    %87 = vector.shape_cast %86 : vector<96xf32> to vector<1x96xf32>
    %88 = vector.broadcast %87 : vector<1x96xf32> to vector<16x96xf32>
    %89 = arith.addf %85, %88 : vector<16x96xf32>
    %90 = vector.extract_strided_slice %89 {offsets = [0, 0], sizes = [16, 32], strides = [1, 1]} : vector<16x96xf32> to vector<16x32xf32>
    %91 = vector.extract_strided_slice %90 {offsets = [0, 0], sizes = [16, 8], strides = [1, 1]} : vector<16x32xf32> to vector<16x8xf32>
    %92 = vector.shape_cast %91 : vector<16x8xf32> to vector<2x8x8xf32>
    %93 = vector.extract_strided_slice %90 {offsets = [0, 8], sizes = [16, 8], strides = [1, 1]} : vector<16x32xf32> to vector<16x8xf32>
    %94 = vector.shape_cast %93 : vector<16x8xf32> to vector<2x8x8xf32>
    %95 = vector.extract_strided_slice %90 {offsets = [0, 16], sizes = [16, 8], strides = [1, 1]} : vector<16x32xf32> to vector<16x8xf32>
    %96 = vector.shape_cast %95 : vector<16x8xf32> to vector<2x8x8xf32>
    %97 = vector.extract_strided_slice %90 {offsets = [0, 24], sizes = [16, 8], strides = [1, 1]} : vector<16x32xf32> to vector<16x8xf32>
    %98 = vector.shape_cast %97 : vector<16x8xf32> to vector<2x8x8xf32>
    %99 = tpu.concatenate %92, %94, %96, %98 in 0 : vector<2x8x8xf32>, vector<2x8x8xf32>, vector<2x8x8xf32>, vector<2x8x8xf32> -> vector<8x8x8xf32>
    %100 = arith.truncf %99 : vector<8x8x8xf32> to vector<8x8x8xbf16>
    %101 = vector.extract_strided_slice %89 {offsets = [0, 32], sizes = [16, 32], strides = [1, 1]} : vector<16x96xf32> to vector<16x32xf32>
    %102 = vector.extract_strided_slice %101 {offsets = [0, 0], sizes = [16, 8], strides = [1, 1]} : vector<16x32xf32> to vector<16x8xf32>
    %103 = vector.shape_cast %102 : vector<16x8xf32> to vector<2x8x8xf32>
    %104 = vector.extract_strided_slice %101 {offsets = [0, 8], sizes = [16, 8], strides = [1, 1]} : vector<16x32xf32> to vector<16x8xf32>
    %105 = vector.shape_cast %104 : vector<16x8xf32> to vector<2x8x8xf32>
    %106 = vector.extract_strided_slice %101 {offsets = [0, 16], sizes = [16, 8], strides = [1, 1]} : vector<16x32xf32> to vector<16x8xf32>
    %107 = vector.shape_cast %106 : vector<16x8xf32> to vector<2x8x8xf32>
    %108 = vector.extract_strided_slice %101 {offsets = [0, 24], sizes = [16, 8], strides = [1, 1]} : vector<16x32xf32> to vector<16x8xf32>
    %109 = vector.shape_cast %108 : vector<16x8xf32> to vector<2x8x8xf32>
    %110 = tpu.concatenate %103, %105, %107, %109 in 0 : vector<2x8x8xf32>, vector<2x8x8xf32>, vector<2x8x8xf32>, vector<2x8x8xf32> -> vector<8x8x8xf32>
    %111 = arith.truncf %110 : vector<8x8x8xf32> to vector<8x8x8xbf16>
    %112 = vector.extract_strided_slice %89 {offsets = [0, 64], sizes = [16, 32], strides = [1, 1]} : vector<16x96xf32> to vector<16x32xf32>
    %113 = vector.extract_strided_slice %112 {offsets = [0, 0], sizes = [16, 8], strides = [1, 1]} : vector<16x32xf32> to vector<16x8xf32>
    %114 = vector.shape_cast %113 : vector<16x8xf32> to vector<2x8x8xf32>
    %115 = vector.extract_strided_slice %112 {offsets = [0, 8], sizes = [16, 8], strides = [1, 1]} : vector<16x32xf32> to vector<16x8xf32>
    %116 = vector.shape_cast %115 : vector<16x8xf32> to vector<2x8x8xf32>
    %117 = vector.extract_strided_slice %112 {offsets = [0, 16], sizes = [16, 8], strides = [1, 1]} : vector<16x32xf32> to vector<16x8xf32>
    %118 = vector.shape_cast %117 : vector<16x8xf32> to vector<2x8x8xf32>
    %119 = vector.extract_strided_slice %112 {offsets = [0, 24], sizes = [16, 8], strides = [1, 1]} : vector<16x32xf32> to vector<16x8xf32>
    %120 = vector.shape_cast %119 : vector<16x8xf32> to vector<2x8x8xf32>
    %121 = tpu.concatenate %114, %116, %118, %120 in 0 : vector<2x8x8xf32>, vector<2x8x8xf32>, vector<2x8x8xf32>, vector<2x8x8xf32> -> vector<8x8x8xf32>
    %122 = arith.truncf %121 : vector<8x8x8xf32> to vector<8x8x8xbf16>
    "tpu.trace_start"() <{level = 10 : i32, message = "bnd,bmd->bnm"}> : () -> ()
    %cst_23 = arith.constant dense<0.000000e+00> : vector<8x8x8xf32>
    %123 = tpu.matmul %100, %111, %cst_23 {dimension_numbers = #tpu.dot_dimension_numbers<[2], [2], [1], [1], [0, 0, 0, 1, 1, 1], [0], [0]>} : vector<8x8x8xbf16>, vector<8x8x8xbf16>, vector<8x8x8xf32> -> vector<8x8x8xf32>
    "tpu.trace_stop"() : () -> ()
    %cst_24 = arith.constant 0.353553385 : f32
    %124 = vector.broadcast %cst_24 : f32 to vector<8x8x8xf32>
    %125 = arith.mulf %123, %124 : vector<8x8x8xf32>
    %cst_25 = arith.constant dense<0xFF800000> : vector<8x8xf32>
    %126 = vector.multi_reduction <maximumf>, %125, %cst_25 [2] : vector<8x8x8xf32> to vector<8x8xf32>
    %127 = vector.shape_cast %126 : vector<8x8xf32> to vector<8x8x1xf32>
    %128 = vector.broadcast %127 : vector<8x8x1xf32> to vector<8x8x8xf32>
    %129 = arith.subf %125, %128 : vector<8x8x8xf32>
    %130 = math.exp %129 : vector<8x8x8xf32>
    %cst_26 = arith.constant dense<0.000000e+00> : vector<8x8xf32>
    %131 = vector.multi_reduction <add>, %130, %cst_26 [2] : vector<8x8x8xf32> to vector<8x8xf32>
    %132 = vector.shape_cast %131 : vector<8x8xf32> to vector<8x8x1xf32>
    %133 = tpu.reciprocal %132 {approx = true} : vector<8x8x1xf32> -> vector<8x8x1xf32>
    %134 = vector.broadcast %133 : vector<8x8x1xf32> to vector<8x8x8xf32>
    %135 = arith.mulf %130, %134 : vector<8x8x8xf32>
    %136 = arith.truncf %135 : vector<8x8x8xf32> to vector<8x8x8xbf16>
    "tpu.trace_start"() <{level = 10 : i32, message = "bnm,bmd->bnd"}> : () -> ()
    %cst_27 = arith.constant dense<0.000000e+00> : vector<8x8x8xf32>
    %137 = tpu.matmul %136, %122, %cst_27 {dimension_numbers = #tpu.dot_dimension_numbers<[2], [1], [1], [2], [0, 0, 0, 1, 1, 2], [0], [0]>} : vector<8x8x8xbf16>, vector<8x8x8xbf16>, vector<8x8x8xf32> -> vector<8x8x8xf32>
    "tpu.trace_stop"() : () -> ()
    %138 = vector.extract_strided_slice %137 {offsets = [0, 0, 0], sizes = [2, 8, 8], strides = [1, 1, 1]} : vector<8x8x8xf32> to vector<2x8x8xf32>
    %139 = vector.shape_cast %138 : vector<2x8x8xf32> to vector<16x8xf32>
    %140 = vector.extract_strided_slice %137 {offsets = [2, 0, 0], sizes = [2, 8, 8], strides = [1, 1, 1]} : vector<8x8x8xf32> to vector<2x8x8xf32>
    %141 = vector.shape_cast %140 : vector<2x8x8xf32> to vector<16x8xf32>
    %142 = vector.extract_strided_slice %137 {offsets = [4, 0, 0], sizes = [2, 8, 8], strides = [1, 1, 1]} : vector<8x8x8xf32> to vector<2x8x8xf32>
    %143 = vector.shape_cast %142 : vector<2x8x8xf32> to vector<16x8xf32>
    %144 = vector.extract_strided_slice %137 {offsets = [6, 0, 0], sizes = [2, 8, 8], strides = [1, 1, 1]} : vector<8x8x8xf32> to vector<2x8x8xf32>
    %145 = vector.shape_cast %144 : vector<2x8x8xf32> to vector<16x8xf32>
    %146 = tpu.concatenate %139, %141, %143, %145 in 1 : vector<16x8xf32>, vector<16x8xf32>, vector<16x8xf32>, vector<16x8xf32> -> vector<16x32xf32>
    %147 = arith.truncf %146 : vector<16x32xf32> to vector<16x32xbf16>
    %148 = vector.extract_strided_slice %54 {offsets = [0, 96], sizes = [32, 32], strides = [1, 1]} : vector<32x384xbf16> to vector<32x32xbf16>
    %cst_28 = arith.constant dense<0.000000e+00> : vector<16x32xf32>
    %149 = tpu.matmul %147, %148, %cst_28 {dimension_numbers = #tpu.dot_dimension_numbers<[1], [0], [0], [1], [0, 0, 1, 1], [], []>} : vector<16x32xbf16>, vector<32x32xbf16>, vector<16x32xf32> -> vector<16x32xf32>
    %150 = arith.addf %48, %149 : vector<16x32xf32>
    %151 = vector.extract_strided_slice %56 {offsets = [96], sizes = [32], strides = [1]} : vector<512xf32> to vector<32xf32>
    %152 = vector.shape_cast %151 : vector<32xf32> to vector<1x32xf32>
    %153 = vector.broadcast %152 : vector<1x32xf32> to vector<16x32xf32>
    %154 = arith.addf %150, %153 : vector<16x32xf32>
    %cst_29 = arith.constant dense<0.000000e+00> : vector<16xf32>
    %155 = vector.multi_reduction <add>, %154, %cst_29 [1] : vector<16x32xf32> to vector<16xf32>
    %156 = vector.shape_cast %155 : vector<16xf32> to vector<16x1xf32>
    %cst_30 = arith.constant 3.200000e+01 : f32
    %157 = vector.broadcast %cst_30 : f32 to vector<16x1xf32>
    %158 = arith.divf %156, %157 : vector<16x1xf32>
    %159 = vector.broadcast %158 : vector<16x1xf32> to vector<16x32xf32>
    %160 = arith.subf %154, %159 : vector<16x32xf32>
    %161 = arith.mulf %160, %160 : vector<16x32xf32>
    %cst_31 = arith.constant dense<0.000000e+00> : vector<16xf32>
    %162 = vector.multi_reduction <add>, %161, %cst_31 [1] : vector<16x32xf32> to vector<16xf32>
    %163 = vector.shape_cast %162 : vector<16xf32> to vector<16x1xf32>
    %cst_32 = arith.constant 3.200000e+01 : f32
    %164 = vector.broadcast %cst_32 : f32 to vector<16x1xf32>
    %165 = arith.divf %163, %164 : vector<16x1xf32>
    %166 = vector.broadcast %158 : vector<16x1xf32> to vector<16x32xf32>
    %167 = arith.subf %154, %166 : vector<16x32xf32>
    %cst_33 = arith.constant 9.99999974E-6 : f32
    %168 = vector.broadcast %cst_33 : f32 to vector<16x1xf32>
    %169 = arith.addf %165, %168 : vector<16x1xf32>
    %170 = math.rsqrt %169 : vector<16x1xf32>
    %171 = vector.broadcast %170 : vector<16x1xf32> to vector<16x32xf32>
    %172 = arith.mulf %167, %171 : vector<16x32xf32>
    %173 = vector.extract_strided_slice %56 {offsets = [192], sizes = [32], strides = [1]} : vector<512xf32> to vector<32xf32>
    %174 = vector.shape_cast %173 : vector<32xf32> to vector<1x32xf32>
    %175 = vector.broadcast %174 : vector<1x32xf32> to vector<16x32xf32>
    %176 = arith.mulf %172, %175 : vector<16x32xf32>
    %177 = vector.extract_strided_slice %56 {offsets = [224], sizes = [32], strides = [1]} : vector<512xf32> to vector<32xf32>
    %178 = vector.shape_cast %177 : vector<32xf32> to vector<1x32xf32>
    %179 = vector.broadcast %178 : vector<1x32xf32> to vector<16x32xf32>
    %180 = arith.addf %176, %179 : vector<16x32xf32>
    %181 = arith.truncf %180 : vector<16x32xf32> to vector<16x32xbf16>
    %182 = vector.extract_strided_slice %54 {offsets = [0, 128], sizes = [32, 128], strides = [1, 1]} : vector<32x384xbf16> to vector<32x128xbf16>
    %cst_34 = arith.constant dense<0.000000e+00> : vector<16x128xf32>
    %183 = tpu.matmul %181, %182, %cst_34 {dimension_numbers = #tpu.dot_dimension_numbers<[1], [0], [0], [1], [0, 0, 1, 1], [], []>} : vector<16x32xbf16>, vector<32x128xbf16>, vector<16x128xf32> -> vector<16x128xf32>
    %184 = vector.extract_strided_slice %56 {offsets = [288], sizes = [128], strides = [1]} : vector<512xf32> to vector<128xf32>
    %185 = vector.shape_cast %184 : vector<128xf32> to vector<1x128xf32>
    %186 = vector.broadcast %185 : vector<1x128xf32> to vector<16x128xf32>
    %187 = arith.addf %183, %186 : vector<16x128xf32>
    %188 = arith.mulf %187, %187 : vector<16x128xf32>
    %189 = arith.mulf %187, %188 : vector<16x128xf32>
    %cst_35 = arith.constant 4.471500e-02 : f32
    %190 = vector.broadcast %cst_35 : f32 to vector<16x128xf32>
    %191 = arith.mulf %190, %189 : vector<16x128xf32>
    %192 = arith.addf %187, %191 : vector<16x128xf32>
    %cst_36 = arith.constant 0.797884583 : f32
    %193 = vector.broadcast %cst_36 : f32 to vector<16x128xf32>
    %194 = arith.mulf %193, %192 : vector<16x128xf32>
    %195 = math.tanh %194 : vector<16x128xf32>
    %cst_37 = arith.constant 1.000000e+00 : f32
    %196 = vector.broadcast %cst_37 : f32 to vector<16x128xf32>
    %197 = arith.addf %196, %195 : vector<16x128xf32>
    %cst_38 = arith.constant 5.000000e-01 : f32
    %198 = vector.broadcast %cst_38 : f32 to vector<16x128xf32>
    %199 = arith.mulf %198, %197 : vector<16x128xf32>
    %200 = arith.mulf %187, %199 : vector<16x128xf32>
    %201 = arith.truncf %200 : vector<16x128xf32> to vector<16x128xbf16>
    %202 = vector.extract_strided_slice %54 {offsets = [0, 256], sizes = [32, 128], strides = [1, 1]} : vector<32x384xbf16> to vector<32x128xbf16>
    %cst_39 = arith.constant dense<0.000000e+00> : vector<16x32xf32>
    %203 = tpu.matmul %201, %202, %cst_39 {dimension_numbers = #tpu.dot_dimension_numbers<[1], [1], [0], [0], [0, 0, 1, 0], [], []>} : vector<16x128xbf16>, vector<32x128xbf16>, vector<16x32xf32> -> vector<16x32xf32>
    %204 = arith.addf %154, %203 : vector<16x32xf32>
    %205 = vector.extract_strided_slice %56 {offsets = [256], sizes = [32], strides = [1]} : vector<512xf32> to vector<32xf32>
    %206 = vector.shape_cast %205 : vector<32xf32> to vector<1x32xf32>
    %207 = vector.broadcast %206 : vector<1x32xf32> to vector<16x32xf32>
    %208 = arith.addf %204, %207 : vector<16x32xf32>
    %209 = arith.index_cast %arg0 : i32 to index
    %c1_40 = arith.constant 1 : index
    %c0_41 = arith.constant 0 : index
    %c0_42 = arith.constant 0 : index
    %210 = vector.load %arg4[%209, %c1_40, %c0_41, %c0_42] : memref<8x4x32x384xbf16, #tpu.memory_space<vmem>>, vector<1x1x32x384xbf16>
    %211 = vector.shape_cast %210 : vector<1x1x32x384xbf16> to vector<32x384xbf16>
    %212 = vector.extract_strided_slice %51 {offsets = [1, 0], sizes = [1, 512], strides = [1, 1]} : vector<4x512xf32> to vector<1x512xf32>
    %213 = vector.shape_cast %212 : vector<1x512xf32> to vector<512xf32>
    %cst_43 = arith.constant dense<0.000000e+00> : vector<16xf32>
    %214 = vector.multi_reduction <add>, %208, %cst_43 [1] : vector<16x32xf32> to vector<16xf32>
    %215 = vector.shape_cast %214 : vector<16xf32> to vector<16x1xf32>
    %cst_44 = arith.constant 3.200000e+01 : f32
    %216 = vector.broadcast %cst_44 : f32 to vector<16x1xf32>
    %217 = arith.divf %215, %216 : vector<16x1xf32>
    %218 = vector.broadcast %217 : vector<16x1xf32> to vector<16x32xf32>
    %219 = arith.subf %208, %218 : vector<16x32xf32>
    %220 = arith.mulf %219, %219 : vector<16x32xf32>
    %cst_45 = arith.constant dense<0.000000e+00> : vector<16xf32>
    %221 = vector.multi_reduction <add>, %220, %cst_45 [1] : vector<16x32xf32> to vector<16xf32>
    %222 = vector.shape_cast %221 : vector<16xf32> to vector<16x1xf32>
    %cst_46 = arith.constant 3.200000e+01 : f32
    %223 = vector.broadcast %cst_46 : f32 to vector<16x1xf32>
    %224 = arith.divf %222, %223 : vector<16x1xf32>
    %225 = vector.broadcast %217 : vector<16x1xf32> to vector<16x32xf32>
    %226 = arith.subf %208, %225 : vector<16x32xf32>
    %cst_47 = arith.constant 9.99999974E-6 : f32
    %227 = vector.broadcast %cst_47 : f32 to vector<16x1xf32>
    %228 = arith.addf %224, %227 : vector<16x1xf32>
    %229 = math.rsqrt %228 : vector<16x1xf32>
    %230 = vector.broadcast %229 : vector<16x1xf32> to vector<16x32xf32>
    %231 = arith.mulf %226, %230 : vector<16x32xf32>
    %232 = vector.extract_strided_slice %213 {offsets = [128], sizes = [32], strides = [1]} : vector<512xf32> to vector<32xf32>
    %233 = vector.shape_cast %232 : vector<32xf32> to vector<1x32xf32>
    %234 = vector.broadcast %233 : vector<1x32xf32> to vector<16x32xf32>
    %235 = arith.mulf %231, %234 : vector<16x32xf32>
    %236 = vector.extract_strided_slice %213 {offsets = [160], sizes = [32], strides = [1]} : vector<512xf32> to vector<32xf32>
    %237 = vector.shape_cast %236 : vector<32xf32> to vector<1x32xf32>
    %238 = vector.broadcast %237 : vector<1x32xf32> to vector<16x32xf32>
    %239 = arith.addf %235, %238 : vector<16x32xf32>
    %240 = arith.truncf %239 : vector<16x32xf32> to vector<16x32xbf16>
    %241 = vector.extract_strided_slice %211 {offsets = [0, 0], sizes = [32, 96], strides = [1, 1]} : vector<32x384xbf16> to vector<32x96xbf16>
    %cst_48 = arith.constant dense<0.000000e+00> : vector<16x96xf32>
    %242 = tpu.matmul %240, %241, %cst_48 {dimension_numbers = #tpu.dot_dimension_numbers<[1], [0], [0], [1], [0, 0, 1, 1], [], []>} : vector<16x32xbf16>, vector<32x96xbf16>, vector<16x96xf32> -> vector<16x96xf32>
    %243 = vector.extract_strided_slice %213 {offsets = [0], sizes = [96], strides = [1]} : vector<512xf32> to vector<96xf32>
    %244 = vector.shape_cast %243 : vector<96xf32> to vector<1x96xf32>
    %245 = vector.broadcast %244 : vector<1x96xf32> to vector<16x96xf32>
    %246 = arith.addf %242, %245 : vector<16x96xf32>
    %247 = vector.extract_strided_slice %246 {offsets = [0, 0], sizes = [16, 32], strides = [1, 1]} : vector<16x96xf32> to vector<16x32xf32>
    %248 = vector.extract_strided_slice %247 {offsets = [0, 0], sizes = [16, 8], strides = [1, 1]} : vector<16x32xf32> to vector<16x8xf32>
    %249 = vector.shape_cast %248 : vector<16x8xf32> to vector<2x8x8xf32>
    %250 = vector.extract_strided_slice %247 {offsets = [0, 8], sizes = [16, 8], strides = [1, 1]} : vector<16x32xf32> to vector<16x8xf32>
    %251 = vector.shape_cast %250 : vector<16x8xf32> to vector<2x8x8xf32>
    %252 = vector.extract_strided_slice %247 {offsets = [0, 16], sizes = [16, 8], strides = [1, 1]} : vector<16x32xf32> to vector<16x8xf32>
    %253 = vector.shape_cast %252 : vector<16x8xf32> to vector<2x8x8xf32>
    %254 = vector.extract_strided_slice %247 {offsets = [0, 24], sizes = [16, 8], strides = [1, 1]} : vector<16x32xf32> to vector<16x8xf32>
    %255 = vector.shape_cast %254 : vector<16x8xf32> to vector<2x8x8xf32>
    %256 = tpu.concatenate %249, %251, %253, %255 in 0 : vector<2x8x8xf32>, vector<2x8x8xf32>, vector<2x8x8xf32>, vector<2x8x8xf32> -> vector<8x8x8xf32>
    %257 = arith.truncf %256 : vector<8x8x8xf32> to vector<8x8x8xbf16>
    %258 = vector.extract_strided_slice %246 {offsets = [0, 32], sizes = [16, 32], strides = [1, 1]} : vector<16x96xf32> to vector<16x32xf32>
    %259 = vector.extract_strided_slice %258 {offsets = [0, 0], sizes = [16, 8], strides = [1, 1]} : vector<16x32xf32> to vector<16x8xf32>
    %260 = vector.shape_cast %259 : vector<16x8xf32> to vector<2x8x8xf32>
    %261 = vector.extract_strided_slice %258 {offsets = [0, 8], sizes = [16, 8], strides = [1, 1]} : vector<16x32xf32> to vector<16x8xf32>
    %262 = vector.shape_cast %261 : vector<16x8xf32> to vector<2x8x8xf32>
    %263 = vector.extract_strided_slice %258 {offsets = [0, 16], sizes = [16, 8], strides = [1, 1]} : vector<16x32xf32> to vector<16x8xf32>
    %264 = vector.shape_cast %263 : vector<16x8xf32> to vector<2x8x8xf32>
    %265 = vector.extract_strided_slice %258 {offsets = [0, 24], sizes = [16, 8], strides = [1, 1]} : vector<16x32xf32> to vector<16x8xf32>
    %266 = vector.shape_cast %265 : vector<16x8xf32> to vector<2x8x8xf32>
    %267 = tpu.concatenate %260, %262, %264, %266 in 0 : vector<2x8x8xf32>, vector<2x8x8xf32>, vector<2x8x8xf32>, vector<2x8x8xf32> -> vector<8x8x8xf32>
    %268 = arith.truncf %267 : vector<8x8x8xf32> to vector<8x8x8xbf16>
    %269 = vector.extract_strided_slice %246 {offsets = [0, 64], sizes = [16, 32], strides = [1, 1]} : vector<16x96xf32> to vector<16x32xf32>
    %270 = vector.extract_strided_slice %269 {offsets = [0, 0], sizes = [16, 8], strides = [1, 1]} : vector<16x32xf32> to vector<16x8xf32>
    %271 = vector.shape_cast %270 : vector<16x8xf32> to vector<2x8x8xf32>
    %272 = vector.extract_strided_slice %269 {offsets = [0, 8], sizes = [16, 8], strides = [1, 1]} : vector<16x32xf32> to vector<16x8xf32>
    %273 = vector.shape_cast %272 : vector<16x8xf32> to vector<2x8x8xf32>
    %274 = vector.extract_strided_slice %269 {offsets = [0, 16], sizes = [16, 8], strides = [1, 1]} : vector<16x32xf32> to vector<16x8xf32>
    %275 = vector.shape_cast %274 : vector<16x8xf32> to vector<2x8x8xf32>
    %276 = vector.extract_strided_slice %269 {offsets = [0, 24], sizes = [16, 8], strides = [1, 1]} : vector<16x32xf32> to vector<16x8xf32>
    %277 = vector.shape_cast %276 : vector<16x8xf32> to vector<2x8x8xf32>
    %278 = tpu.concatenate %271, %273, %275, %277 in 0 : vector<2x8x8xf32>, vector<2x8x8xf32>, vector<2x8x8xf32>, vector<2x8x8xf32> -> vector<8x8x8xf32>
    %279 = arith.truncf %278 : vector<8x8x8xf32> to vector<8x8x8xbf16>
    "tpu.trace_start"() <{level = 10 : i32, message = "bnd,bmd->bnm"}> : () -> ()
    %cst_49 = arith.constant dense<0.000000e+00> : vector<8x8x8xf32>
    %280 = tpu.matmul %257, %268, %cst_49 {dimension_numbers = #tpu.dot_dimension_numbers<[2], [2], [1], [1], [0, 0, 0, 1, 1, 1], [0], [0]>} : vector<8x8x8xbf16>, vector<8x8x8xbf16>, vector<8x8x8xf32> -> vector<8x8x8xf32>
    "tpu.trace_stop"() : () -> ()
    %cst_50 = arith.constant 0.353553385 : f32
    %281 = vector.broadcast %cst_50 : f32 to vector<8x8x8xf32>
    %282 = arith.mulf %280, %281 : vector<8x8x8xf32>
    %cst_51 = arith.constant dense<0xFF800000> : vector<8x8xf32>
    %283 = vector.multi_reduction <maximumf>, %282, %cst_51 [2] : vector<8x8x8xf32> to vector<8x8xf32>
    %284 = vector.shape_cast %283 : vector<8x8xf32> to vector<8x8x1xf32>
    %285 = vector.broadcast %284 : vector<8x8x1xf32> to vector<8x8x8xf32>
    %286 = arith.subf %282, %285 : vector<8x8x8xf32>
    %287 = math.exp %286 : vector<8x8x8xf32>
    %cst_52 = arith.constant dense<0.000000e+00> : vector<8x8xf32>
    %288 = vector.multi_reduction <add>, %287, %cst_52 [2] : vector<8x8x8xf32> to vector<8x8xf32>
    %289 = vector.shape_cast %288 : vector<8x8xf32> to vector<8x8x1xf32>
    %290 = tpu.reciprocal %289 {approx = true} : vector<8x8x1xf32> -> vector<8x8x1xf32>
    %291 = vector.broadcast %290 : vector<8x8x1xf32> to vector<8x8x8xf32>
    %292 = arith.mulf %287, %291 : vector<8x8x8xf32>
    %293 = arith.truncf %292 : vector<8x8x8xf32> to vector<8x8x8xbf16>
    "tpu.trace_start"() <{level = 10 : i32, message = "bnm,bmd->bnd"}> : () -> ()
    %cst_53 = arith.constant dense<0.000000e+00> : vector<8x8x8xf32>
    %294 = tpu.matmul %293, %279, %cst_53 {dimension_numbers = #tpu.dot_dimension_numbers<[2], [1], [1], [2], [0, 0, 0, 1, 1, 2], [0], [0]>} : vector<8x8x8xbf16>, vector<8x8x8xbf16>, vector<8x8x8xf32> -> vector<8x8x8xf32>
    "tpu.trace_stop"() : () -> ()
    %295 = vector.extract_strided_slice %294 {offsets = [0, 0, 0], sizes = [2, 8, 8], strides = [1, 1, 1]} : vector<8x8x8xf32> to vector<2x8x8xf32>
    %296 = vector.shape_cast %295 : vector<2x8x8xf32> to vector<16x8xf32>
    %297 = vector.extract_strided_slice %294 {offsets = [2, 0, 0], sizes = [2, 8, 8], strides = [1, 1, 1]} : vector<8x8x8xf32> to vector<2x8x8xf32>
    %298 = vector.shape_cast %297 : vector<2x8x8xf32> to vector<16x8xf32>
    %299 = vector.extract_strided_slice %294 {offsets = [4, 0, 0], sizes = [2, 8, 8], strides = [1, 1, 1]} : vector<8x8x8xf32> to vector<2x8x8xf32>
    %300 = vector.shape_cast %299 : vector<2x8x8xf32> to vector<16x8xf32>
    %301 = vector.extract_strided_slice %294 {offsets = [6, 0, 0], sizes = [2, 8, 8], strides = [1, 1, 1]} : vector<8x8x8xf32> to vector<2x8x8xf32>
    %302 = vector.shape_cast %301 : vector<2x8x8xf32> to vector<16x8xf32>
    %303 = tpu.concatenate %296, %298, %300, %302 in 1 : vector<16x8xf32>, vector<16x8xf32>, vector<16x8xf32>, vector<16x8xf32> -> vector<16x32xf32>
    %304 = arith.truncf %303 : vector<16x32xf32> to vector<16x32xbf16>
    %305 = vector.extract_strided_slice %211 {offsets = [0, 96], sizes = [32, 32], strides = [1, 1]} : vector<32x384xbf16> to vector<32x32xbf16>
    %cst_54 = arith.constant dense<0.000000e+00> : vector<16x32xf32>
    %306 = tpu.matmul %304, %305, %cst_54 {dimension_numbers = #tpu.dot_dimension_numbers<[1], [0], [0], [1], [0, 0, 1, 1], [], []>} : vector<16x32xbf16>, vector<32x32xbf16>, vector<16x32xf32> -> vector<16x32xf32>
    %307 = arith.addf %208, %306 : vector<16x32xf32>
    %308 = vector.extract_strided_slice %213 {offsets = [96], sizes = [32], strides = [1]} : vector<512xf32> to vector<32xf32>
    %309 = vector.shape_cast %308 : vector<32xf32> to vector<1x32xf32>
    %310 = vector.broadcast %309 : vector<1x32xf32> to vector<16x32xf32>
    %311 = arith.addf %307, %310 : vector<16x32xf32>
    %cst_55 = arith.constant dense<0.000000e+00> : vector<16xf32>
    %312 = vector.multi_reduction <add>, %311, %cst_55 [1] : vector<16x32xf32> to vector<16xf32>
    %313 = vector.shape_cast %312 : vector<16xf32> to vector<16x1xf32>
    %cst_56 = arith.constant 3.200000e+01 : f32
    %314 = vector.broadcast %cst_56 : f32 to vector<16x1xf32>
    %315 = arith.divf %313, %314 : vector<16x1xf32>
    %316 = vector.broadcast %315 : vector<16x1xf32> to vector<16x32xf32>
    %317 = arith.subf %311, %316 : vector<16x32xf32>
    %318 = arith.mulf %317, %317 : vector<16x32xf32>
    %cst_57 = arith.constant dense<0.000000e+00> : vector<16xf32>
    %319 = vector.multi_reduction <add>, %318, %cst_57 [1] : vector<16x32xf32> to vector<16xf32>
    %320 = vector.shape_cast %319 : vector<16xf32> to vector<16x1xf32>
    %cst_58 = arith.constant 3.200000e+01 : f32
    %321 = vector.broadcast %cst_58 : f32 to vector<16x1xf32>
    %322 = arith.divf %320, %321 : vector<16x1xf32>
    %323 = vector.broadcast %315 : vector<16x1xf32> to vector<16x32xf32>
    %324 = arith.subf %311, %323 : vector<16x32xf32>
    %cst_59 = arith.constant 9.99999974E-6 : f32
    %325 = vector.broadcast %cst_59 : f32 to vector<16x1xf32>
    %326 = arith.addf %322, %325 : vector<16x1xf32>
    %327 = math.rsqrt %326 : vector<16x1xf32>
    %328 = vector.broadcast %327 : vector<16x1xf32> to vector<16x32xf32>
    %329 = arith.mulf %324, %328 : vector<16x32xf32>
    %330 = vector.extract_strided_slice %213 {offsets = [192], sizes = [32], strides = [1]} : vector<512xf32> to vector<32xf32>
    %331 = vector.shape_cast %330 : vector<32xf32> to vector<1x32xf32>
    %332 = vector.broadcast %331 : vector<1x32xf32> to vector<16x32xf32>
    %333 = arith.mulf %329, %332 : vector<16x32xf32>
    %334 = vector.extract_strided_slice %213 {offsets = [224], sizes = [32], strides = [1]} : vector<512xf32> to vector<32xf32>
    %335 = vector.shape_cast %334 : vector<32xf32> to vector<1x32xf32>
    %336 = vector.broadcast %335 : vector<1x32xf32> to vector<16x32xf32>
    %337 = arith.addf %333, %336 : vector<16x32xf32>
    %338 = arith.truncf %337 : vector<16x32xf32> to vector<16x32xbf16>
    %339 = vector.extract_strided_slice %211 {offsets = [0, 128], sizes = [32, 128], strides = [1, 1]} : vector<32x384xbf16> to vector<32x128xbf16>
    %cst_60 = arith.constant dense<0.000000e+00> : vector<16x128xf32>
    %340 = tpu.matmul %338, %339, %cst_60 {dimension_numbers = #tpu.dot_dimension_numbers<[1], [0], [0], [1], [0, 0, 1, 1], [], []>} : vector<16x32xbf16>, vector<32x128xbf16>, vector<16x128xf32> -> vector<16x128xf32>
    %341 = vector.extract_strided_slice %213 {offsets = [288], sizes = [128], strides = [1]} : vector<512xf32> to vector<128xf32>
    %342 = vector.shape_cast %341 : vector<128xf32> to vector<1x128xf32>
    %343 = vector.broadcast %342 : vector<1x128xf32> to vector<16x128xf32>
    %344 = arith.addf %340, %343 : vector<16x128xf32>
    %345 = arith.mulf %344, %344 : vector<16x128xf32>
    %346 = arith.mulf %344, %345 : vector<16x128xf32>
    %cst_61 = arith.constant 4.471500e-02 : f32
    %347 = vector.broadcast %cst_61 : f32 to vector<16x128xf32>
    %348 = arith.mulf %347, %346 : vector<16x128xf32>
    %349 = arith.addf %344, %348 : vector<16x128xf32>
    %cst_62 = arith.constant 0.797884583 : f32
    %350 = vector.broadcast %cst_62 : f32 to vector<16x128xf32>
    %351 = arith.mulf %350, %349 : vector<16x128xf32>
    %352 = math.tanh %351 : vector<16x128xf32>
    %cst_63 = arith.constant 1.000000e+00 : f32
    %353 = vector.broadcast %cst_63 : f32 to vector<16x128xf32>
    %354 = arith.addf %353, %352 : vector<16x128xf32>
    %cst_64 = arith.constant 5.000000e-01 : f32
    %355 = vector.broadcast %cst_64 : f32 to vector<16x128xf32>
    %356 = arith.mulf %355, %354 : vector<16x128xf32>
    %357 = arith.mulf %344, %356 : vector<16x128xf32>
    %358 = arith.truncf %357 : vector<16x128xf32> to vector<16x128xbf16>
    %359 = vector.extract_strided_slice %211 {offsets = [0, 256], sizes = [32, 128], strides = [1, 1]} : vector<32x384xbf16> to vector<32x128xbf16>
    %cst_65 = arith.constant dense<0.000000e+00> : vector<16x32xf32>
    %360 = tpu.matmul %358, %359, %cst_65 {dimension_numbers = #tpu.dot_dimension_numbers<[1], [1], [0], [0], [0, 0, 1, 0], [], []>} : vector<16x128xbf16>, vector<32x128xbf16>, vector<16x32xf32> -> vector<16x32xf32>
    %361 = arith.addf %311, %360 : vector<16x32xf32>
    %362 = vector.extract_strided_slice %213 {offsets = [256], sizes = [32], strides = [1]} : vector<512xf32> to vector<32xf32>
    %363 = vector.shape_cast %362 : vector<32xf32> to vector<1x32xf32>
    %364 = vector.broadcast %363 : vector<1x32xf32> to vector<16x32xf32>
    %365 = arith.addf %361, %364 : vector<16x32xf32>
    %366 = arith.index_cast %arg0 : i32 to index
    %c2_66 = arith.constant 2 : index
    %c0_67 = arith.constant 0 : index
    %c0_68 = arith.constant 0 : index
    %367 = vector.load %arg4[%366, %c2_66, %c0_67, %c0_68] : memref<8x4x32x384xbf16, #tpu.memory_space<vmem>>, vector<1x1x32x384xbf16>
    %368 = vector.shape_cast %367 : vector<1x1x32x384xbf16> to vector<32x384xbf16>
    %369 = vector.extract_strided_slice %51 {offsets = [2, 0], sizes = [1, 512], strides = [1, 1]} : vector<4x512xf32> to vector<1x512xf32>
    %370 = vector.shape_cast %369 : vector<1x512xf32> to vector<512xf32>
    %cst_69 = arith.constant dense<0.000000e+00> : vector<16xf32>
    %371 = vector.multi_reduction <add>, %365, %cst_69 [1] : vector<16x32xf32> to vector<16xf32>
    %372 = vector.shape_cast %371 : vector<16xf32> to vector<16x1xf32>
    %cst_70 = arith.constant 3.200000e+01 : f32
    %373 = vector.broadcast %cst_70 : f32 to vector<16x1xf32>
    %374 = arith.divf %372, %373 : vector<16x1xf32>
    %375 = vector.broadcast %374 : vector<16x1xf32> to vector<16x32xf32>
    %376 = arith.subf %365, %375 : vector<16x32xf32>
    %377 = arith.mulf %376, %376 : vector<16x32xf32>
    %cst_71 = arith.constant dense<0.000000e+00> : vector<16xf32>
    %378 = vector.multi_reduction <add>, %377, %cst_71 [1] : vector<16x32xf32> to vector<16xf32>
    %379 = vector.shape_cast %378 : vector<16xf32> to vector<16x1xf32>
    %cst_72 = arith.constant 3.200000e+01 : f32
    %380 = vector.broadcast %cst_72 : f32 to vector<16x1xf32>
    %381 = arith.divf %379, %380 : vector<16x1xf32>
    %382 = vector.broadcast %374 : vector<16x1xf32> to vector<16x32xf32>
    %383 = arith.subf %365, %382 : vector<16x32xf32>
    %cst_73 = arith.constant 9.99999974E-6 : f32
    %384 = vector.broadcast %cst_73 : f32 to vector<16x1xf32>
    %385 = arith.addf %381, %384 : vector<16x1xf32>
    %386 = math.rsqrt %385 : vector<16x1xf32>
    %387 = vector.broadcast %386 : vector<16x1xf32> to vector<16x32xf32>
    %388 = arith.mulf %383, %387 : vector<16x32xf32>
    %389 = vector.extract_strided_slice %370 {offsets = [128], sizes = [32], strides = [1]} : vector<512xf32> to vector<32xf32>
    %390 = vector.shape_cast %389 : vector<32xf32> to vector<1x32xf32>
    %391 = vector.broadcast %390 : vector<1x32xf32> to vector<16x32xf32>
    %392 = arith.mulf %388, %391 : vector<16x32xf32>
    %393 = vector.extract_strided_slice %370 {offsets = [160], sizes = [32], strides = [1]} : vector<512xf32> to vector<32xf32>
    %394 = vector.shape_cast %393 : vector<32xf32> to vector<1x32xf32>
    %395 = vector.broadcast %394 : vector<1x32xf32> to vector<16x32xf32>
    %396 = arith.addf %392, %395 : vector<16x32xf32>
    %397 = arith.truncf %396 : vector<16x32xf32> to vector<16x32xbf16>
    %398 = vector.extract_strided_slice %368 {offsets = [0, 0], sizes = [32, 96], strides = [1, 1]} : vector<32x384xbf16> to vector<32x96xbf16>
    %cst_74 = arith.constant dense<0.000000e+00> : vector<16x96xf32>
    %399 = tpu.matmul %397, %398, %cst_74 {dimension_numbers = #tpu.dot_dimension_numbers<[1], [0], [0], [1], [0, 0, 1, 1], [], []>} : vector<16x32xbf16>, vector<32x96xbf16>, vector<16x96xf32> -> vector<16x96xf32>
    %400 = vector.extract_strided_slice %370 {offsets = [0], sizes = [96], strides = [1]} : vector<512xf32> to vector<96xf32>
    %401 = vector.shape_cast %400 : vector<96xf32> to vector<1x96xf32>
    %402 = vector.broadcast %401 : vector<1x96xf32> to vector<16x96xf32>
    %403 = arith.addf %399, %402 : vector<16x96xf32>
    %404 = vector.extract_strided_slice %403 {offsets = [0, 0], sizes = [16, 32], strides = [1, 1]} : vector<16x96xf32> to vector<16x32xf32>
    %405 = vector.extract_strided_slice %404 {offsets = [0, 0], sizes = [16, 8], strides = [1, 1]} : vector<16x32xf32> to vector<16x8xf32>
    %406 = vector.shape_cast %405 : vector<16x8xf32> to vector<2x8x8xf32>
    %407 = vector.extract_strided_slice %404 {offsets = [0, 8], sizes = [16, 8], strides = [1, 1]} : vector<16x32xf32> to vector<16x8xf32>
    %408 = vector.shape_cast %407 : vector<16x8xf32> to vector<2x8x8xf32>
    %409 = vector.extract_strided_slice %404 {offsets = [0, 16], sizes = [16, 8], strides = [1, 1]} : vector<16x32xf32> to vector<16x8xf32>
    %410 = vector.shape_cast %409 : vector<16x8xf32> to vector<2x8x8xf32>
    %411 = vector.extract_strided_slice %404 {offsets = [0, 24], sizes = [16, 8], strides = [1, 1]} : vector<16x32xf32> to vector<16x8xf32>
    %412 = vector.shape_cast %411 : vector<16x8xf32> to vector<2x8x8xf32>
    %413 = tpu.concatenate %406, %408, %410, %412 in 0 : vector<2x8x8xf32>, vector<2x8x8xf32>, vector<2x8x8xf32>, vector<2x8x8xf32> -> vector<8x8x8xf32>
    %414 = arith.truncf %413 : vector<8x8x8xf32> to vector<8x8x8xbf16>
    %415 = vector.extract_strided_slice %403 {offsets = [0, 32], sizes = [16, 32], strides = [1, 1]} : vector<16x96xf32> to vector<16x32xf32>
    %416 = vector.extract_strided_slice %415 {offsets = [0, 0], sizes = [16, 8], strides = [1, 1]} : vector<16x32xf32> to vector<16x8xf32>
    %417 = vector.shape_cast %416 : vector<16x8xf32> to vector<2x8x8xf32>
    %418 = vector.extract_strided_slice %415 {offsets = [0, 8], sizes = [16, 8], strides = [1, 1]} : vector<16x32xf32> to vector<16x8xf32>
    %419 = vector.shape_cast %418 : vector<16x8xf32> to vector<2x8x8xf32>
    %420 = vector.extract_strided_slice %415 {offsets = [0, 16], sizes = [16, 8], strides = [1, 1]} : vector<16x32xf32> to vector<16x8xf32>
    %421 = vector.shape_cast %420 : vector<16x8xf32> to vector<2x8x8xf32>
    %422 = vector.extract_strided_slice %415 {offsets = [0, 24], sizes = [16, 8], strides = [1, 1]} : vector<16x32xf32> to vector<16x8xf32>
    %423 = vector.shape_cast %422 : vector<16x8xf32> to vector<2x8x8xf32>
    %424 = tpu.concatenate %417, %419, %421, %423 in 0 : vector<2x8x8xf32>, vector<2x8x8xf32>, vector<2x8x8xf32>, vector<2x8x8xf32> -> vector<8x8x8xf32>
    %425 = arith.truncf %424 : vector<8x8x8xf32> to vector<8x8x8xbf16>
    %426 = vector.extract_strided_slice %403 {offsets = [0, 64], sizes = [16, 32], strides = [1, 1]} : vector<16x96xf32> to vector<16x32xf32>
    %427 = vector.extract_strided_slice %426 {offsets = [0, 0], sizes = [16, 8], strides = [1, 1]} : vector<16x32xf32> to vector<16x8xf32>
    %428 = vector.shape_cast %427 : vector<16x8xf32> to vector<2x8x8xf32>
    %429 = vector.extract_strided_slice %426 {offsets = [0, 8], sizes = [16, 8], strides = [1, 1]} : vector<16x32xf32> to vector<16x8xf32>
    %430 = vector.shape_cast %429 : vector<16x8xf32> to vector<2x8x8xf32>
    %431 = vector.extract_strided_slice %426 {offsets = [0, 16], sizes = [16, 8], strides = [1, 1]} : vector<16x32xf32> to vector<16x8xf32>
    %432 = vector.shape_cast %431 : vector<16x8xf32> to vector<2x8x8xf32>
    %433 = vector.extract_strided_slice %426 {offsets = [0, 24], sizes = [16, 8], strides = [1, 1]} : vector<16x32xf32> to vector<16x8xf32>
    %434 = vector.shape_cast %433 : vector<16x8xf32> to vector<2x8x8xf32>
    %435 = tpu.concatenate %428, %430, %432, %434 in 0 : vector<2x8x8xf32>, vector<2x8x8xf32>, vector<2x8x8xf32>, vector<2x8x8xf32> -> vector<8x8x8xf32>
    %436 = arith.truncf %435 : vector<8x8x8xf32> to vector<8x8x8xbf16>
    "tpu.trace_start"() <{level = 10 : i32, message = "bnd,bmd->bnm"}> : () -> ()
    %cst_75 = arith.constant dense<0.000000e+00> : vector<8x8x8xf32>
    %437 = tpu.matmul %414, %425, %cst_75 {dimension_numbers = #tpu.dot_dimension_numbers<[2], [2], [1], [1], [0, 0, 0, 1, 1, 1], [0], [0]>} : vector<8x8x8xbf16>, vector<8x8x8xbf16>, vector<8x8x8xf32> -> vector<8x8x8xf32>
    "tpu.trace_stop"() : () -> ()
    %cst_76 = arith.constant 0.353553385 : f32
    %438 = vector.broadcast %cst_76 : f32 to vector<8x8x8xf32>
    %439 = arith.mulf %437, %438 : vector<8x8x8xf32>
    %cst_77 = arith.constant dense<0xFF800000> : vector<8x8xf32>
    %440 = vector.multi_reduction <maximumf>, %439, %cst_77 [2] : vector<8x8x8xf32> to vector<8x8xf32>
    %441 = vector.shape_cast %440 : vector<8x8xf32> to vector<8x8x1xf32>
    %442 = vector.broadcast %441 : vector<8x8x1xf32> to vector<8x8x8xf32>
    %443 = arith.subf %439, %442 : vector<8x8x8xf32>
    %444 = math.exp %443 : vector<8x8x8xf32>
    %cst_78 = arith.constant dense<0.000000e+00> : vector<8x8xf32>
    %445 = vector.multi_reduction <add>, %444, %cst_78 [2] : vector<8x8x8xf32> to vector<8x8xf32>
    %446 = vector.shape_cast %445 : vector<8x8xf32> to vector<8x8x1xf32>
    %447 = tpu.reciprocal %446 {approx = true} : vector<8x8x1xf32> -> vector<8x8x1xf32>
    %448 = vector.broadcast %447 : vector<8x8x1xf32> to vector<8x8x8xf32>
    %449 = arith.mulf %444, %448 : vector<8x8x8xf32>
    %450 = arith.truncf %449 : vector<8x8x8xf32> to vector<8x8x8xbf16>
    "tpu.trace_start"() <{level = 10 : i32, message = "bnm,bmd->bnd"}> : () -> ()
    %cst_79 = arith.constant dense<0.000000e+00> : vector<8x8x8xf32>
    %451 = tpu.matmul %450, %436, %cst_79 {dimension_numbers = #tpu.dot_dimension_numbers<[2], [1], [1], [2], [0, 0, 0, 1, 1, 2], [0], [0]>} : vector<8x8x8xbf16>, vector<8x8x8xbf16>, vector<8x8x8xf32> -> vector<8x8x8xf32>
    "tpu.trace_stop"() : () -> ()
    %452 = vector.extract_strided_slice %451 {offsets = [0, 0, 0], sizes = [2, 8, 8], strides = [1, 1, 1]} : vector<8x8x8xf32> to vector<2x8x8xf32>
    %453 = vector.shape_cast %452 : vector<2x8x8xf32> to vector<16x8xf32>
    %454 = vector.extract_strided_slice %451 {offsets = [2, 0, 0], sizes = [2, 8, 8], strides = [1, 1, 1]} : vector<8x8x8xf32> to vector<2x8x8xf32>
    %455 = vector.shape_cast %454 : vector<2x8x8xf32> to vector<16x8xf32>
    %456 = vector.extract_strided_slice %451 {offsets = [4, 0, 0], sizes = [2, 8, 8], strides = [1, 1, 1]} : vector<8x8x8xf32> to vector<2x8x8xf32>
    %457 = vector.shape_cast %456 : vector<2x8x8xf32> to vector<16x8xf32>
    %458 = vector.extract_strided_slice %451 {offsets = [6, 0, 0], sizes = [2, 8, 8], strides = [1, 1, 1]} : vector<8x8x8xf32> to vector<2x8x8xf32>
    %459 = vector.shape_cast %458 : vector<2x8x8xf32> to vector<16x8xf32>
    %460 = tpu.concatenate %453, %455, %457, %459 in 1 : vector<16x8xf32>, vector<16x8xf32>, vector<16x8xf32>, vector<16x8xf32> -> vector<16x32xf32>
    %461 = arith.truncf %460 : vector<16x32xf32> to vector<16x32xbf16>
    %462 = vector.extract_strided_slice %368 {offsets = [0, 96], sizes = [32, 32], strides = [1, 1]} : vector<32x384xbf16> to vector<32x32xbf16>
    %cst_80 = arith.constant dense<0.000000e+00> : vector<16x32xf32>
    %463 = tpu.matmul %461, %462, %cst_80 {dimension_numbers = #tpu.dot_dimension_numbers<[1], [0], [0], [1], [0, 0, 1, 1], [], []>} : vector<16x32xbf16>, vector<32x32xbf16>, vector<16x32xf32> -> vector<16x32xf32>
    %464 = arith.addf %365, %463 : vector<16x32xf32>
    %465 = vector.extract_strided_slice %370 {offsets = [96], sizes = [32], strides = [1]} : vector<512xf32> to vector<32xf32>
    %466 = vector.shape_cast %465 : vector<32xf32> to vector<1x32xf32>
    %467 = vector.broadcast %466 : vector<1x32xf32> to vector<16x32xf32>
    %468 = arith.addf %464, %467 : vector<16x32xf32>
    %cst_81 = arith.constant dense<0.000000e+00> : vector<16xf32>
    %469 = vector.multi_reduction <add>, %468, %cst_81 [1] : vector<16x32xf32> to vector<16xf32>
    %470 = vector.shape_cast %469 : vector<16xf32> to vector<16x1xf32>
    %cst_82 = arith.constant 3.200000e+01 : f32
    %471 = vector.broadcast %cst_82 : f32 to vector<16x1xf32>
    %472 = arith.divf %470, %471 : vector<16x1xf32>
    %473 = vector.broadcast %472 : vector<16x1xf32> to vector<16x32xf32>
    %474 = arith.subf %468, %473 : vector<16x32xf32>
    %475 = arith.mulf %474, %474 : vector<16x32xf32>
    %cst_83 = arith.constant dense<0.000000e+00> : vector<16xf32>
    %476 = vector.multi_reduction <add>, %475, %cst_83 [1] : vector<16x32xf32> to vector<16xf32>
    %477 = vector.shape_cast %476 : vector<16xf32> to vector<16x1xf32>
    %cst_84 = arith.constant 3.200000e+01 : f32
    %478 = vector.broadcast %cst_84 : f32 to vector<16x1xf32>
    %479 = arith.divf %477, %478 : vector<16x1xf32>
    %480 = vector.broadcast %472 : vector<16x1xf32> to vector<16x32xf32>
    %481 = arith.subf %468, %480 : vector<16x32xf32>
    %cst_85 = arith.constant 9.99999974E-6 : f32
    %482 = vector.broadcast %cst_85 : f32 to vector<16x1xf32>
    %483 = arith.addf %479, %482 : vector<16x1xf32>
    %484 = math.rsqrt %483 : vector<16x1xf32>
    %485 = vector.broadcast %484 : vector<16x1xf32> to vector<16x32xf32>
    %486 = arith.mulf %481, %485 : vector<16x32xf32>
    %487 = vector.extract_strided_slice %370 {offsets = [192], sizes = [32], strides = [1]} : vector<512xf32> to vector<32xf32>
    %488 = vector.shape_cast %487 : vector<32xf32> to vector<1x32xf32>
    %489 = vector.broadcast %488 : vector<1x32xf32> to vector<16x32xf32>
    %490 = arith.mulf %486, %489 : vector<16x32xf32>
    %491 = vector.extract_strided_slice %370 {offsets = [224], sizes = [32], strides = [1]} : vector<512xf32> to vector<32xf32>
    %492 = vector.shape_cast %491 : vector<32xf32> to vector<1x32xf32>
    %493 = vector.broadcast %492 : vector<1x32xf32> to vector<16x32xf32>
    %494 = arith.addf %490, %493 : vector<16x32xf32>
    %495 = arith.truncf %494 : vector<16x32xf32> to vector<16x32xbf16>
    %496 = vector.extract_strided_slice %368 {offsets = [0, 128], sizes = [32, 128], strides = [1, 1]} : vector<32x384xbf16> to vector<32x128xbf16>
    %cst_86 = arith.constant dense<0.000000e+00> : vector<16x128xf32>
    %497 = tpu.matmul %495, %496, %cst_86 {dimension_numbers = #tpu.dot_dimension_numbers<[1], [0], [0], [1], [0, 0, 1, 1], [], []>} : vector<16x32xbf16>, vector<32x128xbf16>, vector<16x128xf32> -> vector<16x128xf32>
    %498 = vector.extract_strided_slice %370 {offsets = [288], sizes = [128], strides = [1]} : vector<512xf32> to vector<128xf32>
    %499 = vector.shape_cast %498 : vector<128xf32> to vector<1x128xf32>
    %500 = vector.broadcast %499 : vector<1x128xf32> to vector<16x128xf32>
    %501 = arith.addf %497, %500 : vector<16x128xf32>
    %502 = arith.mulf %501, %501 : vector<16x128xf32>
    %503 = arith.mulf %501, %502 : vector<16x128xf32>
    %cst_87 = arith.constant 4.471500e-02 : f32
    %504 = vector.broadcast %cst_87 : f32 to vector<16x128xf32>
    %505 = arith.mulf %504, %503 : vector<16x128xf32>
    %506 = arith.addf %501, %505 : vector<16x128xf32>
    %cst_88 = arith.constant 0.797884583 : f32
    %507 = vector.broadcast %cst_88 : f32 to vector<16x128xf32>
    %508 = arith.mulf %507, %506 : vector<16x128xf32>
    %509 = math.tanh %508 : vector<16x128xf32>
    %cst_89 = arith.constant 1.000000e+00 : f32
    %510 = vector.broadcast %cst_89 : f32 to vector<16x128xf32>
    %511 = arith.addf %510, %509 : vector<16x128xf32>
    %cst_90 = arith.constant 5.000000e-01 : f32
    %512 = vector.broadcast %cst_90 : f32 to vector<16x128xf32>
    %513 = arith.mulf %512, %511 : vector<16x128xf32>
    %514 = arith.mulf %501, %513 : vector<16x128xf32>
    %515 = arith.truncf %514 : vector<16x128xf32> to vector<16x128xbf16>
    %516 = vector.extract_strided_slice %368 {offsets = [0, 256], sizes = [32, 128], strides = [1, 1]} : vector<32x384xbf16> to vector<32x128xbf16>
    %cst_91 = arith.constant dense<0.000000e+00> : vector<16x32xf32>
    %517 = tpu.matmul %515, %516, %cst_91 {dimension_numbers = #tpu.dot_dimension_numbers<[1], [1], [0], [0], [0, 0, 1, 0], [], []>} : vector<16x128xbf16>, vector<32x128xbf16>, vector<16x32xf32> -> vector<16x32xf32>
    %518 = arith.addf %468, %517 : vector<16x32xf32>
    %519 = vector.extract_strided_slice %370 {offsets = [256], sizes = [32], strides = [1]} : vector<512xf32> to vector<32xf32>
    %520 = vector.shape_cast %519 : vector<32xf32> to vector<1x32xf32>
    %521 = vector.broadcast %520 : vector<1x32xf32> to vector<16x32xf32>
    %522 = arith.addf %518, %521 : vector<16x32xf32>
    %523 = arith.index_cast %arg0 : i32 to index
    %c3_92 = arith.constant 3 : index
    %c0_93 = arith.constant 0 : index
    %c0_94 = arith.constant 0 : index
    %524 = vector.load %arg4[%523, %c3_92, %c0_93, %c0_94] : memref<8x4x32x384xbf16, #tpu.memory_space<vmem>>, vector<1x1x32x384xbf16>
    %525 = vector.shape_cast %524 : vector<1x1x32x384xbf16> to vector<32x384xbf16>
    %526 = vector.extract_strided_slice %51 {offsets = [3, 0], sizes = [1, 512], strides = [1, 1]} : vector<4x512xf32> to vector<1x512xf32>
    %527 = vector.shape_cast %526 : vector<1x512xf32> to vector<512xf32>
    %cst_95 = arith.constant dense<0.000000e+00> : vector<16xf32>
    %528 = vector.multi_reduction <add>, %522, %cst_95 [1] : vector<16x32xf32> to vector<16xf32>
    %529 = vector.shape_cast %528 : vector<16xf32> to vector<16x1xf32>
    %cst_96 = arith.constant 3.200000e+01 : f32
    %530 = vector.broadcast %cst_96 : f32 to vector<16x1xf32>
    %531 = arith.divf %529, %530 : vector<16x1xf32>
    %532 = vector.broadcast %531 : vector<16x1xf32> to vector<16x32xf32>
    %533 = arith.subf %522, %532 : vector<16x32xf32>
    %534 = arith.mulf %533, %533 : vector<16x32xf32>
    %cst_97 = arith.constant dense<0.000000e+00> : vector<16xf32>
    %535 = vector.multi_reduction <add>, %534, %cst_97 [1] : vector<16x32xf32> to vector<16xf32>
    %536 = vector.shape_cast %535 : vector<16xf32> to vector<16x1xf32>
    %cst_98 = arith.constant 3.200000e+01 : f32
    %537 = vector.broadcast %cst_98 : f32 to vector<16x1xf32>
    %538 = arith.divf %536, %537 : vector<16x1xf32>
    %539 = vector.broadcast %531 : vector<16x1xf32> to vector<16x32xf32>
    %540 = arith.subf %522, %539 : vector<16x32xf32>
    %cst_99 = arith.constant 9.99999974E-6 : f32
    %541 = vector.broadcast %cst_99 : f32 to vector<16x1xf32>
    %542 = arith.addf %538, %541 : vector<16x1xf32>
    %543 = math.rsqrt %542 : vector<16x1xf32>
    %544 = vector.broadcast %543 : vector<16x1xf32> to vector<16x32xf32>
    %545 = arith.mulf %540, %544 : vector<16x32xf32>
    %546 = vector.extract_strided_slice %527 {offsets = [128], sizes = [32], strides = [1]} : vector<512xf32> to vector<32xf32>
    %547 = vector.shape_cast %546 : vector<32xf32> to vector<1x32xf32>
    %548 = vector.broadcast %547 : vector<1x32xf32> to vector<16x32xf32>
    %549 = arith.mulf %545, %548 : vector<16x32xf32>
    %550 = vector.extract_strided_slice %527 {offsets = [160], sizes = [32], strides = [1]} : vector<512xf32> to vector<32xf32>
    %551 = vector.shape_cast %550 : vector<32xf32> to vector<1x32xf32>
    %552 = vector.broadcast %551 : vector<1x32xf32> to vector<16x32xf32>
    %553 = arith.addf %549, %552 : vector<16x32xf32>
    %554 = arith.truncf %553 : vector<16x32xf32> to vector<16x32xbf16>
    %555 = vector.extract_strided_slice %525 {offsets = [0, 0], sizes = [32, 96], strides = [1, 1]} : vector<32x384xbf16> to vector<32x96xbf16>
    %cst_100 = arith.constant dense<0.000000e+00> : vector<16x96xf32>
    %556 = tpu.matmul %554, %555, %cst_100 {dimension_numbers = #tpu.dot_dimension_numbers<[1], [0], [0], [1], [0, 0, 1, 1], [], []>} : vector<16x32xbf16>, vector<32x96xbf16>, vector<16x96xf32> -> vector<16x96xf32>
    %557 = vector.extract_strided_slice %527 {offsets = [0], sizes = [96], strides = [1]} : vector<512xf32> to vector<96xf32>
    %558 = vector.shape_cast %557 : vector<96xf32> to vector<1x96xf32>
    %559 = vector.broadcast %558 : vector<1x96xf32> to vector<16x96xf32>
    %560 = arith.addf %556, %559 : vector<16x96xf32>
    %561 = vector.extract_strided_slice %560 {offsets = [0, 0], sizes = [16, 32], strides = [1, 1]} : vector<16x96xf32> to vector<16x32xf32>
    %562 = vector.extract_strided_slice %561 {offsets = [0, 0], sizes = [16, 8], strides = [1, 1]} : vector<16x32xf32> to vector<16x8xf32>
    %563 = vector.shape_cast %562 : vector<16x8xf32> to vector<2x8x8xf32>
    %564 = vector.extract_strided_slice %561 {offsets = [0, 8], sizes = [16, 8], strides = [1, 1]} : vector<16x32xf32> to vector<16x8xf32>
    %565 = vector.shape_cast %564 : vector<16x8xf32> to vector<2x8x8xf32>
    %566 = vector.extract_strided_slice %561 {offsets = [0, 16], sizes = [16, 8], strides = [1, 1]} : vector<16x32xf32> to vector<16x8xf32>
    %567 = vector.shape_cast %566 : vector<16x8xf32> to vector<2x8x8xf32>
    %568 = vector.extract_strided_slice %561 {offsets = [0, 24], sizes = [16, 8], strides = [1, 1]} : vector<16x32xf32> to vector<16x8xf32>
    %569 = vector.shape_cast %568 : vector<16x8xf32> to vector<2x8x8xf32>
    %570 = tpu.concatenate %563, %565, %567, %569 in 0 : vector<2x8x8xf32>, vector<2x8x8xf32>, vector<2x8x8xf32>, vector<2x8x8xf32> -> vector<8x8x8xf32>
    %571 = arith.truncf %570 : vector<8x8x8xf32> to vector<8x8x8xbf16>
    %572 = vector.extract_strided_slice %560 {offsets = [0, 32], sizes = [16, 32], strides = [1, 1]} : vector<16x96xf32> to vector<16x32xf32>
    %573 = vector.extract_strided_slice %572 {offsets = [0, 0], sizes = [16, 8], strides = [1, 1]} : vector<16x32xf32> to vector<16x8xf32>
    %574 = vector.shape_cast %573 : vector<16x8xf32> to vector<2x8x8xf32>
    %575 = vector.extract_strided_slice %572 {offsets = [0, 8], sizes = [16, 8], strides = [1, 1]} : vector<16x32xf32> to vector<16x8xf32>
    %576 = vector.shape_cast %575 : vector<16x8xf32> to vector<2x8x8xf32>
    %577 = vector.extract_strided_slice %572 {offsets = [0, 16], sizes = [16, 8], strides = [1, 1]} : vector<16x32xf32> to vector<16x8xf32>
    %578 = vector.shape_cast %577 : vector<16x8xf32> to vector<2x8x8xf32>
    %579 = vector.extract_strided_slice %572 {offsets = [0, 24], sizes = [16, 8], strides = [1, 1]} : vector<16x32xf32> to vector<16x8xf32>
    %580 = vector.shape_cast %579 : vector<16x8xf32> to vector<2x8x8xf32>
    %581 = tpu.concatenate %574, %576, %578, %580 in 0 : vector<2x8x8xf32>, vector<2x8x8xf32>, vector<2x8x8xf32>, vector<2x8x8xf32> -> vector<8x8x8xf32>
    %582 = arith.truncf %581 : vector<8x8x8xf32> to vector<8x8x8xbf16>
    %583 = vector.extract_strided_slice %560 {offsets = [0, 64], sizes = [16, 32], strides = [1, 1]} : vector<16x96xf32> to vector<16x32xf32>
    %584 = vector.extract_strided_slice %583 {offsets = [0, 0], sizes = [16, 8], strides = [1, 1]} : vector<16x32xf32> to vector<16x8xf32>
    %585 = vector.shape_cast %584 : vector<16x8xf32> to vector<2x8x8xf32>
    %586 = vector.extract_strided_slice %583 {offsets = [0, 8], sizes = [16, 8], strides = [1, 1]} : vector<16x32xf32> to vector<16x8xf32>
    %587 = vector.shape_cast %586 : vector<16x8xf32> to vector<2x8x8xf32>
    %588 = vector.extract_strided_slice %583 {offsets = [0, 16], sizes = [16, 8], strides = [1, 1]} : vector<16x32xf32> to vector<16x8xf32>
    %589 = vector.shape_cast %588 : vector<16x8xf32> to vector<2x8x8xf32>
    %590 = vector.extract_strided_slice %583 {offsets = [0, 24], sizes = [16, 8], strides = [1, 1]} : vector<16x32xf32> to vector<16x8xf32>
    %591 = vector.shape_cast %590 : vector<16x8xf32> to vector<2x8x8xf32>
    %592 = tpu.concatenate %585, %587, %589, %591 in 0 : vector<2x8x8xf32>, vector<2x8x8xf32>, vector<2x8x8xf32>, vector<2x8x8xf32> -> vector<8x8x8xf32>
    %593 = arith.truncf %592 : vector<8x8x8xf32> to vector<8x8x8xbf16>
    "tpu.trace_start"() <{level = 10 : i32, message = "bnd,bmd->bnm"}> : () -> ()
    %cst_101 = arith.constant dense<0.000000e+00> : vector<8x8x8xf32>
    %594 = tpu.matmul %571, %582, %cst_101 {dimension_numbers = #tpu.dot_dimension_numbers<[2], [2], [1], [1], [0, 0, 0, 1, 1, 1], [0], [0]>} : vector<8x8x8xbf16>, vector<8x8x8xbf16>, vector<8x8x8xf32> -> vector<8x8x8xf32>
    "tpu.trace_stop"() : () -> ()
    %cst_102 = arith.constant 0.353553385 : f32
    %595 = vector.broadcast %cst_102 : f32 to vector<8x8x8xf32>
    %596 = arith.mulf %594, %595 : vector<8x8x8xf32>
    %cst_103 = arith.constant dense<0xFF800000> : vector<8x8xf32>
    %597 = vector.multi_reduction <maximumf>, %596, %cst_103 [2] : vector<8x8x8xf32> to vector<8x8xf32>
    %598 = vector.shape_cast %597 : vector<8x8xf32> to vector<8x8x1xf32>
    %599 = vector.broadcast %598 : vector<8x8x1xf32> to vector<8x8x8xf32>
    %600 = arith.subf %596, %599 : vector<8x8x8xf32>
    %601 = math.exp %600 : vector<8x8x8xf32>
    %cst_104 = arith.constant dense<0.000000e+00> : vector<8x8xf32>
    %602 = vector.multi_reduction <add>, %601, %cst_104 [2] : vector<8x8x8xf32> to vector<8x8xf32>
    %603 = vector.shape_cast %602 : vector<8x8xf32> to vector<8x8x1xf32>
    %604 = tpu.reciprocal %603 {approx = true} : vector<8x8x1xf32> -> vector<8x8x1xf32>
    %605 = vector.broadcast %604 : vector<8x8x1xf32> to vector<8x8x8xf32>
    %606 = arith.mulf %601, %605 : vector<8x8x8xf32>
    %607 = arith.truncf %606 : vector<8x8x8xf32> to vector<8x8x8xbf16>
    "tpu.trace_start"() <{level = 10 : i32, message = "bnm,bmd->bnd"}> : () -> ()
    %cst_105 = arith.constant dense<0.000000e+00> : vector<8x8x8xf32>
    %608 = tpu.matmul %607, %593, %cst_105 {dimension_numbers = #tpu.dot_dimension_numbers<[2], [1], [1], [2], [0, 0, 0, 1, 1, 2], [0], [0]>} : vector<8x8x8xbf16>, vector<8x8x8xbf16>, vector<8x8x8xf32> -> vector<8x8x8xf32>
    "tpu.trace_stop"() : () -> ()
    %609 = vector.extract_strided_slice %608 {offsets = [0, 0, 0], sizes = [2, 8, 8], strides = [1, 1, 1]} : vector<8x8x8xf32> to vector<2x8x8xf32>
    %610 = vector.shape_cast %609 : vector<2x8x8xf32> to vector<16x8xf32>
    %611 = vector.extract_strided_slice %608 {offsets = [2, 0, 0], sizes = [2, 8, 8], strides = [1, 1, 1]} : vector<8x8x8xf32> to vector<2x8x8xf32>
    %612 = vector.shape_cast %611 : vector<2x8x8xf32> to vector<16x8xf32>
    %613 = vector.extract_strided_slice %608 {offsets = [4, 0, 0], sizes = [2, 8, 8], strides = [1, 1, 1]} : vector<8x8x8xf32> to vector<2x8x8xf32>
    %614 = vector.shape_cast %613 : vector<2x8x8xf32> to vector<16x8xf32>
    %615 = vector.extract_strided_slice %608 {offsets = [6, 0, 0], sizes = [2, 8, 8], strides = [1, 1, 1]} : vector<8x8x8xf32> to vector<2x8x8xf32>
    %616 = vector.shape_cast %615 : vector<2x8x8xf32> to vector<16x8xf32>
    %617 = tpu.concatenate %610, %612, %614, %616 in 1 : vector<16x8xf32>, vector<16x8xf32>, vector<16x8xf32>, vector<16x8xf32> -> vector<16x32xf32>
    %618 = arith.truncf %617 : vector<16x32xf32> to vector<16x32xbf16>
    %619 = vector.extract_strided_slice %525 {offsets = [0, 96], sizes = [32, 32], strides = [1, 1]} : vector<32x384xbf16> to vector<32x32xbf16>
    %cst_106 = arith.constant dense<0.000000e+00> : vector<16x32xf32>
    %620 = tpu.matmul %618, %619, %cst_106 {dimension_numbers = #tpu.dot_dimension_numbers<[1], [0], [0], [1], [0, 0, 1, 1], [], []>} : vector<16x32xbf16>, vector<32x32xbf16>, vector<16x32xf32> -> vector<16x32xf32>
    %621 = arith.addf %522, %620 : vector<16x32xf32>
    %622 = vector.extract_strided_slice %527 {offsets = [96], sizes = [32], strides = [1]} : vector<512xf32> to vector<32xf32>
    %623 = vector.shape_cast %622 : vector<32xf32> to vector<1x32xf32>
    %624 = vector.broadcast %623 : vector<1x32xf32> to vector<16x32xf32>
    %625 = arith.addf %621, %624 : vector<16x32xf32>
    %cst_107 = arith.constant dense<0.000000e+00> : vector<16xf32>
    %626 = vector.multi_reduction <add>, %625, %cst_107 [1] : vector<16x32xf32> to vector<16xf32>
    %627 = vector.shape_cast %626 : vector<16xf32> to vector<16x1xf32>
    %cst_108 = arith.constant 3.200000e+01 : f32
    %628 = vector.broadcast %cst_108 : f32 to vector<16x1xf32>
    %629 = arith.divf %627, %628 : vector<16x1xf32>
    %630 = vector.broadcast %629 : vector<16x1xf32> to vector<16x32xf32>
    %631 = arith.subf %625, %630 : vector<16x32xf32>
    %632 = arith.mulf %631, %631 : vector<16x32xf32>
    %cst_109 = arith.constant dense<0.000000e+00> : vector<16xf32>
    %633 = vector.multi_reduction <add>, %632, %cst_109 [1] : vector<16x32xf32> to vector<16xf32>
    %634 = vector.shape_cast %633 : vector<16xf32> to vector<16x1xf32>
    %cst_110 = arith.constant 3.200000e+01 : f32
    %635 = vector.broadcast %cst_110 : f32 to vector<16x1xf32>
    %636 = arith.divf %634, %635 : vector<16x1xf32>
    %637 = vector.broadcast %629 : vector<16x1xf32> to vector<16x32xf32>
    %638 = arith.subf %625, %637 : vector<16x32xf32>
    %cst_111 = arith.constant 9.99999974E-6 : f32
    %639 = vector.broadcast %cst_111 : f32 to vector<16x1xf32>
    %640 = arith.addf %636, %639 : vector<16x1xf32>
    %641 = math.rsqrt %640 : vector<16x1xf32>
    %642 = vector.broadcast %641 : vector<16x1xf32> to vector<16x32xf32>
    %643 = arith.mulf %638, %642 : vector<16x32xf32>
    %644 = vector.extract_strided_slice %527 {offsets = [192], sizes = [32], strides = [1]} : vector<512xf32> to vector<32xf32>
    %645 = vector.shape_cast %644 : vector<32xf32> to vector<1x32xf32>
    %646 = vector.broadcast %645 : vector<1x32xf32> to vector<16x32xf32>
    %647 = arith.mulf %643, %646 : vector<16x32xf32>
    %648 = vector.extract_strided_slice %527 {offsets = [224], sizes = [32], strides = [1]} : vector<512xf32> to vector<32xf32>
    %649 = vector.shape_cast %648 : vector<32xf32> to vector<1x32xf32>
    %650 = vector.broadcast %649 : vector<1x32xf32> to vector<16x32xf32>
    %651 = arith.addf %647, %650 : vector<16x32xf32>
    %652 = arith.truncf %651 : vector<16x32xf32> to vector<16x32xbf16>
    %653 = vector.extract_strided_slice %525 {offsets = [0, 128], sizes = [32, 128], strides = [1, 1]} : vector<32x384xbf16> to vector<32x128xbf16>
    %cst_112 = arith.constant dense<0.000000e+00> : vector<16x128xf32>
    %654 = tpu.matmul %652, %653, %cst_112 {dimension_numbers = #tpu.dot_dimension_numbers<[1], [0], [0], [1], [0, 0, 1, 1], [], []>} : vector<16x32xbf16>, vector<32x128xbf16>, vector<16x128xf32> -> vector<16x128xf32>
    %655 = vector.extract_strided_slice %527 {offsets = [288], sizes = [128], strides = [1]} : vector<512xf32> to vector<128xf32>
    %656 = vector.shape_cast %655 : vector<128xf32> to vector<1x128xf32>
    %657 = vector.broadcast %656 : vector<1x128xf32> to vector<16x128xf32>
    %658 = arith.addf %654, %657 : vector<16x128xf32>
    %659 = arith.mulf %658, %658 : vector<16x128xf32>
    %660 = arith.mulf %658, %659 : vector<16x128xf32>
    %cst_113 = arith.constant 4.471500e-02 : f32
    %661 = vector.broadcast %cst_113 : f32 to vector<16x128xf32>
    %662 = arith.mulf %661, %660 : vector<16x128xf32>
    %663 = arith.addf %658, %662 : vector<16x128xf32>
    %cst_114 = arith.constant 0.797884583 : f32
    %664 = vector.broadcast %cst_114 : f32 to vector<16x128xf32>
    %665 = arith.mulf %664, %663 : vector<16x128xf32>
    %666 = math.tanh %665 : vector<16x128xf32>
    %cst_115 = arith.constant 1.000000e+00 : f32
    %667 = vector.broadcast %cst_115 : f32 to vector<16x128xf32>
    %668 = arith.addf %667, %666 : vector<16x128xf32>
    %cst_116 = arith.constant 5.000000e-01 : f32
    %669 = vector.broadcast %cst_116 : f32 to vector<16x128xf32>
    %670 = arith.mulf %669, %668 : vector<16x128xf32>
    %671 = arith.mulf %658, %670 : vector<16x128xf32>
    %672 = arith.truncf %671 : vector<16x128xf32> to vector<16x128xbf16>
    %673 = vector.extract_strided_slice %525 {offsets = [0, 256], sizes = [32, 128], strides = [1, 1]} : vector<32x384xbf16> to vector<32x128xbf16>
    %cst_117 = arith.constant dense<0.000000e+00> : vector<16x32xf32>
    %674 = tpu.matmul %672, %673, %cst_117 {dimension_numbers = #tpu.dot_dimension_numbers<[1], [1], [0], [0], [0, 0, 1, 0], [], []>} : vector<16x128xbf16>, vector<32x128xbf16>, vector<16x32xf32> -> vector<16x32xf32>
    %675 = arith.addf %625, %674 : vector<16x32xf32>
    %676 = vector.extract_strided_slice %527 {offsets = [256], sizes = [32], strides = [1]} : vector<512xf32> to vector<32xf32>
    %677 = vector.shape_cast %676 : vector<32xf32> to vector<1x32xf32>
    %678 = vector.broadcast %677 : vector<1x32xf32> to vector<16x32xf32>
    %679 = arith.addf %675, %678 : vector<16x32xf32>
    %c1_i32 = arith.constant 1 : i32
    %680 = arith.cmpi eq, %12, %c1_i32 : i32
    %681 = arith.extui %680 : i1 to i32
    %c0_i32_118 = arith.constant 0 : i32
    %682 = arith.cmpi ne, %681, %c0_i32_118 : i32
    scf.if %682 {
      %687 = arith.index_cast %6 : i32 to index
      %c0_123 = arith.constant 0 : index
      %c0_124 = arith.constant 0 : index
      %688 = vector.load %arg7[%687, %c0_123, %c0_124] : memref<4x16x32xf32, #tpu.memory_space<vmem>>, vector<1x16x32xf32>
      %689 = vector.shape_cast %688 : vector<1x16x32xf32> to vector<16x32xf32>
      %690 = vector.shape_cast %679 : vector<16x32xf32> to vector<1x16x32xf32>
      tpu.vector_store %arg7[%687, %c0_123, %c0_124], %690 {strides = array<i32>} : memref<4x16x32xf32, #tpu.memory_space<vmem>>, vector<1x16x32xf32>,
    } else {
    }
    %683 = vector.shape_cast %679 : vector<16x32xf32> to vector<2x8x32xf32>
    %c0_119 = arith.constant 0 : index
    %c0_120 = arith.constant 0 : index
    %c0_121 = arith.constant 0 : index
    %c0_122 = arith.constant 0 : index
    %684 = vector.load %arg6[%c0_119, %c0_120, %c0_121, %c0_122] : memref<1x2x8x32xf32, #tpu.memory_space<vmem>>, vector<1x2x8x32xf32>
    %685 = vector.shape_cast %684 : vector<1x2x8x32xf32> to vector<2x8x32xf32>
    %686 = vector.shape_cast %683 : vector<2x8x32xf32> to vector<1x2x8x32xf32>
    tpu.vector_store %arg6[%c0_119, %c0_120, %c0_121, %c0_122], %686 {strides = array<i32>} : memref<1x2x8x32xf32, #tpu.memory_space<vmem>>, vector<1x2x8x32xf32>,
    return
  }
  func.func @transform_0(%arg0: i32, %arg1: memref<8x5xi32, #tpu.memory_space<smem>>) -> (i32, i32) {
    %c0_i32 = arith.constant 0 : i32
    %c0_i32_0 = arith.constant 0 : i32
    %c0_i32_1 = arith.constant 0 : i32
    return %c0_i32, %c0_i32_0 : i32, i32
  }
  func.func @transform_1(%arg0: i32, %arg1: memref<8x5xi32, #tpu.memory_space<smem>>) -> (i32, i32, i32) {
    %c0_i32 = arith.constant 0 : i32
    %c0_i32_0 = arith.constant 0 : i32
    %c0_i32_1 = arith.constant 0 : i32
    %c0_i32_2 = arith.constant 0 : i32
    return %c0_i32, %c0_i32_0, %c0_i32_1 : i32, i32, i32
  }
  func.func @transform_2(%arg0: i32, %arg1: memref<8x5xi32, #tpu.memory_space<smem>>) -> (i32, i32, i32, i32) {
    %c0_i32 = arith.constant 0 : i32
    %c0_i32_0 = arith.constant 0 : i32
    %c0_i32_1 = arith.constant 0 : i32
    %c0_i32_2 = arith.constant 0 : i32
    %c0_i32_3 = arith.constant 0 : i32
    return %c0_i32, %c0_i32_0, %c0_i32_1, %c0_i32_2 : i32, i32, i32, i32
  }
  func.func @transform_3(%arg0: i32, %arg1: memref<8x5xi32, #tpu.memory_space<smem>>) -> (i32, i32, i32) {
    %c0_i32 = arith.constant 0 : i32
    %c0_i32_0 = arith.constant 0 : i32
    %c0_i32_1 = arith.constant 0 : i32
    %c0_i32_2 = arith.constant 0 : i32
    return %c0_i32, %c0_i32_0, %c0_i32_1 : i32, i32, i32
  }
  func.func @transform_4(%arg0: i32, %arg1: memref<8x5xi32, #tpu.memory_space<smem>>) -> (i32, i32, i32, i32) {
    %c0_i32 = arith.constant 0 : i32
    %c0_i32_0 = arith.constant 0 : i32
    %c0_i32_1 = arith.constant 0 : i32
    %c0_i32_2 = arith.constant 0 : i32
    return %arg0, %c0_i32, %c0_i32_0, %c0_i32_1 : i32, i32, i32, i32
  }
}

</mosaic_0001>

<llo_original>
// kernel: forward.1
$region0: #{forward.1}
  #allocation0 [shape = 'u32[]', space=smem, size = 0x4, offset = 0x4, fixed_abs, tag = 'smem constant byte address 0x4 - core index']
  #allocation1 [shape = 'u32[72,128]{1,0:T(1,128)}', space=vmem, size = 0x9000, scoped, tag = 'internal scratch']
  #allocation2 [shape = 'f32[4,16,32]{2,1,0:T(8,128)}', space=vmem, size = 0x8000, scoped, tag = 'scratch operand']
  #allocation3 [shape = 's32[1]{0}', space=sflag, size = 0x4, scoped, tag = 'scoped memory for forward.1']
  #allocation4 [shape = 'u8[4096]{0}', space=smem, size = 0x1000, scoped, tag = 'prefetched SMEM operand 0']
  %s0 = inlined_call_operand.vmem [shape: s32[8,5], index: 0, kind: input, shape index: {}]
  %s1 = inlined_call_operand.vmem [shape: f32[16,32], index: 1, kind: input, shape index: {}]
  %s2 = inlined_call_operand.vmem [shape: f32[8,5,32], index: 2, kind: input, shape index: {}]
  %s3 = inlined_call_operand.hbm [shape: bf16[8,4,32,384], index: 3, kind: input, shape index: {}]
  %s4 = inlined_call_operand.hbm [shape: f32[8,4,512], index: 4, kind: input, shape index: {}]
  %s5 = inlined_call_operand.vmem [shape: f32[8,2,8,32], index: 5, kind: output, shape index: {}]
  %s6 = sld [smem:[#allocation0]]
  $region65: #{forward.1} parent=0
    _
  %s8 = ssub.s32 1, %s6
  %s9 = scalar_select 0, %s8, %s6
  %s11 = sshll.u32 %s0, 4
  %s12 = int_to_ptr.vmem [resolvable:$true] %s11
  %14 = dma.vmem_to_smem %s12, 128, [#allocation4], [#allocation3]
  %16 = dma.done [#allocation3], 128
  %17 = sfence
  $region1: #{forward.1} parent=0
    #allocation5 [shape = 'u8[786432]{0}', space=vmem, size = 0xc0000, scoped, tag = 'input window, operand 3, single buffered']
    #allocation6 [shape = 's32[2]{0}', space=sflag, size = 0x8, scoped, tag = 'scoped memory for forward.1']
    #allocation7 [shape = 'u8[65536]{0}', space=vmem, size = 0x10000, scoped, tag = 'input window, operand 4, single buffered']
    #allocation8 [shape = 's32[1]{0}', space=sflag, size = 0x4, scoped, tag = 'scoped memory for forward.1']
    %18 = vsyncpa [#allocation6], 0
    %19 = vsyncpa [#allocation8], 0
    loop: start=0, step=1, limit=10
    $region2: #{forward.1} parent=1 // loop_pre_header
      _
    $region3: #{forward.1} parent=1 // loop_header
      %s21 = sphi 0, %s25
      %p22 = scmp.ge.s32.totalorder %s21, 10
      %s29 = sphi 0, %s29
      %s31 = sphi 0, %s29
      %s32 = sphi 0, %s31
      %s46 = sphi 0, %s32
      %s50 = sphi 0, %s50
      %s52 = sphi 0, %s50
      %s53 = sphi 0, %s52
      %s67 = sphi 0, %s53
      %s71 = sphi 0, %s71
      %s73 = sphi 0, %s71
      %s74 = sphi 0, %s73
      %s88 = sphi 0, %s74
      %s92 = sphi 0, %s92
      %s94 = sphi 0, %s92
      %s95 = sphi 0, %s94
      %s109 = sphi 0, %s95
      %s115 = sphi 0, %s117
      %s118 = sphi 0, %s115
      %s119 = sphi 0, %s118
      %s135 = sphi 0, %s119
    $region4: #{forward.1} parent=1 // loop_header_branch
      %24 = sbr.rel (%p22) target = $region8
    $region5: #{forward.1} parent=1 // loop_body
      %s26 = ssub.s32 %s21, 1
      %s27 = ssub.s32 %s21, 2
      %s28 = sadd.s32 %s21, 1
      %s30 = sadd.s32 %s29, 1
      %p33 = scmp.eq.s32.totalorder %s21, 7
      %p34 = scmp.ne.s32.totalorder %s29, %s31
      %p35 = scmp.eq.s32.totalorder %s21, 0
      %p36 = por %p34, %p35
      %p37 = scmp.ne.s32.totalorder %s29, %s31
      %p38 = scmp.eq.s32.totalorder %s26, 7
      %p39 = por %p37, %p38
      %p40 = scmp.ne.s32.totalorder %s31, %s32
      %p41 = scmp.eq.s32.totalorder %s26, 0
      %p42 = por %p40, %p41
      %p43 = scmp.ne.s32.totalorder %s31, %s32
      %p44 = scmp.eq.s32.totalorder %s27, 7
      %p45 = por %p43, %p44
      %p47 = scmp.ne.s32.totalorder %s32, %s46
      %p48 = scmp.eq.s32.totalorder %s27, 0
      %p49 = por %p47, %p48
      %s51 = sadd.s32 %s50, 1
      %p54 = scmp.eq.s32.totalorder %s21, 7
      %p55 = scmp.ne.s32.totalorder %s50, %s52
      %p56 = scmp.eq.s32.totalorder %s21, 0
      %p57 = por %p55, %p56
      %p58 = scmp.ne.s32.totalorder %s50, %s52
      %p59 = scmp.eq.s32.totalorder %s26, 7
      %p60 = por %p58, %p59
      %p61 = scmp.ne.s32.totalorder %s52, %s53
      %p62 = scmp.eq.s32.totalorder %s26, 0
      %p63 = por %p61, %p62
      %p64 = scmp.ne.s32.totalorder %s52, %s53
      %p65 = scmp.eq.s32.totalorder %s27, 7
      %p66 = por %p64, %p65
      %p68 = scmp.ne.s32.totalorder %s53, %s67
      %p69 = scmp.eq.s32.totalorder %s27, 0
      %p70 = por %p68, %p69
      %s72 = sadd.s32 %s71, 1
      %p75 = scmp.eq.s32.totalorder %s21, 7
      %p76 = scmp.ne.s32.totalorder %s71, %s73
      %p77 = scmp.eq.s32.totalorder %s21, 0
      %p78 = por %p76, %p77
      %p79 = scmp.ne.s32.totalorder %s71, %s73
      %p80 = scmp.eq.s32.totalorder %s26, 7
      %p81 = por %p79, %p80
      %p82 = scmp.ne.s32.totalorder %s73, %s74
      %p83 = scmp.eq.s32.totalorder %s26, 0
      %p84 = por %p82, %p83
      %p85 = scmp.ne.s32.totalorder %s73, %s74
      %p86 = scmp.eq.s32.totalorder %s27, 7
      %p87 = por %p85, %p86
      %p89 = scmp.ne.s32.totalorder %s74, %s88
      %p90 = scmp.eq.s32.totalorder %s27, 0
      %p91 = por %p89, %p90
      %s93 = sadd.s32 %s92, 1
      %p96 = scmp.eq.s32.totalorder %s21, 7
      %p97 = scmp.ne.s32.totalorder %s92, %s94
      %p98 = scmp.eq.s32.totalorder %s21, 0
      %p99 = por %p97, %p98
      %p100 = scmp.ne.s32.totalorder %s92, %s94
      %p101 = scmp.eq.s32.totalorder %s26, 7
      %p102 = por %p100, %p101
      %p103 = scmp.ne.s32.totalorder %s94, %s95
      %p104 = scmp.eq.s32.totalorder %s26, 0
      %p105 = por %p103, %p104
      %p106 = scmp.ne.s32.totalorder %s94, %s95
      %p107 = scmp.eq.s32.totalorder %s27, 7
      %p108 = por %p106, %p107
      %p110 = scmp.ne.s32.totalorder %s95, %s109
      %p111 = scmp.eq.s32.totalorder %s27, 0
      %p112 = por %p110, %p111
      %s113 = ssub.s32 %s21, %s28
      %p114 = scmp.eq.s32.totalorder %s113, 0
      %s116 = sadd.s32 %s115, 1
      %s117 = scalar_select %p114, %s115, %s116
      %p120 = pneg %p114
      %p121 = scmp.eq.s32.totalorder %s21, 7
      %p122 = por %p120, %p121
      %p123 = scmp.ne.s32.totalorder %s115, %s118
      %p124 = scmp.eq.s32.totalorder %s21, 0
      %p125 = por %p123, %p124
      %p126 = scmp.ne.s32.totalorder %s115, %s118
      %p127 = scmp.eq.s32.totalorder %s26, 7
      %p128 = por %p126, %p127
      %p129 = scmp.ne.s32.totalorder %s118, %s119
      %p130 = scmp.eq.s32.totalorder %s26, 0
      %p131 = por %p129, %p130
      %p132 = scmp.ne.s32.totalorder %s118, %s119
      %p133 = scmp.eq.s32.totalorder %s27, 7
      %p134 = por %p132, %p133
      %p136 = scmp.ne.s32.totalorder %s119, %s135
      %p137 = scmp.eq.s32.totalorder %s27, 0
      %p138 = por %p136, %p137
      %p139 = scmp.le.s32.totalorder 1, %s21
      %p140 = scmp.lt.s32.totalorder %s21, 9
      %p141 = pnand %p139, %p140
      %p142 = pneg %p141
      // Predicated region
      $region9: #{forward.1} parent=5 // pred_check
        _
      $region10: #{forward.1} parent=5 // pred_check_branch
        %144 = sbr.rel (%p141) target = $region12
      $region11: #{forward.1} parent=5 // pred_region
        %s145 = ssub.s32 %s21, 1
        // Predicated region
        $region13: #{forward.1} parent=11 // pred_check
          %p146 = pneg %p42
        $region14: #{forward.1} parent=11 // pred_check_branch
          %148 = sbr.rel (%p146) target = $region16
        $region15: #{forward.1} parent=11 // pred_region
          _
        $region16: #{forward.1} parent=11 // pred_fallthru
          _
        // Predicated region
        $region17: #{forward.1} parent=11 // pred_check
          %p149 = pneg %p63
        $region18: #{forward.1} parent=11 // pred_check_branch
          %151 = sbr.rel (%p149) target = $region20
        $region19: #{forward.1} parent=11 // pred_region
          _
        $region20: #{forward.1} parent=11 // pred_fallthru
          _
        // Predicated region
        $region21: #{forward.1} parent=11 // pred_check
          %p152 = pneg %p84
        $region22: #{forward.1} parent=11 // pred_check_branch
          %154 = sbr.rel (%p152) target = $region24
        $region23: #{forward.1} parent=11 // pred_region
          %156 = vsyncadd [#allocation6], 0
          %s157 = sshll.u32 %s3, 4
          %s158 = int_to_ptr.hbm [resolvable:$true] %s157
          %s159 = sshll.u32 [#allocation5], 4
          %s160 = int_to_ptr.vmem [resolvable:$true] %s159
          %165 = dma.hbm_to_vmem [thread:$0]  %s158, 24576, %s160, [#allocation6], 192, 192, 12
        $region24: #{forward.1} parent=11 // pred_fallthru
          _
        // Predicated region
        $region25: #{forward.1} parent=11 // pred_check
          %p166 = pneg %p105
        $region26: #{forward.1} parent=11 // pred_check_branch
          %168 = sbr.rel (%p166) target = $region28
        $region27: #{forward.1} parent=11 // pred_region
          %170 = vsyncadd [#allocation8], 0
          %s171 = sshll.u32 %s4, 4
          %s172 = int_to_ptr.hbm [resolvable:$true] %s171
          %s173 = sshll.u32 [#allocation7], 4
          %s174 = int_to_ptr.vmem [resolvable:$true] %s173
          %179 = dma.hbm_to_vmem [thread:$0]  %s172, 2048, %s174, [#allocation8], 256, 256, 16
        $region28: #{forward.1} parent=11 // pred_fallthru
          _
      $region12: #{forward.1} parent=5 // pred_fallthru
        _
      %p180 = scmp.lt.s32.totalorder %s21, 8
      // Predicated region
      $region29: #{forward.1} parent=5 // pred_check
        %p181 = pneg %p180
      $region30: #{forward.1} parent=5 // pred_check_branch
        %183 = sbr.rel (%p181) target = $region32
      $region31: #{forward.1} parent=5 // pred_region
        _
      $region32: #{forward.1} parent=5 // pred_fallthru
        _
      %p184 = scmp.le.s32.totalorder 1, %s21
      %p185 = scmp.lt.s32.totalorder %s21, 9
      %p186 = pnand %p184, %p185
      %p187 = pneg %p186
      // Predicated region
      $region33: #{forward.1} parent=5 // pred_check
        _
      $region34: #{forward.1} parent=5 // pred_check_branch
        %189 = sbr.rel (%p186) target = $region36
      $region35: #{forward.1} parent=5 // pred_region
        %s190 = ssub.s32 %s21, 1
        // Predicated region
        $region37: #{forward.1} parent=35 // pred_check
          %p191 = pneg %p84
        $region38: #{forward.1} parent=35 // pred_check_branch
          %193 = sbr.rel (%p191) target = $region40
        $region39: #{forward.1} parent=35 // pred_region
          %195 = dma.done [#allocation6], 24576
        $region40: #{forward.1} parent=35 // pred_fallthru
          _
        // Predicated region
        $region41: #{forward.1} parent=35 // pred_check
          %p196 = pneg %p105
        $region42: #{forward.1} parent=35 // pred_check_branch
          %198 = sbr.rel (%p196) target = $region44
        $region43: #{forward.1} parent=35 // pred_region
          %200 = dma.done [#allocation8], 2048
        $region44: #{forward.1} parent=35 // pred_fallthru
          _
        %p201 = pneg %p42
        %p202 = pneg %p39
        %p203 = pneg %p63
        %p204 = pneg %p60
        %p205 = pneg %p84
        %p206 = pneg %p81
        %p207 = pneg %p105
        %p208 = pneg %p102
        %p209 = pneg %p131
        %p210 = pneg %p128
        %p211 = scmp.lt.s32.totalorder %s26, 7
        %s212 = scalar_select %p211, %s26, 7
        %s213 = smul.addr %s212, 2
        %s214 = smul.addr %s213, 8
        %s215 = scalar_lea.vmem %s5, %s214
        %p216 = scmp.lt.s32.totalorder %s26, 7
        %s217 = scalar_select %p216, %s26, 7
        %s218 = smul.addr %s217, 2
        %s219 = smul.addr %s218, 8
        %s220 = scalar_lea.vmem %s5, %s219
        %p222 = scmp.eq.s32.totalorder %s26, 0
        // Predicated region
        $region45: #{forward.1} parent=35 // pred_check
          %p223 = pneg %p222
        $region46: #{forward.1} parent=35 // pred_check_branch
          %225 = sbr.rel (%p223) target = $region48
        $region47: #{forward.1} parent=35 // pred_region
          %v226 = vld [vmem:[%s1] sm:$0xff]
          %v227 = vld [vmem:[%s1 + $0x8] sm:$0xff]
          %vm228 = vcmask 261120
          %229 = vst.msk [vmem:[#allocation2] sm:$0xff] %vm228, %v226
          %230 = vst.msk [vmem:[#allocation2 + $0x8] sm:$0xff] %vm228, %v227
        $region48: #{forward.1} parent=35 // pred_fallthru
          _
        %s231 = smul.u32 %s26, 128
        %s232 = sld [smem:[#allocation4 + %s231]]
        %s233 = sadd.s32 %s231, 1
        %s234 = sld [smem:[#allocation4 + %s233]]
        %s235 = sadd.s32 %s231, 2
        %s236 = sld [smem:[#allocation4 + %s235]]
        %s237 = sadd.s32 %s231, 3
        %s238 = sld [smem:[#allocation4 + %s237]]
        %s239 = sadd.s32 %s231, 4
        %s240 = sld [smem:[#allocation4 + %s239]]
        %s241 = smul.u32 %s232, 16
        %s242 = scalar_lea.vmem [#allocation2], %s241
        %v243 = vld [vmem:[%s242] sm:$0xff]
        %v244 = vld [vmem:[%s242 + $0x8] sm:$0xff]
        %s245 = smul.u32 %s26, 8
        %s246 = scalar_lea.vmem %s2, %s245
        %v247 = vld [vmem:[%s246] sm:$0x1f]
        %v248 = vpack.c.bf16 %v247, %v247
        %v249 = vpack.c.bf16 %v244, %v243
        %vm250 = vcmask 261120
        %v252 = vsel %vm250, %v249, 0
        %v255 = vsel %vm250, %v248, 0
        %257 = vmatpush.bf16.xpose.msra.mxu0 0
        %258 = vmatpush.bf16.xpose.msra.mxu0 0
        %259 = vmatpush.bf16.xpose.msra.mxu0 0
        %260 = vmatpush.bf16.xpose.msra.mxu0 0
        %261 = vmatpush.bf16.xpose.msra.mxu0 0
        %262 = vmatpush.bf16.xpose.msra.mxu0 0
        %263 = vmatpush.bf16.xpose.msra.mxu0 0
        %264 = vmatpush.bf16.xpose.msra.mxu0 %v255
        %265 = vmatmul.bf16.gmra.mxu0 %v252
        %v266 = vpop.f32.mrf.mxu0
        %v267 = vadd.f32 0.0, %v266
        %v268 = vpop.f32.mrf.mxu0
        %v269 = vadd.f32 0.0, %v268
        %270 = vdwg.mxu0
        %v271 = vmul.f32 %v267, 0.17677669
        %v272 = vmul.f32 %v269, 0.17677669
        %v273 = vlaneseq
        %v274 = vand.u32 %v273, 127
        %v275 = vstv %s236
        %vm276 = vcmp.lt.s32.totalorder %v274, %v275
        %v277 = vsel %vm276, %v271, -1e+30
        %v278 = vsel %vm276, %v272, -1e+30
        %vm279 = vcmask 39936
        %v280 = vsel %vm279, %v277, -inf
        %281 = vmax.xlane.f32.xlu0 %v280
        %v282 = vpop.xlane.xlu0 %281
        %v283 = vsel %vm279, %v278, -inf
        %284 = vmax.xlane.f32.xlu0 %v283
        %v285 = vpop.xlane.xlu0 %284
        %v286 = vsub.f32 %v277, %v282
        %v287 = vsub.f32 %v278, %v285
        %v288 = vmul.f32 %v286, 1.442695
        %v289 = vpow.pop %v288
        %v290 = vmul.f32 %v287, 1.442695
        %v291 = vpow.pop %v290
        %v292 = vsel %vm279, %v289, 0.0
        %293 = vadd.xlane.f32.xlu0 %v292
        %v294 = vpop.xlane.xlu0 %293
        %v295 = vsel %vm279, %v291, 0.0
        %296 = vadd.xlane.f32.xlu0 %v295
        %v297 = vpop.xlane.xlu0 %296
        %v298 = vrcp.pop %v294
        %v299 = vrcp.pop %v297
        %v300 = vmul.f32 %v289, %v298
        %v301 = vmul.f32 %v291, %v299
        %v302 = vstv %s238
        %vm303 = vcmp.eq.s32.totalorder %v274, %v302
        %v304 = vsel %vm303, %v300, 0.0
        %v305 = vsel %vm303, %v301, 0.0
        %v306 = vsel %vm279, %v304, 0.0
        %307 = vadd.xlane.f32.xlu0 %v306
        %v308 = vpop.xlane.xlu0 %307
        %v309 = vsel %vm279, %v305, 0.0
        %310 = vadd.xlane.f32.xlu0 %v309
        %v311 = vpop.xlane.xlu0 %310
        %v312 = vmul.f32 %v243, %v308
        %v313 = vmul.f32 %v244, %v311
        %s314 = scalar_select %p222, 1, 0
        %v315 = vstv %s314
        %vm316 = vcmp.eq.s32.totalorder %v315, 1
        %v317 = vsel %vm316, %v243, %v312
        %v318 = vsel %vm316, %v244, %v313
        %s319 = smul.u32 %s26, 4
        %s320 = smul.addr %s319, 4
        %s321 = scalar_lea.vmem [#allocation7], %s320
        %v322 = vld [vmem:[%s321] sm:$0xff]
        %v323 = vld [vmem:[%s321 + $0x8] sm:$0xff]
        %s324 = smul.u32 %s26, 48
        %s325 = smul.addr %s324, 4
        %s326 = scalar_lea.vmem [#allocation5], %s325
        %v327 = vld [vmem:[%s326] sm:$0xff]
        %v328 = vld [vmem:[%s326 + $0x8] sm:$0xf]
        %v329 = vld [vmem:[%s326 + $0xc] sm:$0xff]
        %v330 = vld [vmem:[%s326 + $0x14] sm:$0xf]
        %v331 = vld [vmem:[%s326 + $0x18] sm:$0xff]
        %v332 = vld [vmem:[%s326 + $0x20] sm:$0xf]
        %v333 = vld [vmem:[%s326 + $0x24] sm:$0xff]
        %v334 = vld [vmem:[%s326 + $0x2c] sm:$0xf]
        %v335 = vsel %vm250, %v317, 0.0
        %336 = vadd.xlane.f32.xlu0 %v335
        %v337 = vpop.xlane.xlu0 %336
        %v338 = vsel %vm250, %v318, 0.0
        %339 = vadd.xlane.f32.xlu0 %v338
        %v340 = vpop.xlane.xlu0 %339
        %v341 = vrcp.pop 32.0
        %v342 = vmul.f32 32.0, %v341
        %v343 = vsub.f32 1.0, %v342
        %v344 = vmul.f32 %v341, %v343
        %v345 = vadd.f32 %v341, %v344
        %vm346 = vweird.f32 %v341
        %v347 = vsel %vm346, %v341, %v345
        %v348 = vmul.f32 %v337, %v347
        %v349 = vmul.f32 %v340, %v347
        %v350 = vsub.f32 %v317, %v348
        %v351 = vsub.f32 %v318, %v349
        %v352 = vmul.f32 %v350, %v350
        %v353 = vmul.f32 %v351, %v351
        %v354 = vsel %vm250, %v352, 0.0
        %355 = vadd.xlane.f32.xlu0 %v354
        %v356 = vpop.xlane.xlu0 %355
        %v357 = vsel %vm250, %v353, 0.0
        %358 = vadd.xlane.f32.xlu0 %v357
        %v359 = vpop.xlane.xlu0 %358
        %v360 = vmul.f32 %v356, %v347
        %v361 = vmul.f32 %v359, %v347
        %v362 = vadd.f32 %v360, 1e-05
        %v363 = vadd.f32 %v361, 1e-05
        %v364 = vrsqrt.pop %v362
        %v365 = vmul.f32 %v364, %v362
        %v366 = vmul.f32 %v365, %v364
        %v367 = vmul.f32 0.5, %v366
        %v368 = vsub.f32 1.5, %v367
        %v369 = vmul.f32 %v364, %v368
        %vm370 = vweird.f32 %v362
        %vm371 = vweird.f32 %v364
        %vm372 = vmor %vm370, %vm371
        %v373 = vsel %vm372, %v364, %v369
        %v374 = vrsqrt.pop %v363
        %v375 = vmul.f32 %v374, %v363
        %v376 = vmul.f32 %v375, %v374
        %v377 = vmul.f32 0.5, %v376
        %v378 = vsub.f32 1.5, %v377
        %v379 = vmul.f32 %v374, %v378
        %vm380 = vweird.f32 %v363
        %vm381 = vweird.f32 %v374
        %vm382 = vmor %vm380, %vm381
        %v383 = vsel %vm382, %v374, %v379
        %v384 = vmul.f32 %v350, %v373
        %v385 = vmul.f32 %v351, %v383
        %v387 = vrot.slane %v322, 4
        %v389 = vperm.slane %v387, 0
        %v390 = vmul.f32 %v384, %v389
        %v391 = vmul.f32 %v385, %v389
        %392 = vrot.lane.b32.xlu0 %v322, 96
        %v393 = vpop.permute.xlu0 %392
        %v394 = vrot.slane %v393, 4
        %v396 = vperm.slane %v394, 0
        %v397 = vadd.f32 %v390, %v396
        %v398 = vadd.f32 %v391, %v396
        %v399 = vpack.c.bf16 %v398, %v397
        %v400 = vperm.slane %v322, 0
        %v405 = vunpack.c.l.b16 %v327
        %v406 = vunpack.c.l.b16 %v329
        %v407 = vunpack.c.l.b16 %v331
        %v408 = vunpack.c.l.b16 %v333
        %v409 = vpack.c.b16 %v406, %v405
        %v410 = vpack.c.b16 %v408, %v407
        %v414 = vsel %vm250, %v399, 0
        %416 = vmatpush.bf16.msra.mxu0 0
        %417 = vmatpush.bf16.msra.mxu0 0
        %418 = vmatpush.bf16.msra.mxu0 0
        %419 = vmatpush.bf16.msra.mxu0 0
        %420 = vmatpush.bf16.msra.mxu0 0
        %421 = vmatpush.bf16.msra.mxu0 0
        %422 = vmatpush.bf16.msra.mxu0 %v410
        %423 = vmatpush.bf16.msra.mxu0 %v409
        %424 = vmatmul.bf16.gmra.mxu0 %v414
        %v425 = vpop.f32.mrf.mxu0
        %v426 = vadd.f32 %v400, %v425
        %v427 = vpop.f32.mrf.mxu0
        %v428 = vadd.f32 %v400, %v427
        %429 = vdwg.mxu0
        %432 = vrot.lane.b32.xlu0 %v426, 120
        %v433 = vpop.permute.xlu0 %432
        %434 = vrot.lane.b32.xlu0 %v428, 120
        %v435 = vpop.permute.xlu0 %434
        %438 = vrot.lane.b32.xlu0 %v426, 112
        %v439 = vpop.permute.xlu0 %438
        %440 = vrot.lane.b32.xlu0 %v428, 112
        %v441 = vpop.permute.xlu0 %440
        %444 = vrot.lane.b32.xlu0 %v426, 104
        %v445 = vpop.permute.xlu0 %444
        %446 = vrot.lane.b32.xlu0 %v428, 104
        %v447 = vpop.permute.xlu0 %446
        %v450 = vpack.c.bf16 %v426, %v426
        %v451 = vpack.c.bf16 %v428, %v428
        %v452 = vpack.c.bf16 %v433, %v433
        %v453 = vpack.c.bf16 %v435, %v435
        %v454 = vpack.c.bf16 %v439, %v439
        %v455 = vpack.c.bf16 %v441, %v441
        %v456 = vpack.c.bf16 %v445, %v445
        %v457 = vpack.c.bf16 %v447, %v447
        %v459 = vunpack.c.l.b16 %v450
        %v460 = vpack.c.b16 %v459, %v459
        %461 = vrot.lane.b32.xlu0 %v460, 96
        %v462 = vpop.permute.xlu0 %461
        %vm463 = vcmask 64512
        %v465 = vsel %vm463, %v450, 0
        %v468 = vsel %vm463, %v462, 0
        %470 = vmatpush.bf16.xpose.msra.mxu0 0
        %471 = vmatpush.bf16.xpose.msra.mxu0 0
        %472 = vmatpush.bf16.xpose.msra.mxu0 0
        %473 = vmatpush.bf16.xpose.msra.mxu0 0
        %474 = vmatpush.bf16.xpose.msra.mxu0 0
        %475 = vmatpush.bf16.xpose.msra.mxu0 0
        %476 = vmatpush.bf16.xpose.msra.mxu0 0
        %477 = vmatpush.bf16.xpose.msra.mxu0 %v468
        %478 = vmatmul.bf16.gmra.mxu0 %v465
        %v479 = vpop.f32.mrf.mxu0
        %v480 = vadd.f32 0.0, %v479
        %v481 = vpop.f32.mrf.mxu0
        %482 = vdwg.mxu0
        %v484 = vunpack.c.l.b16 %v451
        %v485 = vpack.c.b16 %v484, %v484
        %486 = vrot.lane.b32.xlu0 %v485, 96
        %v487 = vpop.permute.xlu0 %486
        %v489 = vsel %vm463, %v451, 0
        %v492 = vsel %vm463, %v487, 0
        %494 = vmatpush.bf16.xpose.msra.mxu0 0
        %495 = vmatpush.bf16.xpose.msra.mxu0 0
        %496 = vmatpush.bf16.xpose.msra.mxu0 0
        %497 = vmatpush.bf16.xpose.msra.mxu0 0
        %498 = vmatpush.bf16.xpose.msra.mxu0 0
        %499 = vmatpush.bf16.xpose.msra.mxu0 0
        %500 = vmatpush.bf16.xpose.msra.mxu0 0
        %501 = vmatpush.bf16.xpose.msra.mxu0 %v492
        %502 = vmatmul.bf16.gmra.mxu0 %v489
        %v503 = vpop.f32.mrf.mxu0
        %v504 = vadd.f32 0.0, %v503
        %v505 = vpop.f32.mrf.mxu0
        %506 = vdwg.mxu0
        %v508 = vunpack.c.l.b16 %v452
        %v509 = vpack.c.b16 %v508, %v508
        %510 = vrot.lane.b32.xlu0 %v509, 96
        %v511 = vpop.permute.xlu0 %510
        %v513 = vsel %vm463, %v452, 0
        %v516 = vsel %vm463, %v511, 0
        %518 = vmatpush.bf16.xpose.msra.mxu0 0
        %519 = vmatpush.bf16.xpose.msra.mxu0 0
        %520 = vmatpush.bf16.xpose.msra.mxu0 0
        %521 = vmatpush.bf16.xpose.msra.mxu0 0
        %522 = vmatpush.bf16.xpose.msra.mxu0 0
        %523 = vmatpush.bf16.xpose.msra.mxu0 0
        %524 = vmatpush.bf16.xpose.msra.mxu0 0
        %525 = vmatpush.bf16.xpose.msra.mxu0 %v516
        %526 = vmatmul.bf16.gmra.mxu0 %v513
        %v527 = vpop.f32.mrf.mxu0
        %v528 = vadd.f32 0.0, %v527
        %v529 = vpop.f32.mrf.mxu0
        %530 = vdwg.mxu0
        %v532 = vunpack.c.l.b16 %v453
        %v533 = vpack.c.b16 %v532, %v532
        %534 = vrot.lane.b32.xlu0 %v533, 96
        %v535 = vpop.permute.xlu0 %534
        %v537 = vsel %vm463, %v453, 0
        %v540 = vsel %vm463, %v535, 0
        %542 = vmatpush.bf16.xpose.msra.mxu0 0
        %543 = vmatpush.bf16.xpose.msra.mxu0 0
        %544 = vmatpush.bf16.xpose.msra.mxu0 0
        %545 = vmatpush.bf16.xpose.msra.mxu0 0
        %546 = vmatpush.bf16.xpose.msra.mxu0 0
        %547 = vmatpush.bf16.xpose.msra.mxu0 0
        %548 = vmatpush.bf16.xpose.msra.mxu0 0
        %549 = vmatpush.bf16.xpose.msra.mxu0 %v540
        %550 = vmatmul.bf16.gmra.mxu0 %v537
        %v551 = vpop.f32.mrf.mxu0
        %v552 = vadd.f32 0.0, %v551
        %v553 = vpop.f32.mrf.mxu0
        %554 = vdwg.mxu0
        %v556 = vunpack.c.l.b16 %v454
        %v557 = vpack.c.b16 %v556, %v556
        %558 = vrot.lane.b32.xlu0 %v557, 96
        %v559 = vpop.permute.xlu0 %558
        %v561 = vsel %vm463, %v454, 0
        %v564 = vsel %vm463, %v559, 0
        %566 = vmatpush.bf16.xpose.msra.mxu0 0
        %567 = vmatpush.bf16.xpose.msra.mxu0 0
        %568 = vmatpush.bf16.xpose.msra.mxu0 0
        %569 = vmatpush.bf16.xpose.msra.mxu0 0
        %570 = vmatpush.bf16.xpose.msra.mxu0 0
        %571 = vmatpush.bf16.xpose.msra.mxu0 0
        %572 = vmatpush.bf16.xpose.msra.mxu0 0
        %573 = vmatpush.bf16.xpose.msra.mxu0 %v564
        %574 = vmatmul.bf16.gmra.mxu0 %v561
        %v575 = vpop.f32.mrf.mxu0
        %v576 = vadd.f32 0.0, %v575
        %v577 = vpop.f32.mrf.mxu0
        %578 = vdwg.mxu0
        %v580 = vunpack.c.l.b16 %v455
        %v581 = vpack.c.b16 %v580, %v580
        %582 = vrot.lane.b32.xlu0 %v581, 96
        %v583 = vpop.permute.xlu0 %582
        %v585 = vsel %vm463, %v455, 0
        %v588 = vsel %vm463, %v583, 0
        %590 = vmatpush.bf16.xpose.msra.mxu0 0
        %591 = vmatpush.bf16.xpose.msra.mxu0 0
        %592 = vmatpush.bf16.xpose.msra.mxu0 0
        %593 = vmatpush.bf16.xpose.msra.mxu0 0
        %594 = vmatpush.bf16.xpose.msra.mxu0 0
        %595 = vmatpush.bf16.xpose.msra.mxu0 0
        %596 = vmatpush.bf16.xpose.msra.mxu0 0
        %597 = vmatpush.bf16.xpose.msra.mxu0 %v588
        %598 = vmatmul.bf16.gmra.mxu0 %v585
        %v599 = vpop.f32.mrf.mxu0
        %v600 = vadd.f32 0.0, %v599
        %v601 = vpop.f32.mrf.mxu0
        %602 = vdwg.mxu0
        %v604 = vunpack.c.l.b16 %v456
        %v605 = vpack.c.b16 %v604, %v604
        %606 = vrot.lane.b32.xlu0 %v605, 96
        %v607 = vpop.permute.xlu0 %606
        %v609 = vsel %vm463, %v456, 0
        %v612 = vsel %vm463, %v607, 0
        %614 = vmatpush.bf16.xpose.msra.mxu0 0
        %615 = vmatpush.bf16.xpose.msra.mxu0 0
        %616 = vmatpush.bf16.xpose.msra.mxu0 0
        %617 = vmatpush.bf16.xpose.msra.mxu0 0
        %618 = vmatpush.bf16.xpose.msra.mxu0 0
        %619 = vmatpush.bf16.xpose.msra.mxu0 0
        %620 = vmatpush.bf16.xpose.msra.mxu0 0
        %621 = vmatpush.bf16.xpose.msra.mxu0 %v612
        %622 = vmatmul.bf16.gmra.mxu0 %v609
        %v623 = vpop.f32.mrf.mxu0
        %v624 = vadd.f32 0.0, %v623
        %v625 = vpop.f32.mrf.mxu0
        %626 = vdwg.mxu0
        %v628 = vunpack.c.l.b16 %v457
        %v629 = vpack.c.b16 %v628, %v628
        %630 = vrot.lane.b32.xlu0 %v629, 96
        %v631 = vpop.permute.xlu0 %630
        %v633 = vsel %vm463, %v457, 0
        %v636 = vsel %vm463, %v631, 0
        %638 = vmatpush.bf16.xpose.msra.mxu0 0
        %639 = vmatpush.bf16.xpose.msra.mxu0 0
        %640 = vmatpush.bf16.xpose.msra.mxu0 0
        %641 = vmatpush.bf16.xpose.msra.mxu0 0
        %642 = vmatpush.bf16.xpose.msra.mxu0 0
        %643 = vmatpush.bf16.xpose.msra.mxu0 0
        %644 = vmatpush.bf16.xpose.msra.mxu0 0
        %645 = vmatpush.bf16.xpose.msra.mxu0 %v636
        %646 = vmatmul.bf16.gmra.mxu0 %v633
        %v647 = vpop.f32.mrf.mxu0
        %v648 = vadd.f32 0.0, %v647
        %v649 = vpop.f32.mrf.mxu0
        %650 = vdwg.mxu0
        %v651 = vmul.f32 %v480, 0.35355338
        %v652 = vmul.f32 %v504, 0.35355338
        %v653 = vmul.f32 %v528, 0.35355338
        %v654 = vmul.f32 %v552, 0.35355338
        %v655 = vmul.f32 %v576, 0.35355338
        %v656 = vmul.f32 %v600, 0.35355338
        %v657 = vmul.f32 %v624, 0.35355338
        %v658 = vmul.f32 %v648, 0.35355338
        %v659 = vsel %vm463, %v651, -inf
        %660 = vmax.xlane.f32.xlu0 %v659
        %v661 = vpop.xlane.xlu0 %660
        %v662 = vsel %vm463, %v652, -inf
        %663 = vmax.xlane.f32.xlu0 %v662
        %v664 = vpop.xlane.xlu0 %663
        %v665 = vsel %vm463, %v653, -inf
        %666 = vmax.xlane.f32.xlu0 %v665
        %v667 = vpop.xlane.xlu0 %666
        %v668 = vsel %vm463, %v654, -inf
        %669 = vmax.xlane.f32.xlu0 %v668
        %v670 = vpop.xlane.xlu0 %669
        %v671 = vsel %vm463, %v655, -inf
        %672 = vmax.xlane.f32.xlu0 %v671
        %v673 = vpop.xlane.xlu0 %672
        %v674 = vsel %vm463, %v656, -inf
        %675 = vmax.xlane.f32.xlu0 %v674
        %v676 = vpop.xlane.xlu0 %675
        %v677 = vsel %vm463, %v657, -inf
        %678 = vmax.xlane.f32.xlu0 %v677
        %v679 = vpop.xlane.xlu0 %678
        %v680 = vsel %vm463, %v658, -inf
        %681 = vmax.xlane.f32.xlu0 %v680
        %v682 = vpop.xlane.xlu0 %681
        %v683 = vsub.f32 %v651, %v661
        %v684 = vsub.f32 %v652, %v664
        %v685 = vsub.f32 %v653, %v667
        %v686 = vsub.f32 %v654, %v670
        %v687 = vsub.f32 %v655, %v673
        %v688 = vsub.f32 %v656, %v676
        %v689 = vsub.f32 %v657, %v679
        %v690 = vsub.f32 %v658, %v682
        %v691 = vmul.f32 %v683, 1.442695
        %v692 = vpow.pop %v691
        %v693 = vmul.f32 %v684, 1.442695
        %v694 = vpow.pop %v693
        %v695 = vmul.f32 %v685, 1.442695
        %v696 = vpow.pop %v695
        %v697 = vmul.f32 %v686, 1.442695
        %v698 = vpow.pop %v697
        %v699 = vmul.f32 %v687, 1.442695
        %v700 = vpow.pop %v699
        %v701 = vmul.f32 %v688, 1.442695
        %v702 = vpow.pop %v701
        %v703 = vmul.f32 %v689, 1.442695
        %v704 = vpow.pop %v703
        %v705 = vmul.f32 %v690, 1.442695
        %v706 = vpow.pop %v705
        %v707 = vsel %vm463, %v692, 0.0
        %708 = vadd.xlane.f32.xlu0 %v707
        %v709 = vpop.xlane.xlu0 %708
        %v710 = vsel %vm463, %v694, 0.0
        %711 = vadd.xlane.f32.xlu0 %v710
        %v712 = vpop.xlane.xlu0 %711
        %v713 = vsel %vm463, %v696, 0.0
        %714 = vadd.xlane.f32.xlu0 %v713
        %v715 = vpop.xlane.xlu0 %714
        %v716 = vsel %vm463, %v698, 0.0
        %717 = vadd.xlane.f32.xlu0 %v716
        %v718 = vpop.xlane.xlu0 %717
        %v719 = vsel %vm463, %v700, 0.0
        %720 = vadd.xlane.f32.xlu0 %v719
        %v721 = vpop.xlane.xlu0 %720
        %v722 = vsel %vm463, %v702, 0.0
        %723 = vadd.xlane.f32.xlu0 %v722
        %v724 = vpop.xlane.xlu0 %723
        %v725 = vsel %vm463, %v704, 0.0
        %726 = vadd.xlane.f32.xlu0 %v725
        %v727 = vpop.xlane.xlu0 %726
        %v728 = vsel %vm463, %v706, 0.0
        %729 = vadd.xlane.f32.xlu0 %v728
        %v730 = vpop.xlane.xlu0 %729
        %v731 = vrcp.pop %v709
        %v732 = vrcp.pop %v712
        %v733 = vrcp.pop %v715
        %v734 = vrcp.pop %v718
        %v735 = vrcp.pop %v721
        %v736 = vrcp.pop %v724
        %v737 = vrcp.pop %v727
        %v738 = vrcp.pop %v730
        %v739 = vmul.f32 %v692, %v731
        %v740 = vmul.f32 %v694, %v732
        %v741 = vmul.f32 %v696, %v733
        %v742 = vmul.f32 %v698, %v734
        %v743 = vmul.f32 %v700, %v735
        %v744 = vmul.f32 %v702, %v736
        %v745 = vmul.f32 %v704, %v737
        %v746 = vmul.f32 %v706, %v738
        %v747 = vpack.c.bf16 %v739, %v739
        %v748 = vpack.c.bf16 %v740, %v740
        %v749 = vpack.c.bf16 %v741, %v741
        %v750 = vpack.c.bf16 %v742, %v742
        %v751 = vpack.c.bf16 %v743, %v743
        %v752 = vpack.c.bf16 %v744, %v744
        %v753 = vpack.c.bf16 %v745, %v745
        %v754 = vpack.c.bf16 %v746, %v746
        %755 = vrot.lane.b32.xlu0 %v460, 64
        %v756 = vpop.permute.xlu0 %755
        %v758 = vsel %vm463, %v747, 0
        %vm760 = vcmask 1043456
        %v762 = vsel %vm760, %v756, 0
        %764 = vmatpush.bf16.msra.mxu0 0
        %765 = vmatpush.bf16.msra.mxu0 0
        %766 = vmatpush.bf16.msra.mxu0 0
        %767 = vmatpush.bf16.msra.mxu0 0
        %768 = vmatpush.bf16.msra.mxu0 0
        %769 = vmatpush.bf16.msra.mxu0 0
        %770 = vmatpush.bf16.msra.mxu0 0
        %771 = vmatpush.bf16.msra.mxu0 %v762
        %772 = vmatmul.bf16.gmra.mxu0 %v758
        %v773 = vpop.f32.mrf.mxu0
        %v774 = vadd.f32 0.0, %v773
        %v775 = vpop.f32.mrf.mxu0
        %776 = vdwg.mxu0
        %777 = vrot.lane.b32.xlu0 %v485, 64
        %v778 = vpop.permute.xlu0 %777
        %v780 = vsel %vm463, %v748, 0
        %v783 = vsel %vm760, %v778, 0
        %785 = vmatpush.bf16.msra.mxu0 0
        %786 = vmatpush.bf16.msra.mxu0 0
        %787 = vmatpush.bf16.msra.mxu0 0
        %788 = vmatpush.bf16.msra.mxu0 0
        %789 = vmatpush.bf16.msra.mxu0 0
        %790 = vmatpush.bf16.msra.mxu0 0
        %791 = vmatpush.bf16.msra.mxu0 0
        %792 = vmatpush.bf16.msra.mxu0 %v783
        %793 = vmatmul.bf16.gmra.mxu0 %v780
        %v794 = vpop.f32.mrf.mxu0
        %v795 = vadd.f32 0.0, %v794
        %v796 = vpop.f32.mrf.mxu0
        %797 = vdwg.mxu0
        %798 = vrot.lane.b32.xlu0 %v509, 64
        %v799 = vpop.permute.xlu0 %798
        %v801 = vsel %vm463, %v749, 0
        %v804 = vsel %vm760, %v799, 0
        %806 = vmatpush.bf16.msra.mxu0 0
        %807 = vmatpush.bf16.msra.mxu0 0
        %808 = vmatpush.bf16.msra.mxu0 0
        %809 = vmatpush.bf16.msra.mxu0 0
        %810 = vmatpush.bf16.msra.mxu0 0
        %811 = vmatpush.bf16.msra.mxu0 0
        %812 = vmatpush.bf16.msra.mxu0 0
        %813 = vmatpush.bf16.msra.mxu0 %v804
        %814 = vmatmul.bf16.gmra.mxu0 %v801
        %v815 = vpop.f32.mrf.mxu0
        %v816 = vadd.f32 0.0, %v815
        %v817 = vpop.f32.mrf.mxu0
        %818 = vdwg.mxu0
        %819 = vrot.lane.b32.xlu0 %v533, 64
        %v820 = vpop.permute.xlu0 %819
        %v822 = vsel %vm463, %v750, 0
        %v825 = vsel %vm760, %v820, 0
        %827 = vmatpush.bf16.msra.mxu0 0
        %828 = vmatpush.bf16.msra.mxu0 0
        %829 = vmatpush.bf16.msra.mxu0 0
        %830 = vmatpush.bf16.msra.mxu0 0
        %831 = vmatpush.bf16.msra.mxu0 0
        %832 = vmatpush.bf16.msra.mxu0 0
        %833 = vmatpush.bf16.msra.mxu0 0
        %834 = vmatpush.bf16.msra.mxu0 %v825
        %835 = vmatmul.bf16.gmra.mxu0 %v822
        %v836 = vpop.f32.mrf.mxu0
        %v837 = vadd.f32 0.0, %v836
        %v838 = vpop.f32.mrf.mxu0
        %839 = vdwg.mxu0
        %840 = vrot.lane.b32.xlu0 %v557, 64
        %v841 = vpop.permute.xlu0 %840
        %v843 = vsel %vm463, %v751, 0
        %v846 = vsel %vm760, %v841, 0
        %848 = vmatpush.bf16.msra.mxu0 0
        %849 = vmatpush.bf16.msra.mxu0 0
        %850 = vmatpush.bf16.msra.mxu0 0
        %851 = vmatpush.bf16.msra.mxu0 0
        %852 = vmatpush.bf16.msra.mxu0 0
        %853 = vmatpush.bf16.msra.mxu0 0
        %854 = vmatpush.bf16.msra.mxu0 0
        %855 = vmatpush.bf16.msra.mxu0 %v846
        %856 = vmatmul.bf16.gmra.mxu0 %v843
        %v857 = vpop.f32.mrf.mxu0
        %v858 = vadd.f32 0.0, %v857
        %v859 = vpop.f32.mrf.mxu0
        %860 = vdwg.mxu0
        %861 = vrot.lane.b32.xlu0 %v581, 64
        %v862 = vpop.permute.xlu0 %861
        %v864 = vsel %vm463, %v752, 0
        %v867 = vsel %vm760, %v862, 0
        %869 = vmatpush.bf16.msra.mxu0 0
        %870 = vmatpush.bf16.msra.mxu0 0
        %871 = vmatpush.bf16.msra.mxu0 0
        %872 = vmatpush.bf16.msra.mxu0 0
        %873 = vmatpush.bf16.msra.mxu0 0
        %874 = vmatpush.bf16.msra.mxu0 0
        %875 = vmatpush.bf16.msra.mxu0 0
        %876 = vmatpush.bf16.msra.mxu0 %v867
        %877 = vmatmul.bf16.gmra.mxu0 %v864
        %v878 = vpop.f32.mrf.mxu0
        %v879 = vadd.f32 0.0, %v878
        %v880 = vpop.f32.mrf.mxu0
        %881 = vdwg.mxu0
        %882 = vrot.lane.b32.xlu0 %v605, 64
        %v883 = vpop.permute.xlu0 %882
        %v885 = vsel %vm463, %v753, 0
        %v888 = vsel %vm760, %v883, 0
        %890 = vmatpush.bf16.msra.mxu0 0
        %891 = vmatpush.bf16.msra.mxu0 0
        %892 = vmatpush.bf16.msra.mxu0 0
        %893 = vmatpush.bf16.msra.mxu0 0
        %894 = vmatpush.bf16.msra.mxu0 0
        %895 = vmatpush.bf16.msra.mxu0 0
        %896 = vmatpush.bf16.msra.mxu0 0
        %897 = vmatpush.bf16.msra.mxu0 %v888
        %898 = vmatmul.bf16.gmra.mxu0 %v885
        %v899 = vpop.f32.mrf.mxu0
        %v900 = vadd.f32 0.0, %v899
        %v901 = vpop.f32.mrf.mxu0
        %902 = vdwg.mxu0
        %903 = vrot.lane.b32.xlu0 %v629, 64
        %v904 = vpop.permute.xlu0 %903
        %v906 = vsel %vm463, %v754, 0
        %v909 = vsel %vm760, %v904, 0
        %911 = vmatpush.bf16.msra.mxu0 0
        %912 = vmatpush.bf16.msra.mxu0 0
        %913 = vmatpush.bf16.msra.mxu0 0
        %914 = vmatpush.bf16.msra.mxu0 0
        %915 = vmatpush.bf16.msra.mxu0 0
        %916 = vmatpush.bf16.msra.mxu0 0
        %917 = vmatpush.bf16.msra.mxu0 0
        %918 = vmatpush.bf16.msra.mxu0 %v909
        %919 = vmatmul.bf16.gmra.mxu0 %v906
        %v920 = vpop.f32.mrf.mxu0
        %v921 = vadd.f32 0.0, %v920
        %v922 = vpop.f32.mrf.mxu0
        %923 = vdwg.mxu0
        %926 = vrot.lane.b32.xlu0 %v816, 8
        %v927 = vpop.permute.xlu0 %926
        %928 = vrot.lane.b32.xlu0 %v837, 8
        %v929 = vpop.permute.xlu0 %928
        %934 = vrot.lane.b32.xlu0 %v858, 16
        %v935 = vpop.permute.xlu0 %934
        %936 = vrot.lane.b32.xlu0 %v879, 16
        %v937 = vpop.permute.xlu0 %936
        %942 = vrot.lane.b32.xlu0 %v900, 24
        %v943 = vpop.permute.xlu0 %942
        %944 = vrot.lane.b32.xlu0 %v921, 24
        %v945 = vpop.permute.xlu0 %944
        %v948 = vsel %vm463, %v774, %v927
        %v949 = vsel %vm463, %v795, %v929
        %vm950 = vcmask 130048
        %v951 = vsel %vm950, %v948, %v935
        %v952 = vsel %vm950, %v949, %v937
        %vm953 = vcmask 195584
        %v954 = vsel %vm953, %v951, %v943
        %v955 = vsel %vm953, %v952, %v945
        %v956 = vpack.c.bf16 %v955, %v954
        %957 = vrot.lane.b32.xlu0 %v409, 32
        %v958 = vpop.permute.xlu0 %957
        %959 = vrot.lane.b32.xlu0 %v410, 32
        %v960 = vpop.permute.xlu0 %959
        %v964 = vsel %vm250, %v956, 0
        %966 = vmatpush.bf16.msra.mxu0 0
        %967 = vmatpush.bf16.msra.mxu0 0
        %968 = vmatpush.bf16.msra.mxu0 0
        %969 = vmatpush.bf16.msra.mxu0 0
        %970 = vmatpush.bf16.msra.mxu0 0
        %971 = vmatpush.bf16.msra.mxu0 0
        %972 = vmatpush.bf16.msra.mxu0 %v960
        %973 = vmatpush.bf16.msra.mxu0 %v958
        %974 = vmatmul.bf16.gmra.mxu0 %v964
        %v975 = vpop.f32.mrf.mxu0
        %v976 = vadd.f32 0.0, %v975
        %v977 = vpop.f32.mrf.mxu0
        %v978 = vadd.f32 0.0, %v977
        %979 = vdwg.mxu0
        %v980 = vadd.f32 %v317, %v976
        %v981 = vadd.f32 %v318, %v978
        %983 = vrot.lane.b32.xlu0 %v400, 32
        %v984 = vpop.permute.xlu0 %983
        %v986 = vadd.f32 %v980, %v984
        %v987 = vadd.f32 %v981, %v984
        %v988 = vsel %vm250, %v986, 0.0
        %989 = vadd.xlane.f32.xlu0 %v988
        %v990 = vpop.xlane.xlu0 %989
        %v991 = vsel %vm250, %v987, 0.0
        %992 = vadd.xlane.f32.xlu0 %v991
        %v993 = vpop.xlane.xlu0 %992
        %v994 = vmul.f32 %v990, %v347
        %v995 = vmul.f32 %v993, %v347
        %v996 = vsub.f32 %v986, %v994
        %v997 = vsub.f32 %v987, %v995
        %v998 = vmul.f32 %v996, %v996
        %v999 = vmul.f32 %v997, %v997
        %v1000 = vsel %vm250, %v998, 0.0
        %1001 = vadd.xlane.f32.xlu0 %v1000
        %v1002 = vpop.xlane.xlu0 %1001
        %v1003 = vsel %vm250, %v999, 0.0
        %1004 = vadd.xlane.f32.xlu0 %v1003
        %v1005 = vpop.xlane.xlu0 %1004
        %v1006 = vmul.f32 %v1002, %v347
        %v1007 = vmul.f32 %v1005, %v347
        %v1008 = vadd.f32 %v1006, 1e-05
        %v1009 = vadd.f32 %v1007, 1e-05
        %v1010 = vrsqrt.pop %v1008
        %v1011 = vmul.f32 %v1010, %v1008
        %v1012 = vmul.f32 %v1011, %v1010
        %v1013 = vmul.f32 0.5, %v1012
        %v1014 = vsub.f32 1.5, %v1013
        %v1015 = vmul.f32 %v1010, %v1014
        %vm1016 = vweird.f32 %v1008
        %vm1017 = vweird.f32 %v1010
        %vm1018 = vmor %vm1016, %vm1017
        %v1019 = vsel %vm1018, %v1010, %v1015
        %v1020 = vrsqrt.pop %v1009
        %v1021 = vmul.f32 %v1020, %v1009
        %v1022 = vmul.f32 %v1021, %v1020
        %v1023 = vmul.f32 0.5, %v1022
        %v1024 = vsub.f32 1.5, %v1023
        %v1025 = vmul.f32 %v1020, %v1024
        %vm1026 = vweird.f32 %v1009
        %vm1027 = vweird.f32 %v1020
        %vm1028 = vmor %vm1026, %vm1027
        %v1029 = vsel %vm1028, %v1020, %v1025
        %v1030 = vmul.f32 %v996, %v1019
        %v1031 = vmul.f32 %v997, %v1029
        %1032 = vrot.lane.b32.xlu0 %v322, 64
        %v1033 = vpop.permute.xlu0 %1032
        %v1034 = vrot.slane %v1033, 4
        %v1036 = vperm.slane %v1034, 0
        %v1037 = vmul.f32 %v1030, %v1036
        %v1038 = vmul.f32 %v1031, %v1036
        %1039 = vrot.lane.b32.xlu0 %v322, 32
        %v1040 = vpop.permute.xlu0 %1039
        %v1041 = vrot.slane %v1040, 4
        %v1043 = vperm.slane %v1041, 0
        %v1044 = vadd.f32 %v1037, %v1043
        %v1045 = vadd.f32 %v1038, %v1043
        %v1046 = vpack.c.bf16 %v1045, %v1044
        %v1048 = vperm.slane %v323, 0
        %v1049 = vperm.slane %v323, 4
        %v1052 = vperm.slane %v1048, 0
        %v1053 = vperm.slane %v1049, 0
        %v1054 = vunpack.c.h.b16 %v327
        %v1055 = vunpack.c.h.b16 %v329
        %v1056 = vunpack.c.h.b16 %v331
        %v1057 = vunpack.c.h.b16 %v333
        %v1058 = vpack.c.b16 %v1055, %v1054
        %v1059 = vpack.c.b16 %v1057, %v1056
        %1064 = vrot.lane.b32.xlu0 %v1052, 96
        %v1065 = vpop.permute.xlu0 %1064
        %1066 = vrot.lane.b32.xlu0 %v1053, 96
        %v1067 = vpop.permute.xlu0 %1066
        %vm1068 = vcmask 785408
        %v1069 = vsel %vm1068, %v1065, %v1067
        %v1072 = vsel %vm250, %v1046, 0
        %1074 = vmatpush.bf16.msra.mxu0 0
        %1075 = vmatpush.bf16.msra.mxu0 0
        %1076 = vmatpush.bf16.msra.mxu0 0
        %1077 = vmatpush.bf16.msra.mxu0 0
        %1078 = vmatpush.bf16.msra.mxu0 0
        %1079 = vmatpush.bf16.msra.mxu0 0
        %1080 = vmatpush.bf16.msra.mxu0 %v1059
        %1081 = vmatpush.bf16.msra.mxu0 %v1058
        %1082 = vmatmul.bf16.gmra.mxu0 %v1072
        %v1083 = vpop.f32.mrf.mxu0
        %v1084 = vadd.f32 %v1069, %v1083
        %v1085 = vpop.f32.mrf.mxu0
        %v1086 = vadd.f32 %v1069, %v1085
        %1087 = vdwg.mxu0
        %v1088 = vmul.f32 %v1084, %v1084
        %v1089 = vmul.f32 %v1086, %v1086
        %v1090 = vmul.f32 %v1084, %v1088
        %v1091 = vmul.f32 %v1086, %v1089
        %v1092 = vmul.f32 %v1090, 0.044715
        %v1093 = vmul.f32 %v1091, 0.044715
        %v1094 = vadd.f32 %v1084, %v1092
        %v1095 = vadd.f32 %v1086, %v1093
        %v1096 = vmul.f32 %v1094, 0.7978846
        %v1097 = vmul.f32 %v1095, 0.7978846
        %v1098 = vtanh.pop %v1096
        %v1099 = vtanh.pop %v1097
        %v1100 = vadd.f32 %v1098, 1.0
        %v1101 = vadd.f32 %v1099, 1.0
        %v1102 = vmul.f32 %v1100, 0.5
        %v1103 = vmul.f32 %v1101, 0.5
        %v1104 = vmul.f32 %v1084, %v1102
        %v1105 = vmul.f32 %v1086, %v1103
        %v1106 = vpack.c.bf16 %v1105, %v1104
        %v1111 = vunpack.c.l.b16 %v328
        %v1112 = vunpack.c.l.b16 %v330
        %v1113 = vunpack.c.l.b16 %v332
        %v1114 = vunpack.c.l.b16 %v334
        %v1115 = vpack.c.b16 %v1112, %v1111
        %v1116 = vpack.c.b16 %v1114, %v1113
        %1119 = vmatpush.bf16.xpose.msra.mxu0 0
        %1120 = vmatpush.bf16.xpose.msra.mxu0 0
        %1121 = vmatpush.bf16.xpose.msra.mxu0 0
        %1122 = vmatpush.bf16.xpose.msra.mxu0 0
        %1123 = vmatpush.bf16.xpose.msra.mxu0 0
        %1124 = vmatpush.bf16.xpose.msra.mxu0 0
        %1125 = vmatpush.bf16.xpose.msra.mxu0 %v1116
        %1126 = vmatpush.bf16.xpose.msra.mxu0 %v1115
        %1127 = vmatmul.bf16.gmra.mxu0 %v1106
        %v1128 = vpop.f32.mrf.mxu0
        %v1129 = vadd.f32 0.0, %v1128
        %v1130 = vpop.f32.mrf.mxu0
        %v1131 = vadd.f32 0.0, %v1130
        %1132 = vdwg.mxu0
        %v1133 = vadd.f32 %v986, %v1129
        %v1134 = vadd.f32 %v987, %v1131
        %v1135 = vperm.slane %v323, 0
        %v1136 = vadd.f32 %v1133, %v1135
        %v1137 = vadd.f32 %v1134, %v1135
        %s1138 = sadd.s32 12, %s324
        %s1139 = smul.addr %s1138, 4
        %s1140 = scalar_lea.vmem [#allocation5], %s1139
        %v1141 = vld [vmem:[%s1140] sm:$0xff]
        %v1142 = vld [vmem:[%s1140 + $0x8] sm:$0xf]
        %v1143 = vld [vmem:[%s1140 + $0xc] sm:$0xff]
        %v1144 = vld [vmem:[%s1140 + $0x14] sm:$0xf]
        %v1145 = vld [vmem:[%s1140 + $0x18] sm:$0xff]
        %v1146 = vld [vmem:[%s1140 + $0x20] sm:$0xf]
        %v1147 = vld [vmem:[%s1140 + $0x24] sm:$0xff]
        %v1148 = vld [vmem:[%s1140 + $0x2c] sm:$0xf]
        %v1149 = vsel %vm250, %v1136, 0.0
        %1150 = vadd.xlane.f32.xlu0 %v1149
        %v1151 = vpop.xlane.xlu0 %1150
        %v1152 = vsel %vm250, %v1137, 0.0
        %1153 = vadd.xlane.f32.xlu0 %v1152
        %v1154 = vpop.xlane.xlu0 %1153
        %v1155 = vmul.f32 %v1151, %v347
        %v1156 = vmul.f32 %v1154, %v347
        %v1157 = vsub.f32 %v1136, %v1155
        %v1158 = vsub.f32 %v1137, %v1156
        %v1159 = vmul.f32 %v1157, %v1157
        %v1160 = vmul.f32 %v1158, %v1158
        %v1161 = vsel %vm250, %v1159, 0.0
        %1162 = vadd.xlane.f32.xlu0 %v1161
        %v1163 = vpop.xlane.xlu0 %1162
        %v1164 = vsel %vm250, %v1160, 0.0
        %1165 = vadd.xlane.f32.xlu0 %v1164
        %v1166 = vpop.xlane.xlu0 %1165
        %v1167 = vmul.f32 %v1163, %v347
        %v1168 = vmul.f32 %v1166, %v347
        %v1169 = vadd.f32 %v1167, 1e-05
        %v1170 = vadd.f32 %v1168, 1e-05
        %v1171 = vrsqrt.pop %v1169
        %v1172 = vmul.f32 %v1171, %v1169
        %v1173 = vmul.f32 %v1172, %v1171
        %v1174 = vmul.f32 0.5, %v1173
        %v1175 = vsub.f32 1.5, %v1174
        %v1176 = vmul.f32 %v1171, %v1175
        %vm1177 = vweird.f32 %v1169
        %vm1178 = vweird.f32 %v1171
        %vm1179 = vmor %vm1177, %vm1178
        %v1180 = vsel %vm1179, %v1171, %v1176
        %v1181 = vrsqrt.pop %v1170
        %v1182 = vmul.f32 %v1181, %v1170
        %v1183 = vmul.f32 %v1182, %v1181
        %v1184 = vmul.f32 0.5, %v1183
        %v1185 = vsub.f32 1.5, %v1184
        %v1186 = vmul.f32 %v1181, %v1185
        %vm1187 = vweird.f32 %v1170
        %vm1188 = vweird.f32 %v1181
        %vm1189 = vmor %vm1187, %vm1188
        %v1190 = vsel %vm1189, %v1181, %v1186
        %v1191 = vmul.f32 %v1157, %v1180
        %v1192 = vmul.f32 %v1158, %v1190
        %v1193 = vperm.slane %v387, 1
        %v1194 = vmul.f32 %v1191, %v1193
        %v1195 = vmul.f32 %v1192, %v1193
        %v1196 = vperm.slane %v394, 1
        %v1197 = vadd.f32 %v1194, %v1196
        %v1198 = vadd.f32 %v1195, %v1196
        %v1199 = vpack.c.bf16 %v1198, %v1197
        %v1200 = vperm.slane %v322, 1
        %v1205 = vunpack.c.l.b16 %v1141
        %v1206 = vunpack.c.l.b16 %v1143
        %v1207 = vunpack.c.l.b16 %v1145
        %v1208 = vunpack.c.l.b16 %v1147
        %v1209 = vpack.c.b16 %v1206, %v1205
        %v1210 = vpack.c.b16 %v1208, %v1207
        %v1214 = vsel %vm250, %v1199, 0
        %1216 = vmatpush.bf16.msra.mxu0 0
        %1217 = vmatpush.bf16.msra.mxu0 0
        %1218 = vmatpush.bf16.msra.mxu0 0
        %1219 = vmatpush.bf16.msra.mxu0 0
        %1220 = vmatpush.bf16.msra.mxu0 0
        %1221 = vmatpush.bf16.msra.mxu0 0
        %1222 = vmatpush.bf16.msra.mxu0 %v1210
        %1223 = vmatpush.bf16.msra.mxu0 %v1209
        %1224 = vmatmul.bf16.gmra.mxu0 %v1214
        %v1225 = vpop.f32.mrf.mxu0
        %v1226 = vadd.f32 %v1200, %v1225
        %v1227 = vpop.f32.mrf.mxu0
        %v1228 = vadd.f32 %v1200, %v1227
        %1229 = vdwg.mxu0
        %1232 = vrot.lane.b32.xlu0 %v1226, 120
        %v1233 = vpop.permute.xlu0 %1232
        %1234 = vrot.lane.b32.xlu0 %v1228, 120
        %v1235 = vpop.permute.xlu0 %1234
        %1238 = vrot.lane.b32.xlu0 %v1226, 112
        %v1239 = vpop.permute.xlu0 %1238
        %1240 = vrot.lane.b32.xlu0 %v1228, 112
        %v1241 = vpop.permute.xlu0 %1240
        %1244 = vrot.lane.b32.xlu0 %v1226, 104
        %v1245 = vpop.permute.xlu0 %1244
        %1246 = vrot.lane.b32.xlu0 %v1228, 104
        %v1247 = vpop.permute.xlu0 %1246
        %v1250 = vpack.c.bf16 %v1226, %v1226
        %v1251 = vpack.c.bf16 %v1228, %v1228
        %v1252 = vpack.c.bf16 %v1233, %v1233
        %v1253 = vpack.c.bf16 %v1235, %v1235
        %v1254 = vpack.c.bf16 %v1239, %v1239
        %v1255 = vpack.c.bf16 %v1241, %v1241
        %v1256 = vpack.c.bf16 %v1245, %v1245
        %v1257 = vpack.c.bf16 %v1247, %v1247
        %v1259 = vunpack.c.l.b16 %v1250
        %v1260 = vpack.c.b16 %v1259, %v1259
        %1261 = vrot.lane.b32.xlu0 %v1260, 96
        %v1262 = vpop.permute.xlu0 %1261
        %v1264 = vsel %vm463, %v1250, 0
        %v1267 = vsel %vm463, %v1262, 0
        %1269 = vmatpush.bf16.xpose.msra.mxu0 0
        %1270 = vmatpush.bf16.xpose.msra.mxu0 0
        %1271 = vmatpush.bf16.xpose.msra.mxu0 0
        %1272 = vmatpush.bf16.xpose.msra.mxu0 0
        %1273 = vmatpush.bf16.xpose.msra.mxu0 0
        %1274 = vmatpush.bf16.xpose.msra.mxu0 0
        %1275 = vmatpush.bf16.xpose.msra.mxu0 0
        %1276 = vmatpush.bf16.xpose.msra.mxu0 %v1267
        %1277 = vmatmul.bf16.gmra.mxu0 %v1264
        %v1278 = vpop.f32.mrf.mxu0
        %v1279 = vadd.f32 0.0, %v1278
        %v1280 = vpop.f32.mrf.mxu0
        %1281 = vdwg.mxu0
        %v1283 = vunpack.c.l.b16 %v1251
        %v1284 = vpack.c.b16 %v1283, %v1283
        %1285 = vrot.lane.b32.xlu0 %v1284, 96
        %v1286 = vpop.permute.xlu0 %1285
        %v1288 = vsel %vm463, %v1251, 0
        %v1291 = vsel %vm463, %v1286, 0
        %1293 = vmatpush.bf16.xpose.msra.mxu0 0
        %1294 = vmatpush.bf16.xpose.msra.mxu0 0
        %1295 = vmatpush.bf16.xpose.msra.mxu0 0
        %1296 = vmatpush.bf16.xpose.msra.mxu0 0
        %1297 = vmatpush.bf16.xpose.msra.mxu0 0
        %1298 = vmatpush.bf16.xpose.msra.mxu0 0
        %1299 = vmatpush.bf16.xpose.msra.mxu0 0
        %1300 = vmatpush.bf16.xpose.msra.mxu0 %v1291
        %1301 = vmatmul.bf16.gmra.mxu0 %v1288
        %v1302 = vpop.f32.mrf.mxu0
        %v1303 = vadd.f32 0.0, %v1302
        %v1304 = vpop.f32.mrf.mxu0
        %1305 = vdwg.mxu0
        %v1307 = vunpack.c.l.b16 %v1252
        %v1308 = vpack.c.b16 %v1307, %v1307
        %1309 = vrot.lane.b32.xlu0 %v1308, 96
        %v1310 = vpop.permute.xlu0 %1309
        %v1312 = vsel %vm463, %v1252, 0
        %v1315 = vsel %vm463, %v1310, 0
        %1317 = vmatpush.bf16.xpose.msra.mxu0 0
        %1318 = vmatpush.bf16.xpose.msra.mxu0 0
        %1319 = vmatpush.bf16.xpose.msra.mxu0 0
        %1320 = vmatpush.bf16.xpose.msra.mxu0 0
        %1321 = vmatpush.bf16.xpose.msra.mxu0 0
        %1322 = vmatpush.bf16.xpose.msra.mxu0 0
        %1323 = vmatpush.bf16.xpose.msra.mxu0 0
        %1324 = vmatpush.bf16.xpose.msra.mxu0 %v1315
        %1325 = vmatmul.bf16.gmra.mxu0 %v1312
        %v1326 = vpop.f32.mrf.mxu0
        %v1327 = vadd.f32 0.0, %v1326
        %v1328 = vpop.f32.mrf.mxu0
        %1329 = vdwg.mxu0
        %v1331 = vunpack.c.l.b16 %v1253
        %v1332 = vpack.c.b16 %v1331, %v1331
        %1333 = vrot.lane.b32.xlu0 %v1332, 96
        %v1334 = vpop.permute.xlu0 %1333
        %v1336 = vsel %vm463, %v1253, 0
        %v1339 = vsel %vm463, %v1334, 0
        %1341 = vmatpush.bf16.xpose.msra.mxu0 0
        %1342 = vmatpush.bf16.xpose.msra.mxu0 0
        %1343 = vmatpush.bf16.xpose.msra.mxu0 0
        %1344 = vmatpush.bf16.xpose.msra.mxu0 0
        %1345 = vmatpush.bf16.xpose.msra.mxu0 0
        %1346 = vmatpush.bf16.xpose.msra.mxu0 0
        %1347 = vmatpush.bf16.xpose.msra.mxu0 0
        %1348 = vmatpush.bf16.xpose.msra.mxu0 %v1339
        %1349 = vmatmul.bf16.gmra.mxu0 %v1336
        %v1350 = vpop.f32.mrf.mxu0
        %v1351 = vadd.f32 0.0, %v1350
        %v1352 = vpop.f32.mrf.mxu0
        %1353 = vdwg.mxu0
        %v1355 = vunpack.c.l.b16 %v1254
        %v1356 = vpack.c.b16 %v1355, %v1355
        %1357 = vrot.lane.b32.xlu0 %v1356, 96
        %v1358 = vpop.permute.xlu0 %1357
        %v1360 = vsel %vm463, %v1254, 0
        %v1363 = vsel %vm463, %v1358, 0
        %1365 = vmatpush.bf16.xpose.msra.mxu0 0
        %1366 = vmatpush.bf16.xpose.msra.mxu0 0
        %1367 = vmatpush.bf16.xpose.msra.mxu0 0
        %1368 = vmatpush.bf16.xpose.msra.mxu0 0
        %1369 = vmatpush.bf16.xpose.msra.mxu0 0
        %1370 = vmatpush.bf16.xpose.msra.mxu0 0
        %1371 = vmatpush.bf16.xpose.msra.mxu0 0
        %1372 = vmatpush.bf16.xpose.msra.mxu0 %v1363
        %1373 = vmatmul.bf16.gmra.mxu0 %v1360
        %v1374 = vpop.f32.mrf.mxu0
        %v1375 = vadd.f32 0.0, %v1374
        %v1376 = vpop.f32.mrf.mxu0
        %1377 = vdwg.mxu0
        %v1379 = vunpack.c.l.b16 %v1255
        %v1380 = vpack.c.b16 %v1379, %v1379
        %1381 = vrot.lane.b32.xlu0 %v1380, 96
        %v1382 = vpop.permute.xlu0 %1381
        %v1384 = vsel %vm463, %v1255, 0
        %v1387 = vsel %vm463, %v1382, 0
        %1389 = vmatpush.bf16.xpose.msra.mxu0 0
        %1390 = vmatpush.bf16.xpose.msra.mxu0 0
        %1391 = vmatpush.bf16.xpose.msra.mxu0 0
        %1392 = vmatpush.bf16.xpose.msra.mxu0 0
        %1393 = vmatpush.bf16.xpose.msra.mxu0 0
        %1394 = vmatpush.bf16.xpose.msra.mxu0 0
        %1395 = vmatpush.bf16.xpose.msra.mxu0 0
        %1396 = vmatpush.bf16.xpose.msra.mxu0 %v1387
        %1397 = vmatmul.bf16.gmra.mxu0 %v1384
        %v1398 = vpop.f32.mrf.mxu0
        %v1399 = vadd.f32 0.0, %v1398
        %v1400 = vpop.f32.mrf.mxu0
        %1401 = vdwg.mxu0
        %v1403 = vunpack.c.l.b16 %v1256
        %v1404 = vpack.c.b16 %v1403, %v1403
        %1405 = vrot.lane.b32.xlu0 %v1404, 96
        %v1406 = vpop.permute.xlu0 %1405
        %v1408 = vsel %vm463, %v1256, 0
        %v1411 = vsel %vm463, %v1406, 0
        %1413 = vmatpush.bf16.xpose.msra.mxu0 0
        %1414 = vmatpush.bf16.xpose.msra.mxu0 0
        %1415 = vmatpush.bf16.xpose.msra.mxu0 0
        %1416 = vmatpush.bf16.xpose.msra.mxu0 0
        %1417 = vmatpush.bf16.xpose.msra.mxu0 0
        %1418 = vmatpush.bf16.xpose.msra.mxu0 0
        %1419 = vmatpush.bf16.xpose.msra.mxu0 0
        %1420 = vmatpush.bf16.xpose.msra.mxu0 %v1411
        %1421 = vmatmul.bf16.gmra.mxu0 %v1408
        %v1422 = vpop.f32.mrf.mxu0
        %v1423 = vadd.f32 0.0, %v1422
        %v1424 = vpop.f32.mrf.mxu0
        %1425 = vdwg.mxu0
        %v1427 = vunpack.c.l.b16 %v1257
        %v1428 = vpack.c.b16 %v1427, %v1427
        %1429 = vrot.lane.b32.xlu0 %v1428, 96
        %v1430 = vpop.permute.xlu0 %1429
        %v1432 = vsel %vm463, %v1257, 0
        %v1435 = vsel %vm463, %v1430, 0
        %1437 = vmatpush.bf16.xpose.msra.mxu0 0
        %1438 = vmatpush.bf16.xpose.msra.mxu0 0
        %1439 = vmatpush.bf16.xpose.msra.mxu0 0
        %1440 = vmatpush.bf16.xpose.msra.mxu0 0
        %1441 = vmatpush.bf16.xpose.msra.mxu0 0
        %1442 = vmatpush.bf16.xpose.msra.mxu0 0
        %1443 = vmatpush.bf16.xpose.msra.mxu0 0
        %1444 = vmatpush.bf16.xpose.msra.mxu0 %v1435
        %1445 = vmatmul.bf16.gmra.mxu0 %v1432
        %v1446 = vpop.f32.mrf.mxu0
        %v1447 = vadd.f32 0.0, %v1446
        %v1448 = vpop.f32.mrf.mxu0
        %1449 = vdwg.mxu0
        %v1450 = vmul.f32 %v1279, 0.35355338
        %v1451 = vmul.f32 %v1303, 0.35355338
        %v1452 = vmul.f32 %v1327, 0.35355338
        %v1453 = vmul.f32 %v1351, 0.35355338
        %v1454 = vmul.f32 %v1375, 0.35355338
        %v1455 = vmul.f32 %v1399, 0.35355338
        %v1456 = vmul.f32 %v1423, 0.35355338
        %v1457 = vmul.f32 %v1447, 0.35355338
        %v1458 = vsel %vm463, %v1450, -inf
        %1459 = vmax.xlane.f32.xlu0 %v1458
        %v1460 = vpop.xlane.xlu0 %1459
        %v1461 = vsel %vm463, %v1451, -inf
        %1462 = vmax.xlane.f32.xlu0 %v1461
        %v1463 = vpop.xlane.xlu0 %1462
        %v1464 = vsel %vm463, %v1452, -inf
        %1465 = vmax.xlane.f32.xlu0 %v1464
        %v1466 = vpop.xlane.xlu0 %1465
        %v1467 = vsel %vm463, %v1453, -inf
        %1468 = vmax.xlane.f32.xlu0 %v1467
        %v1469 = vpop.xlane.xlu0 %1468
        %v1470 = vsel %vm463, %v1454, -inf
        %1471 = vmax.xlane.f32.xlu0 %v1470
        %v1472 = vpop.xlane.xlu0 %1471
        %v1473 = vsel %vm463, %v1455, -inf
        %1474 = vmax.xlane.f32.xlu0 %v1473
        %v1475 = vpop.xlane.xlu0 %1474
        %v1476 = vsel %vm463, %v1456, -inf
        %1477 = vmax.xlane.f32.xlu0 %v1476
        %v1478 = vpop.xlane.xlu0 %1477
        %v1479 = vsel %vm463, %v1457, -inf
        %1480 = vmax.xlane.f32.xlu0 %v1479
        %v1481 = vpop.xlane.xlu0 %1480
        %v1482 = vsub.f32 %v1450, %v1460
        %v1483 = vsub.f32 %v1451, %v1463
        %v1484 = vsub.f32 %v1452, %v1466
        %v1485 = vsub.f32 %v1453, %v1469
        %v1486 = vsub.f32 %v1454, %v1472
        %v1487 = vsub.f32 %v1455, %v1475
        %v1488 = vsub.f32 %v1456, %v1478
        %v1489 = vsub.f32 %v1457, %v1481
        %v1490 = vmul.f32 %v1482, 1.442695
        %v1491 = vpow.pop %v1490
        %v1492 = vmul.f32 %v1483, 1.442695
        %v1493 = vpow.pop %v1492
        %v1494 = vmul.f32 %v1484, 1.442695
        %v1495 = vpow.pop %v1494
        %v1496 = vmul.f32 %v1485, 1.442695
        %v1497 = vpow.pop %v1496
        %v1498 = vmul.f32 %v1486, 1.442695
        %v1499 = vpow.pop %v1498
        %v1500 = vmul.f32 %v1487, 1.442695
        %v1501 = vpow.pop %v1500
        %v1502 = vmul.f32 %v1488, 1.442695
        %v1503 = vpow.pop %v1502
        %v1504 = vmul.f32 %v1489, 1.442695
        %v1505 = vpow.pop %v1504
        %v1506 = vsel %vm463, %v1491, 0.0
        %1507 = vadd.xlane.f32.xlu0 %v1506
        %v1508 = vpop.xlane.xlu0 %1507
        %v1509 = vsel %vm463, %v1493, 0.0
        %1510 = vadd.xlane.f32.xlu0 %v1509
        %v1511 = vpop.xlane.xlu0 %1510
        %v1512 = vsel %vm463, %v1495, 0.0
        %1513 = vadd.xlane.f32.xlu0 %v1512
        %v1514 = vpop.xlane.xlu0 %1513
        %v1515 = vsel %vm463, %v1497, 0.0
        %1516 = vadd.xlane.f32.xlu0 %v1515
        %v1517 = vpop.xlane.xlu0 %1516
        %v1518 = vsel %vm463, %v1499, 0.0
        %1519 = vadd.xlane.f32.xlu0 %v1518
        %v1520 = vpop.xlane.xlu0 %1519
        %v1521 = vsel %vm463, %v1501, 0.0
        %1522 = vadd.xlane.f32.xlu0 %v1521
        %v1523 = vpop.xlane.xlu0 %1522
        %v1524 = vsel %vm463, %v1503, 0.0
        %1525 = vadd.xlane.f32.xlu0 %v1524
        %v1526 = vpop.xlane.xlu0 %1525
        %v1527 = vsel %vm463, %v1505, 0.0
        %1528 = vadd.xlane.f32.xlu0 %v1527
        %v1529 = vpop.xlane.xlu0 %1528
        %v1530 = vrcp.pop %v1508
        %v1531 = vrcp.pop %v1511
        %v1532 = vrcp.pop %v1514
        %v1533 = vrcp.pop %v1517
        %v1534 = vrcp.pop %v1520
        %v1535 = vrcp.pop %v1523
        %v1536 = vrcp.pop %v1526
        %v1537 = vrcp.pop %v1529
        %v1538 = vmul.f32 %v1491, %v1530
        %v1539 = vmul.f32 %v1493, %v1531
        %v1540 = vmul.f32 %v1495, %v1532
        %v1541 = vmul.f32 %v1497, %v1533
        %v1542 = vmul.f32 %v1499, %v1534
        %v1543 = vmul.f32 %v1501, %v1535
        %v1544 = vmul.f32 %v1503, %v1536
        %v1545 = vmul.f32 %v1505, %v1537
        %v1546 = vpack.c.bf16 %v1538, %v1538
        %v1547 = vpack.c.bf16 %v1539, %v1539
        %v1548 = vpack.c.bf16 %v1540, %v1540
        %v1549 = vpack.c.bf16 %v1541, %v1541
        %v1550 = vpack.c.bf16 %v1542, %v1542
        %v1551 = vpack.c.bf16 %v1543, %v1543
        %v1552 = vpack.c.bf16 %v1544, %v1544
        %v1553 = vpack.c.bf16 %v1545, %v1545
        %1554 = vrot.lane.b32.xlu0 %v1260, 64
        %v1555 = vpop.permute.xlu0 %1554
        %v1557 = vsel %vm463, %v1546, 0
        %v1560 = vsel %vm760, %v1555, 0
        %1562 = vmatpush.bf16.msra.mxu0 0
        %1563 = vmatpush.bf16.msra.mxu0 0
        %1564 = vmatpush.bf16.msra.mxu0 0
        %1565 = vmatpush.bf16.msra.mxu0 0
        %1566 = vmatpush.bf16.msra.mxu0 0
        %1567 = vmatpush.bf16.msra.mxu0 0
        %1568 = vmatpush.bf16.msra.mxu0 0
        %1569 = vmatpush.bf16.msra.mxu0 %v1560
        %1570 = vmatmul.bf16.gmra.mxu0 %v1557
        %v1571 = vpop.f32.mrf.mxu0
        %v1572 = vadd.f32 0.0, %v1571
        %v1573 = vpop.f32.mrf.mxu0
        %1574 = vdwg.mxu0
        %1575 = vrot.lane.b32.xlu0 %v1284, 64
        %v1576 = vpop.permute.xlu0 %1575
        %v1578 = vsel %vm463, %v1547, 0
        %v1581 = vsel %vm760, %v1576, 0
        %1583 = vmatpush.bf16.msra.mxu0 0
        %1584 = vmatpush.bf16.msra.mxu0 0
        %1585 = vmatpush.bf16.msra.mxu0 0
        %1586 = vmatpush.bf16.msra.mxu0 0
        %1587 = vmatpush.bf16.msra.mxu0 0
        %1588 = vmatpush.bf16.msra.mxu0 0
        %1589 = vmatpush.bf16.msra.mxu0 0
        %1590 = vmatpush.bf16.msra.mxu0 %v1581
        %1591 = vmatmul.bf16.gmra.mxu0 %v1578
        %v1592 = vpop.f32.mrf.mxu0
        %v1593 = vadd.f32 0.0, %v1592
        %v1594 = vpop.f32.mrf.mxu0
        %1595 = vdwg.mxu0
        %1596 = vrot.lane.b32.xlu0 %v1308, 64
        %v1597 = vpop.permute.xlu0 %1596
        %v1599 = vsel %vm463, %v1548, 0
        %v1602 = vsel %vm760, %v1597, 0
        %1604 = vmatpush.bf16.msra.mxu0 0
        %1605 = vmatpush.bf16.msra.mxu0 0
        %1606 = vmatpush.bf16.msra.mxu0 0
        %1607 = vmatpush.bf16.msra.mxu0 0
        %1608 = vmatpush.bf16.msra.mxu0 0
        %1609 = vmatpush.bf16.msra.mxu0 0
        %1610 = vmatpush.bf16.msra.mxu0 0
        %1611 = vmatpush.bf16.msra.mxu0 %v1602
        %1612 = vmatmul.bf16.gmra.mxu0 %v1599
        %v1613 = vpop.f32.mrf.mxu0
        %v1614 = vadd.f32 0.0, %v1613
        %v1615 = vpop.f32.mrf.mxu0
        %1616 = vdwg.mxu0
        %1617 = vrot.lane.b32.xlu0 %v1332, 64
        %v1618 = vpop.permute.xlu0 %1617
        %v1620 = vsel %vm463, %v1549, 0
        %v1623 = vsel %vm760, %v1618, 0
        %1625 = vmatpush.bf16.msra.mxu0 0
        %1626 = vmatpush.bf16.msra.mxu0 0
        %1627 = vmatpush.bf16.msra.mxu0 0
        %1628 = vmatpush.bf16.msra.mxu0 0
        %1629 = vmatpush.bf16.msra.mxu0 0
        %1630 = vmatpush.bf16.msra.mxu0 0
        %1631 = vmatpush.bf16.msra.mxu0 0
        %1632 = vmatpush.bf16.msra.mxu0 %v1623
        %1633 = vmatmul.bf16.gmra.mxu0 %v1620
        %v1634 = vpop.f32.mrf.mxu0
        %v1635 = vadd.f32 0.0, %v1634
        %v1636 = vpop.f32.mrf.mxu0
        %1637 = vdwg.mxu0
        %1638 = vrot.lane.b32.xlu0 %v1356, 64
        %v1639 = vpop.permute.xlu0 %1638
        %v1641 = vsel %vm463, %v1550, 0
        %v1644 = vsel %vm760, %v1639, 0
        %1646 = vmatpush.bf16.msra.mxu0 0
        %1647 = vmatpush.bf16.msra.mxu0 0
        %1648 = vmatpush.bf16.msra.mxu0 0
        %1649 = vmatpush.bf16.msra.mxu0 0
        %1650 = vmatpush.bf16.msra.mxu0 0
        %1651 = vmatpush.bf16.msra.mxu0 0
        %1652 = vmatpush.bf16.msra.mxu0 0
        %1653 = vmatpush.bf16.msra.mxu0 %v1644
        %1654 = vmatmul.bf16.gmra.mxu0 %v1641
        %v1655 = vpop.f32.mrf.mxu0
        %v1656 = vadd.f32 0.0, %v1655
        %v1657 = vpop.f32.mrf.mxu0
        %1658 = vdwg.mxu0
        %1659 = vrot.lane.b32.xlu0 %v1380, 64
        %v1660 = vpop.permute.xlu0 %1659
        %v1662 = vsel %vm463, %v1551, 0
        %v1665 = vsel %vm760, %v1660, 0
        %1667 = vmatpush.bf16.msra.mxu0 0
        %1668 = vmatpush.bf16.msra.mxu0 0
        %1669 = vmatpush.bf16.msra.mxu0 0
        %1670 = vmatpush.bf16.msra.mxu0 0
        %1671 = vmatpush.bf16.msra.mxu0 0
        %1672 = vmatpush.bf16.msra.mxu0 0
        %1673 = vmatpush.bf16.msra.mxu0 0
        %1674 = vmatpush.bf16.msra.mxu0 %v1665
        %1675 = vmatmul.bf16.gmra.mxu0 %v1662
        %v1676 = vpop.f32.mrf.mxu0
        %v1677 = vadd.f32 0.0, %v1676
        %v1678 = vpop.f32.mrf.mxu0
        %1679 = vdwg.mxu0
        %1680 = vrot.lane.b32.xlu0 %v1404, 64
        %v1681 = vpop.permute.xlu0 %1680
        %v1683 = vsel %vm463, %v1552, 0
        %v1686 = vsel %vm760, %v1681, 0
        %1688 = vmatpush.bf16.msra.mxu0 0
        %1689 = vmatpush.bf16.msra.mxu0 0
        %1690 = vmatpush.bf16.msra.mxu0 0
        %1691 = vmatpush.bf16.msra.mxu0 0
        %1692 = vmatpush.bf16.msra.mxu0 0
        %1693 = vmatpush.bf16.msra.mxu0 0
        %1694 = vmatpush.bf16.msra.mxu0 0
        %1695 = vmatpush.bf16.msra.mxu0 %v1686
        %1696 = vmatmul.bf16.gmra.mxu0 %v1683
        %v1697 = vpop.f32.mrf.mxu0
        %v1698 = vadd.f32 0.0, %v1697
        %v1699 = vpop.f32.mrf.mxu0
        %1700 = vdwg.mxu0
        %1701 = vrot.lane.b32.xlu0 %v1428, 64
        %v1702 = vpop.permute.xlu0 %1701
        %v1704 = vsel %vm463, %v1553, 0
        %v1707 = vsel %vm760, %v1702, 0
        %1709 = vmatpush.bf16.msra.mxu0 0
        %1710 = vmatpush.bf16.msra.mxu0 0
        %1711 = vmatpush.bf16.msra.mxu0 0
        %1712 = vmatpush.bf16.msra.mxu0 0
        %1713 = vmatpush.bf16.msra.mxu0 0
        %1714 = vmatpush.bf16.msra.mxu0 0
        %1715 = vmatpush.bf16.msra.mxu0 0
        %1716 = vmatpush.bf16.msra.mxu0 %v1707
        %1717 = vmatmul.bf16.gmra.mxu0 %v1704
        %v1718 = vpop.f32.mrf.mxu0
        %v1719 = vadd.f32 0.0, %v1718
        %v1720 = vpop.f32.mrf.mxu0
        %1721 = vdwg.mxu0
        %1724 = vrot.lane.b32.xlu0 %v1614, 8
        %v1725 = vpop.permute.xlu0 %1724
        %1726 = vrot.lane.b32.xlu0 %v1635, 8
        %v1727 = vpop.permute.xlu0 %1726
        %1732 = vrot.lane.b32.xlu0 %v1656, 16
        %v1733 = vpop.permute.xlu0 %1732
        %1734 = vrot.lane.b32.xlu0 %v1677, 16
        %v1735 = vpop.permute.xlu0 %1734
        %1740 = vrot.lane.b32.xlu0 %v1698, 24
        %v1741 = vpop.permute.xlu0 %1740
        %1742 = vrot.lane.b32.xlu0 %v1719, 24
        %v1743 = vpop.permute.xlu0 %1742
        %v1746 = vsel %vm463, %v1572, %v1725
        %v1747 = vsel %vm463, %v1593, %v1727
        %v1748 = vsel %vm950, %v1746, %v1733
        %v1749 = vsel %vm950, %v1747, %v1735
        %v1750 = vsel %vm953, %v1748, %v1741
        %v1751 = vsel %vm953, %v1749, %v1743
        %v1752 = vpack.c.bf16 %v1751, %v1750
        %1753 = vrot.lane.b32.xlu0 %v1209, 32
        %v1754 = vpop.permute.xlu0 %1753
        %1755 = vrot.lane.b32.xlu0 %v1210, 32
        %v1756 = vpop.permute.xlu0 %1755
        %v1760 = vsel %vm250, %v1752, 0
        %1762 = vmatpush.bf16.msra.mxu0 0
        %1763 = vmatpush.bf16.msra.mxu0 0
        %1764 = vmatpush.bf16.msra.mxu0 0
        %1765 = vmatpush.bf16.msra.mxu0 0
        %1766 = vmatpush.bf16.msra.mxu0 0
        %1767 = vmatpush.bf16.msra.mxu0 0
        %1768 = vmatpush.bf16.msra.mxu0 %v1756
        %1769 = vmatpush.bf16.msra.mxu0 %v1754
        %1770 = vmatmul.bf16.gmra.mxu0 %v1760
        %v1771 = vpop.f32.mrf.mxu0
        %v1772 = vadd.f32 0.0, %v1771
        %v1773 = vpop.f32.mrf.mxu0
        %v1774 = vadd.f32 0.0, %v1773
        %1775 = vdwg.mxu0
        %v1776 = vadd.f32 %v1136, %v1772
        %v1777 = vadd.f32 %v1137, %v1774
        %1779 = vrot.lane.b32.xlu0 %v1200, 32
        %v1780 = vpop.permute.xlu0 %1779
        %v1782 = vadd.f32 %v1776, %v1780
        %v1783 = vadd.f32 %v1777, %v1780
        %v1784 = vsel %vm250, %v1782, 0.0
        %1785 = vadd.xlane.f32.xlu0 %v1784
        %v1786 = vpop.xlane.xlu0 %1785
        %v1787 = vsel %vm250, %v1783, 0.0
        %1788 = vadd.xlane.f32.xlu0 %v1787
        %v1789 = vpop.xlane.xlu0 %1788
        %v1790 = vmul.f32 %v1786, %v347
        %v1791 = vmul.f32 %v1789, %v347
        %v1792 = vsub.f32 %v1782, %v1790
        %v1793 = vsub.f32 %v1783, %v1791
        %v1794 = vmul.f32 %v1792, %v1792
        %v1795 = vmul.f32 %v1793, %v1793
        %v1796 = vsel %vm250, %v1794, 0.0
        %1797 = vadd.xlane.f32.xlu0 %v1796
        %v1798 = vpop.xlane.xlu0 %1797
        %v1799 = vsel %vm250, %v1795, 0.0
        %1800 = vadd.xlane.f32.xlu0 %v1799
        %v1801 = vpop.xlane.xlu0 %1800
        %v1802 = vmul.f32 %v1798, %v347
        %v1803 = vmul.f32 %v1801, %v347
        %v1804 = vadd.f32 %v1802, 1e-05
        %v1805 = vadd.f32 %v1803, 1e-05
        %v1806 = vrsqrt.pop %v1804
        %v1807 = vmul.f32 %v1806, %v1804
        %v1808 = vmul.f32 %v1807, %v1806
        %v1809 = vmul.f32 0.5, %v1808
        %v1810 = vsub.f32 1.5, %v1809
        %v1811 = vmul.f32 %v1806, %v1810
        %vm1812 = vweird.f32 %v1804
        %vm1813 = vweird.f32 %v1806
        %vm1814 = vmor %vm1812, %vm1813
        %v1815 = vsel %vm1814, %v1806, %v1811
        %v1816 = vrsqrt.pop %v1805
        %v1817 = vmul.f32 %v1816, %v1805
        %v1818 = vmul.f32 %v1817, %v1816
        %v1819 = vmul.f32 0.5, %v1818
        %v1820 = vsub.f32 1.5, %v1819
        %v1821 = vmul.f32 %v1816, %v1820
        %vm1822 = vweird.f32 %v1805
        %vm1823 = vweird.f32 %v1816
        %vm1824 = vmor %vm1822, %vm1823
        %v1825 = vsel %vm1824, %v1816, %v1821
        %v1826 = vmul.f32 %v1792, %v1815
        %v1827 = vmul.f32 %v1793, %v1825
        %v1828 = vperm.slane %v1034, 1
        %v1829 = vmul.f32 %v1826, %v1828
        %v1830 = vmul.f32 %v1827, %v1828
        %v1831 = vperm.slane %v1041, 1
        %v1832 = vadd.f32 %v1829, %v1831
        %v1833 = vadd.f32 %v1830, %v1831
        %v1834 = vpack.c.bf16 %v1833, %v1832
        %v1835 = vperm.slane %v323, 1
        %v1836 = vperm.slane %v323, 5
        %v1839 = vperm.slane %v1835, 1
        %v1840 = vperm.slane %v1836, 1
        %v1841 = vunpack.c.h.b16 %v1141
        %v1842 = vunpack.c.h.b16 %v1143
        %v1843 = vunpack.c.h.b16 %v1145
        %v1844 = vunpack.c.h.b16 %v1147
        %v1845 = vpack.c.b16 %v1842, %v1841
        %v1846 = vpack.c.b16 %v1844, %v1843
        %1851 = vrot.lane.b32.xlu0 %v1839, 96
        %v1852 = vpop.permute.xlu0 %1851
        %1853 = vrot.lane.b32.xlu0 %v1840, 96
        %v1854 = vpop.permute.xlu0 %1853
        %v1855 = vsel %vm1068, %v1852, %v1854
        %v1858 = vsel %vm250, %v1834, 0
        %1860 = vmatpush.bf16.msra.mxu0 0
        %1861 = vmatpush.bf16.msra.mxu0 0
        %1862 = vmatpush.bf16.msra.mxu0 0
        %1863 = vmatpush.bf16.msra.mxu0 0
        %1864 = vmatpush.bf16.msra.mxu0 0
        %1865 = vmatpush.bf16.msra.mxu0 0
        %1866 = vmatpush.bf16.msra.mxu0 %v1846
        %1867 = vmatpush.bf16.msra.mxu0 %v1845
        %1868 = vmatmul.bf16.gmra.mxu0 %v1858
        %v1869 = vpop.f32.mrf.mxu0
        %v1870 = vadd.f32 %v1855, %v1869
        %v1871 = vpop.f32.mrf.mxu0
        %v1872 = vadd.f32 %v1855, %v1871
        %1873 = vdwg.mxu0
        %v1874 = vmul.f32 %v1870, %v1870
        %v1875 = vmul.f32 %v1872, %v1872
        %v1876 = vmul.f32 %v1870, %v1874
        %v1877 = vmul.f32 %v1872, %v1875
        %v1878 = vmul.f32 %v1876, 0.044715
        %v1879 = vmul.f32 %v1877, 0.044715
        %v1880 = vadd.f32 %v1870, %v1878
        %v1881 = vadd.f32 %v1872, %v1879
        %v1882 = vmul.f32 %v1880, 0.7978846
        %v1883 = vmul.f32 %v1881, 0.7978846
        %v1884 = vtanh.pop %v1882
        %v1885 = vtanh.pop %v1883
        %v1886 = vadd.f32 %v1884, 1.0
        %v1887 = vadd.f32 %v1885, 1.0
        %v1888 = vmul.f32 %v1886, 0.5
        %v1889 = vmul.f32 %v1887, 0.5
        %v1890 = vmul.f32 %v1870, %v1888
        %v1891 = vmul.f32 %v1872, %v1889
        %v1892 = vpack.c.bf16 %v1891, %v1890
        %v1897 = vunpack.c.l.b16 %v1142
        %v1898 = vunpack.c.l.b16 %v1144
        %v1899 = vunpack.c.l.b16 %v1146
        %v1900 = vunpack.c.l.b16 %v1148
        %v1901 = vpack.c.b16 %v1898, %v1897
        %v1902 = vpack.c.b16 %v1900, %v1899
        %1905 = vmatpush.bf16.xpose.msra.mxu0 0
        %1906 = vmatpush.bf16.xpose.msra.mxu0 0
        %1907 = vmatpush.bf16.xpose.msra.mxu0 0
        %1908 = vmatpush.bf16.xpose.msra.mxu0 0
        %1909 = vmatpush.bf16.xpose.msra.mxu0 0
        %1910 = vmatpush.bf16.xpose.msra.mxu0 0
        %1911 = vmatpush.bf16.xpose.msra.mxu0 %v1902
        %1912 = vmatpush.bf16.xpose.msra.mxu0 %v1901
        %1913 = vmatmul.bf16.gmra.mxu0 %v1892
        %v1914 = vpop.f32.mrf.mxu0
        %v1915 = vadd.f32 0.0, %v1914
        %v1916 = vpop.f32.mrf.mxu0
        %v1917 = vadd.f32 0.0, %v1916
        %1918 = vdwg.mxu0
        %v1919 = vadd.f32 %v1782, %v1915
        %v1920 = vadd.f32 %v1783, %v1917
        %v1921 = vperm.slane %v323, 1
        %v1922 = vadd.f32 %v1919, %v1921
        %v1923 = vadd.f32 %v1920, %v1921
        %s1924 = sadd.s32 24, %s324
        %s1925 = smul.addr %s1924, 4
        %s1926 = scalar_lea.vmem [#allocation5], %s1925
        %v1927 = vld [vmem:[%s1926] sm:$0xff]
        %v1928 = vld [vmem:[%s1926 + $0x8] sm:$0xf]
        %v1929 = vld [vmem:[%s1926 + $0xc] sm:$0xff]
        %v1930 = vld [vmem:[%s1926 + $0x14] sm:$0xf]
        %v1931 = vld [vmem:[%s1926 + $0x18] sm:$0xff]
        %v1932 = vld [vmem:[%s1926 + $0x20] sm:$0xf]
        %v1933 = vld [vmem:[%s1926 + $0x24] sm:$0xff]
        %v1934 = vld [vmem:[%s1926 + $0x2c] sm:$0xf]
        %v1935 = vsel %vm250, %v1922, 0.0
        %1936 = vadd.xlane.f32.xlu0 %v1935
        %v1937 = vpop.xlane.xlu0 %1936
        %v1938 = vsel %vm250, %v1923, 0.0
        %1939 = vadd.xlane.f32.xlu0 %v1938
        %v1940 = vpop.xlane.xlu0 %1939
        %v1941 = vmul.f32 %v1937, %v347
        %v1942 = vmul.f32 %v1940, %v347
        %v1943 = vsub.f32 %v1922, %v1941
        %v1944 = vsub.f32 %v1923, %v1942
        %v1945 = vmul.f32 %v1943, %v1943
        %v1946 = vmul.f32 %v1944, %v1944
        %v1947 = vsel %vm250, %v1945, 0.0
        %1948 = vadd.xlane.f32.xlu0 %v1947
        %v1949 = vpop.xlane.xlu0 %1948
        %v1950 = vsel %vm250, %v1946, 0.0
        %1951 = vadd.xlane.f32.xlu0 %v1950
        %v1952 = vpop.xlane.xlu0 %1951
        %v1953 = vmul.f32 %v1949, %v347
        %v1954 = vmul.f32 %v1952, %v347
        %v1955 = vadd.f32 %v1953, 1e-05
        %v1956 = vadd.f32 %v1954, 1e-05
        %v1957 = vrsqrt.pop %v1955
        %v1958 = vmul.f32 %v1957, %v1955
        %v1959 = vmul.f32 %v1958, %v1957
        %v1960 = vmul.f32 0.5, %v1959
        %v1961 = vsub.f32 1.5, %v1960
        %v1962 = vmul.f32 %v1957, %v1961
        %vm1963 = vweird.f32 %v1955
        %vm1964 = vweird.f32 %v1957
        %vm1965 = vmor %vm1963, %vm1964
        %v1966 = vsel %vm1965, %v1957, %v1962
        %v1967 = vrsqrt.pop %v1956
        %v1968 = vmul.f32 %v1967, %v1956
        %v1969 = vmul.f32 %v1968, %v1967
        %v1970 = vmul.f32 0.5, %v1969
        %v1971 = vsub.f32 1.5, %v1970
        %v1972 = vmul.f32 %v1967, %v1971
        %vm1973 = vweird.f32 %v1956
        %vm1974 = vweird.f32 %v1967
        %vm1975 = vmor %vm1973, %vm1974
        %v1976 = vsel %vm1975, %v1967, %v1972
        %v1977 = vmul.f32 %v1943, %v1966
        %v1978 = vmul.f32 %v1944, %v1976
        %v1979 = vperm.slane %v387, 2
        %v1980 = vmul.f32 %v1977, %v1979
        %v1981 = vmul.f32 %v1978, %v1979
        %v1982 = vperm.slane %v394, 2
        %v1983 = vadd.f32 %v1980, %v1982
        %v1984 = vadd.f32 %v1981, %v1982
        %v1985 = vpack.c.bf16 %v1984, %v1983
        %v1986 = vperm.slane %v322, 2
        %v1991 = vunpack.c.l.b16 %v1927
        %v1992 = vunpack.c.l.b16 %v1929
        %v1993 = vunpack.c.l.b16 %v1931
        %v1994 = vunpack.c.l.b16 %v1933
        %v1995 = vpack.c.b16 %v1992, %v1991
        %v1996 = vpack.c.b16 %v1994, %v1993
        %v2000 = vsel %vm250, %v1985, 0
        %2002 = vmatpush.bf16.msra.mxu0 0
        %2003 = vmatpush.bf16.msra.mxu0 0
        %2004 = vmatpush.bf16.msra.mxu0 0
        %2005 = vmatpush.bf16.msra.mxu0 0
        %2006 = vmatpush.bf16.msra.mxu0 0
        %2007 = vmatpush.bf16.msra.mxu0 0
        %2008 = vmatpush.bf16.msra.mxu0 %v1996
        %2009 = vmatpush.bf16.msra.mxu0 %v1995
        %2010 = vmatmul.bf16.gmra.mxu0 %v2000
        %v2011 = vpop.f32.mrf.mxu0
        %v2012 = vadd.f32 %v1986, %v2011
        %v2013 = vpop.f32.mrf.mxu0
        %v2014 = vadd.f32 %v1986, %v2013
        %2015 = vdwg.mxu0
        %2018 = vrot.lane.b32.xlu0 %v2012, 120
        %v2019 = vpop.permute.xlu0 %2018
        %2020 = vrot.lane.b32.xlu0 %v2014, 120
        %v2021 = vpop.permute.xlu0 %2020
        %2024 = vrot.lane.b32.xlu0 %v2012, 112
        %v2025 = vpop.permute.xlu0 %2024
        %2026 = vrot.lane.b32.xlu0 %v2014, 112
        %v2027 = vpop.permute.xlu0 %2026
        %2030 = vrot.lane.b32.xlu0 %v2012, 104
        %v2031 = vpop.permute.xlu0 %2030
        %2032 = vrot.lane.b32.xlu0 %v2014, 104
        %v2033 = vpop.permute.xlu0 %2032
        %v2036 = vpack.c.bf16 %v2012, %v2012
        %v2037 = vpack.c.bf16 %v2014, %v2014
        %v2038 = vpack.c.bf16 %v2019, %v2019
        %v2039 = vpack.c.bf16 %v2021, %v2021
        %v2040 = vpack.c.bf16 %v2025, %v2025
        %v2041 = vpack.c.bf16 %v2027, %v2027
        %v2042 = vpack.c.bf16 %v2031, %v2031
        %v2043 = vpack.c.bf16 %v2033, %v2033
        %v2045 = vunpack.c.l.b16 %v2036
        %v2046 = vpack.c.b16 %v2045, %v2045
        %2047 = vrot.lane.b32.xlu0 %v2046, 96
        %v2048 = vpop.permute.xlu0 %2047
        %v2050 = vsel %vm463, %v2036, 0
        %v2053 = vsel %vm463, %v2048, 0
        %2055 = vmatpush.bf16.xpose.msra.mxu0 0
        %2056 = vmatpush.bf16.xpose.msra.mxu0 0
        %2057 = vmatpush.bf16.xpose.msra.mxu0 0
        %2058 = vmatpush.bf16.xpose.msra.mxu0 0
        %2059 = vmatpush.bf16.xpose.msra.mxu0 0
        %2060 = vmatpush.bf16.xpose.msra.mxu0 0
        %2061 = vmatpush.bf16.xpose.msra.mxu0 0
        %2062 = vmatpush.bf16.xpose.msra.mxu0 %v2053
        %2063 = vmatmul.bf16.gmra.mxu0 %v2050
        %v2064 = vpop.f32.mrf.mxu0
        %v2065 = vadd.f32 0.0, %v2064
        %v2066 = vpop.f32.mrf.mxu0
        %2067 = vdwg.mxu0
        %v2069 = vunpack.c.l.b16 %v2037
        %v2070 = vpack.c.b16 %v2069, %v2069
        %2071 = vrot.lane.b32.xlu0 %v2070, 96
        %v2072 = vpop.permute.xlu0 %2071
        %v2074 = vsel %vm463, %v2037, 0
        %v2077 = vsel %vm463, %v2072, 0
        %2079 = vmatpush.bf16.xpose.msra.mxu0 0
        %2080 = vmatpush.bf16.xpose.msra.mxu0 0
        %2081 = vmatpush.bf16.xpose.msra.mxu0 0
        %2082 = vmatpush.bf16.xpose.msra.mxu0 0
        %2083 = vmatpush.bf16.xpose.msra.mxu0 0
        %2084 = vmatpush.bf16.xpose.msra.mxu0 0
        %2085 = vmatpush.bf16.xpose.msra.mxu0 0
        %2086 = vmatpush.bf16.xpose.msra.mxu0 %v2077
        %2087 = vmatmul.bf16.gmra.mxu0 %v2074
        %v2088 = vpop.f32.mrf.mxu0
        %v2089 = vadd.f32 0.0, %v2088
        %v2090 = vpop.f32.mrf.mxu0
        %2091 = vdwg.mxu0
        %v2093 = vunpack.c.l.b16 %v2038
        %v2094 = vpack.c.b16 %v2093, %v2093
        %2095 = vrot.lane.b32.xlu0 %v2094, 96
        %v2096 = vpop.permute.xlu0 %2095
        %v2098 = vsel %vm463, %v2038, 0
        %v2101 = vsel %vm463, %v2096, 0
        %2103 = vmatpush.bf16.xpose.msra.mxu0 0
        %2104 = vmatpush.bf16.xpose.msra.mxu0 0
        %2105 = vmatpush.bf16.xpose.msra.mxu0 0
        %2106 = vmatpush.bf16.xpose.msra.mxu0 0
        %2107 = vmatpush.bf16.xpose.msra.mxu0 0
        %2108 = vmatpush.bf16.xpose.msra.mxu0 0
        %2109 = vmatpush.bf16.xpose.msra.mxu0 0
        %2110 = vmatpush.bf16.xpose.msra.mxu0 %v2101
        %2111 = vmatmul.bf16.gmra.mxu0 %v2098
        %v2112 = vpop.f32.mrf.mxu0
        %v2113 = vadd.f32 0.0, %v2112
        %v2114 = vpop.f32.mrf.mxu0
        %2115 = vdwg.mxu0
        %v2117 = vunpack.c.l.b16 %v2039
        %v2118 = vpack.c.b16 %v2117, %v2117
        %2119 = vrot.lane.b32.xlu0 %v2118, 96
        %v2120 = vpop.permute.xlu0 %2119
        %v2122 = vsel %vm463, %v2039, 0
        %v2125 = vsel %vm463, %v2120, 0
        %2127 = vmatpush.bf16.xpose.msra.mxu0 0
        %2128 = vmatpush.bf16.xpose.msra.mxu0 0
        %2129 = vmatpush.bf16.xpose.msra.mxu0 0
        %2130 = vmatpush.bf16.xpose.msra.mxu0 0
        %2131 = vmatpush.bf16.xpose.msra.mxu0 0
        %2132 = vmatpush.bf16.xpose.msra.mxu0 0
        %2133 = vmatpush.bf16.xpose.msra.mxu0 0
        %2134 = vmatpush.bf16.xpose.msra.mxu0 %v2125
        %2135 = vmatmul.bf16.gmra.mxu0 %v2122
        %v2136 = vpop.f32.mrf.mxu0
        %v2137 = vadd.f32 0.0, %v2136
        %v2138 = vpop.f32.mrf.mxu0
        %2139 = vdwg.mxu0
        %v2141 = vunpack.c.l.b16 %v2040
        %v2142 = vpack.c.b16 %v2141, %v2141
        %2143 = vrot.lane.b32.xlu0 %v2142, 96
        %v2144 = vpop.permute.xlu0 %2143
        %v2146 = vsel %vm463, %v2040, 0
        %v2149 = vsel %vm463, %v2144, 0
        %2151 = vmatpush.bf16.xpose.msra.mxu0 0
        %2152 = vmatpush.bf16.xpose.msra.mxu0 0
        %2153 = vmatpush.bf16.xpose.msra.mxu0 0
        %2154 = vmatpush.bf16.xpose.msra.mxu0 0
        %2155 = vmatpush.bf16.xpose.msra.mxu0 0
        %2156 = vmatpush.bf16.xpose.msra.mxu0 0
        %2157 = vmatpush.bf16.xpose.msra.mxu0 0
        %2158 = vmatpush.bf16.xpose.msra.mxu0 %v2149
        %2159 = vmatmul.bf16.gmra.mxu0 %v2146
        %v2160 = vpop.f32.mrf.mxu0
        %v2161 = vadd.f32 0.0, %v2160
        %v2162 = vpop.f32.mrf.mxu0
        %2163 = vdwg.mxu0
        %v2165 = vunpack.c.l.b16 %v2041
        %v2166 = vpack.c.b16 %v2165, %v2165
        %2167 = vrot.lane.b32.xlu0 %v2166, 96
        %v2168 = vpop.permute.xlu0 %2167
        %v2170 = vsel %vm463, %v2041, 0
        %v2173 = vsel %vm463, %v2168, 0
        %2175 = vmatpush.bf16.xpose.msra.mxu0 0
        %2176 = vmatpush.bf16.xpose.msra.mxu0 0
        %2177 = vmatpush.bf16.xpose.msra.mxu0 0
        %2178 = vmatpush.bf16.xpose.msra.mxu0 0
        %2179 = vmatpush.bf16.xpose.msra.mxu0 0
        %2180 = vmatpush.bf16.xpose.msra.mxu0 0
        %2181 = vmatpush.bf16.xpose.msra.mxu0 0
        %2182 = vmatpush.bf16.xpose.msra.mxu0 %v2173
        %2183 = vmatmul.bf16.gmra.mxu0 %v2170
        %v2184 = vpop.f32.mrf.mxu0
        %v2185 = vadd.f32 0.0, %v2184
        %v2186 = vpop.f32.mrf.mxu0
        %2187 = vdwg.mxu0
        %v2189 = vunpack.c.l.b16 %v2042
        %v2190 = vpack.c.b16 %v2189, %v2189
        %2191 = vrot.lane.b32.xlu0 %v2190, 96
        %v2192 = vpop.permute.xlu0 %2191
        %v2194 = vsel %vm463, %v2042, 0
        %v2197 = vsel %vm463, %v2192, 0
        %2199 = vmatpush.bf16.xpose.msra.mxu0 0
        %2200 = vmatpush.bf16.xpose.msra.mxu0 0
        %2201 = vmatpush.bf16.xpose.msra.mxu0 0
        %2202 = vmatpush.bf16.xpose.msra.mxu0 0
        %2203 = vmatpush.bf16.xpose.msra.mxu0 0
        %2204 = vmatpush.bf16.xpose.msra.mxu0 0
        %2205 = vmatpush.bf16.xpose.msra.mxu0 0
        %2206 = vmatpush.bf16.xpose.msra.mxu0 %v2197
        %2207 = vmatmul.bf16.gmra.mxu0 %v2194
        %v2208 = vpop.f32.mrf.mxu0
        %v2209 = vadd.f32 0.0, %v2208
        %v2210 = vpop.f32.mrf.mxu0
        %2211 = vdwg.mxu0
        %v2213 = vunpack.c.l.b16 %v2043
        %v2214 = vpack.c.b16 %v2213, %v2213
        %2215 = vrot.lane.b32.xlu0 %v2214, 96
        %v2216 = vpop.permute.xlu0 %2215
        %v2218 = vsel %vm463, %v2043, 0
        %v2221 = vsel %vm463, %v2216, 0
        %2223 = vmatpush.bf16.xpose.msra.mxu0 0
        %2224 = vmatpush.bf16.xpose.msra.mxu0 0
        %2225 = vmatpush.bf16.xpose.msra.mxu0 0
        %2226 = vmatpush.bf16.xpose.msra.mxu0 0
        %2227 = vmatpush.bf16.xpose.msra.mxu0 0
        %2228 = vmatpush.bf16.xpose.msra.mxu0 0
        %2229 = vmatpush.bf16.xpose.msra.mxu0 0
        %2230 = vmatpush.bf16.xpose.msra.mxu0 %v2221
        %2231 = vmatmul.bf16.gmra.mxu0 %v2218
        %v2232 = vpop.f32.mrf.mxu0
        %v2233 = vadd.f32 0.0, %v2232
        %v2234 = vpop.f32.mrf.mxu0
        %2235 = vdwg.mxu0
        %v2236 = vmul.f32 %v2065, 0.35355338
        %v2237 = vmul.f32 %v2089, 0.35355338
        %v2238 = vmul.f32 %v2113, 0.35355338
        %v2239 = vmul.f32 %v2137, 0.35355338
        %v2240 = vmul.f32 %v2161, 0.35355338
        %v2241 = vmul.f32 %v2185, 0.35355338
        %v2242 = vmul.f32 %v2209, 0.35355338
        %v2243 = vmul.f32 %v2233, 0.35355338
        %v2244 = vsel %vm463, %v2236, -inf
        %2245 = vmax.xlane.f32.xlu0 %v2244
        %v2246 = vpop.xlane.xlu0 %2245
        %v2247 = vsel %vm463, %v2237, -inf
        %2248 = vmax.xlane.f32.xlu0 %v2247
        %v2249 = vpop.xlane.xlu0 %2248
        %v2250 = vsel %vm463, %v2238, -inf
        %2251 = vmax.xlane.f32.xlu0 %v2250
        %v2252 = vpop.xlane.xlu0 %2251
        %v2253 = vsel %vm463, %v2239, -inf
        %2254 = vmax.xlane.f32.xlu0 %v2253
        %v2255 = vpop.xlane.xlu0 %2254
        %v2256 = vsel %vm463, %v2240, -inf
        %2257 = vmax.xlane.f32.xlu0 %v2256
        %v2258 = vpop.xlane.xlu0 %2257
        %v2259 = vsel %vm463, %v2241, -inf
        %2260 = vmax.xlane.f32.xlu0 %v2259
        %v2261 = vpop.xlane.xlu0 %2260
        %v2262 = vsel %vm463, %v2242, -inf
        %2263 = vmax.xlane.f32.xlu0 %v2262
        %v2264 = vpop.xlane.xlu0 %2263
        %v2265 = vsel %vm463, %v2243, -inf
        %2266 = vmax.xlane.f32.xlu0 %v2265
        %v2267 = vpop.xlane.xlu0 %2266
        %v2268 = vsub.f32 %v2236, %v2246
        %v2269 = vsub.f32 %v2237, %v2249
        %v2270 = vsub.f32 %v2238, %v2252
        %v2271 = vsub.f32 %v2239, %v2255
        %v2272 = vsub.f32 %v2240, %v2258
        %v2273 = vsub.f32 %v2241, %v2261
        %v2274 = vsub.f32 %v2242, %v2264
        %v2275 = vsub.f32 %v2243, %v2267
        %v2276 = vmul.f32 %v2268, 1.442695
        %v2277 = vpow.pop %v2276
        %v2278 = vmul.f32 %v2269, 1.442695
        %v2279 = vpow.pop %v2278
        %v2280 = vmul.f32 %v2270, 1.442695
        %v2281 = vpow.pop %v2280
        %v2282 = vmul.f32 %v2271, 1.442695
        %v2283 = vpow.pop %v2282
        %v2284 = vmul.f32 %v2272, 1.442695
        %v2285 = vpow.pop %v2284
        %v2286 = vmul.f32 %v2273, 1.442695
        %v2287 = vpow.pop %v2286
        %v2288 = vmul.f32 %v2274, 1.442695
        %v2289 = vpow.pop %v2288
        %v2290 = vmul.f32 %v2275, 1.442695
        %v2291 = vpow.pop %v2290
        %v2292 = vsel %vm463, %v2277, 0.0
        %2293 = vadd.xlane.f32.xlu0 %v2292
        %v2294 = vpop.xlane.xlu0 %2293
        %v2295 = vsel %vm463, %v2279, 0.0
        %2296 = vadd.xlane.f32.xlu0 %v2295
        %v2297 = vpop.xlane.xlu0 %2296
        %v2298 = vsel %vm463, %v2281, 0.0
        %2299 = vadd.xlane.f32.xlu0 %v2298
        %v2300 = vpop.xlane.xlu0 %2299
        %v2301 = vsel %vm463, %v2283, 0.0
        %2302 = vadd.xlane.f32.xlu0 %v2301
        %v2303 = vpop.xlane.xlu0 %2302
        %v2304 = vsel %vm463, %v2285, 0.0
        %2305 = vadd.xlane.f32.xlu0 %v2304
        %v2306 = vpop.xlane.xlu0 %2305
        %v2307 = vsel %vm463, %v2287, 0.0
        %2308 = vadd.xlane.f32.xlu0 %v2307
        %v2309 = vpop.xlane.xlu0 %2308
        %v2310 = vsel %vm463, %v2289, 0.0
        %2311 = vadd.xlane.f32.xlu0 %v2310
        %v2312 = vpop.xlane.xlu0 %2311
        %v2313 = vsel %vm463, %v2291, 0.0
        %2314 = vadd.xlane.f32.xlu0 %v2313
        %v2315 = vpop.xlane.xlu0 %2314
        %v2316 = vrcp.pop %v2294
        %v2317 = vrcp.pop %v2297
        %v2318 = vrcp.pop %v2300
        %v2319 = vrcp.pop %v2303
        %v2320 = vrcp.pop %v2306
        %v2321 = vrcp.pop %v2309
        %v2322 = vrcp.pop %v2312
        %v2323 = vrcp.pop %v2315
        %v2324 = vmul.f32 %v2277, %v2316
        %v2325 = vmul.f32 %v2279, %v2317
        %v2326 = vmul.f32 %v2281, %v2318
        %v2327 = vmul.f32 %v2283, %v2319
        %v2328 = vmul.f32 %v2285, %v2320
        %v2329 = vmul.f32 %v2287, %v2321
        %v2330 = vmul.f32 %v2289, %v2322
        %v2331 = vmul.f32 %v2291, %v2323
        %v2332 = vpack.c.bf16 %v2324, %v2324
        %v2333 = vpack.c.bf16 %v2325, %v2325
        %v2334 = vpack.c.bf16 %v2326, %v2326
        %v2335 = vpack.c.bf16 %v2327, %v2327
        %v2336 = vpack.c.bf16 %v2328, %v2328
        %v2337 = vpack.c.bf16 %v2329, %v2329
        %v2338 = vpack.c.bf16 %v2330, %v2330
        %v2339 = vpack.c.bf16 %v2331, %v2331
        %2340 = vrot.lane.b32.xlu0 %v2046, 64
        %v2341 = vpop.permute.xlu0 %2340
        %v2343 = vsel %vm463, %v2332, 0
        %v2346 = vsel %vm760, %v2341, 0
        %2348 = vmatpush.bf16.msra.mxu0 0
        %2349 = vmatpush.bf16.msra.mxu0 0
        %2350 = vmatpush.bf16.msra.mxu0 0
        %2351 = vmatpush.bf16.msra.mxu0 0
        %2352 = vmatpush.bf16.msra.mxu0 0
        %2353 = vmatpush.bf16.msra.mxu0 0
        %2354 = vmatpush.bf16.msra.mxu0 0
        %2355 = vmatpush.bf16.msra.mxu0 %v2346
        %2356 = vmatmul.bf16.gmra.mxu0 %v2343
        %v2357 = vpop.f32.mrf.mxu0
        %v2358 = vadd.f32 0.0, %v2357
        %v2359 = vpop.f32.mrf.mxu0
        %2360 = vdwg.mxu0
        %2361 = vrot.lane.b32.xlu0 %v2070, 64
        %v2362 = vpop.permute.xlu0 %2361
        %v2364 = vsel %vm463, %v2333, 0
        %v2367 = vsel %vm760, %v2362, 0
        %2369 = vmatpush.bf16.msra.mxu0 0
        %2370 = vmatpush.bf16.msra.mxu0 0
        %2371 = vmatpush.bf16.msra.mxu0 0
        %2372 = vmatpush.bf16.msra.mxu0 0
        %2373 = vmatpush.bf16.msra.mxu0 0
        %2374 = vmatpush.bf16.msra.mxu0 0
        %2375 = vmatpush.bf16.msra.mxu0 0
        %2376 = vmatpush.bf16.msra.mxu0 %v2367
        %2377 = vmatmul.bf16.gmra.mxu0 %v2364
        %v2378 = vpop.f32.mrf.mxu0
        %v2379 = vadd.f32 0.0, %v2378
        %v2380 = vpop.f32.mrf.mxu0
        %2381 = vdwg.mxu0
        %2382 = vrot.lane.b32.xlu0 %v2094, 64
        %v2383 = vpop.permute.xlu0 %2382
        %v2385 = vsel %vm463, %v2334, 0
        %v2388 = vsel %vm760, %v2383, 0
        %2390 = vmatpush.bf16.msra.mxu0 0
        %2391 = vmatpush.bf16.msra.mxu0 0
        %2392 = vmatpush.bf16.msra.mxu0 0
        %2393 = vmatpush.bf16.msra.mxu0 0
        %2394 = vmatpush.bf16.msra.mxu0 0
        %2395 = vmatpush.bf16.msra.mxu0 0
        %2396 = vmatpush.bf16.msra.mxu0 0
        %2397 = vmatpush.bf16.msra.mxu0 %v2388
        %2398 = vmatmul.bf16.gmra.mxu0 %v2385
        %v2399 = vpop.f32.mrf.mxu0
        %v2400 = vadd.f32 0.0, %v2399
        %v2401 = vpop.f32.mrf.mxu0
        %2402 = vdwg.mxu0
        %2403 = vrot.lane.b32.xlu0 %v2118, 64
        %v2404 = vpop.permute.xlu0 %2403
        %v2406 = vsel %vm463, %v2335, 0
        %v2409 = vsel %vm760, %v2404, 0
        %2411 = vmatpush.bf16.msra.mxu0 0
        %2412 = vmatpush.bf16.msra.mxu0 0
        %2413 = vmatpush.bf16.msra.mxu0 0
        %2414 = vmatpush.bf16.msra.mxu0 0
        %2415 = vmatpush.bf16.msra.mxu0 0
        %2416 = vmatpush.bf16.msra.mxu0 0
        %2417 = vmatpush.bf16.msra.mxu0 0
        %2418 = vmatpush.bf16.msra.mxu0 %v2409
        %2419 = vmatmul.bf16.gmra.mxu0 %v2406
        %v2420 = vpop.f32.mrf.mxu0
        %v2421 = vadd.f32 0.0, %v2420
        %v2422 = vpop.f32.mrf.mxu0
        %2423 = vdwg.mxu0
        %2424 = vrot.lane.b32.xlu0 %v2142, 64
        %v2425 = vpop.permute.xlu0 %2424
        %v2427 = vsel %vm463, %v2336, 0
        %v2430 = vsel %vm760, %v2425, 0
        %2432 = vmatpush.bf16.msra.mxu0 0
        %2433 = vmatpush.bf16.msra.mxu0 0
        %2434 = vmatpush.bf16.msra.mxu0 0
        %2435 = vmatpush.bf16.msra.mxu0 0
        %2436 = vmatpush.bf16.msra.mxu0 0
        %2437 = vmatpush.bf16.msra.mxu0 0
        %2438 = vmatpush.bf16.msra.mxu0 0
        %2439 = vmatpush.bf16.msra.mxu0 %v2430
        %2440 = vmatmul.bf16.gmra.mxu0 %v2427
        %v2441 = vpop.f32.mrf.mxu0
        %v2442 = vadd.f32 0.0, %v2441
        %v2443 = vpop.f32.mrf.mxu0
        %2444 = vdwg.mxu0
        %2445 = vrot.lane.b32.xlu0 %v2166, 64
        %v2446 = vpop.permute.xlu0 %2445
        %v2448 = vsel %vm463, %v2337, 0
        %v2451 = vsel %vm760, %v2446, 0
        %2453 = vmatpush.bf16.msra.mxu0 0
        %2454 = vmatpush.bf16.msra.mxu0 0
        %2455 = vmatpush.bf16.msra.mxu0 0
        %2456 = vmatpush.bf16.msra.mxu0 0
        %2457 = vmatpush.bf16.msra.mxu0 0
        %2458 = vmatpush.bf16.msra.mxu0 0
        %2459 = vmatpush.bf16.msra.mxu0 0
        %2460 = vmatpush.bf16.msra.mxu0 %v2451
        %2461 = vmatmul.bf16.gmra.mxu0 %v2448
        %v2462 = vpop.f32.mrf.mxu0
        %v2463 = vadd.f32 0.0, %v2462
        %v2464 = vpop.f32.mrf.mxu0
        %2465 = vdwg.mxu0
        %2466 = vrot.lane.b32.xlu0 %v2190, 64
        %v2467 = vpop.permute.xlu0 %2466
        %v2469 = vsel %vm463, %v2338, 0
        %v2472 = vsel %vm760, %v2467, 0
        %2474 = vmatpush.bf16.msra.mxu0 0
        %2475 = vmatpush.bf16.msra.mxu0 0
        %2476 = vmatpush.bf16.msra.mxu0 0
        %2477 = vmatpush.bf16.msra.mxu0 0
        %2478 = vmatpush.bf16.msra.mxu0 0
        %2479 = vmatpush.bf16.msra.mxu0 0
        %2480 = vmatpush.bf16.msra.mxu0 0
        %2481 = vmatpush.bf16.msra.mxu0 %v2472
        %2482 = vmatmul.bf16.gmra.mxu0 %v2469
        %v2483 = vpop.f32.mrf.mxu0
        %v2484 = vadd.f32 0.0, %v2483
        %v2485 = vpop.f32.mrf.mxu0
        %2486 = vdwg.mxu0
        %2487 = vrot.lane.b32.xlu0 %v2214, 64
        %v2488 = vpop.permute.xlu0 %2487
        %v2490 = vsel %vm463, %v2339, 0
        %v2493 = vsel %vm760, %v2488, 0
        %2495 = vmatpush.bf16.msra.mxu0 0
        %2496 = vmatpush.bf16.msra.mxu0 0
        %2497 = vmatpush.bf16.msra.mxu0 0
        %2498 = vmatpush.bf16.msra.mxu0 0
        %2499 = vmatpush.bf16.msra.mxu0 0
        %2500 = vmatpush.bf16.msra.mxu0 0
        %2501 = vmatpush.bf16.msra.mxu0 0
        %2502 = vmatpush.bf16.msra.mxu0 %v2493
        %2503 = vmatmul.bf16.gmra.mxu0 %v2490
        %v2504 = vpop.f32.mrf.mxu0
        %v2505 = vadd.f32 0.0, %v2504
        %v2506 = vpop.f32.mrf.mxu0
        %2507 = vdwg.mxu0
        %2510 = vrot.lane.b32.xlu0 %v2400, 8
        %v2511 = vpop.permute.xlu0 %2510
        %2512 = vrot.lane.b32.xlu0 %v2421, 8
        %v2513 = vpop.permute.xlu0 %2512
        %2518 = vrot.lane.b32.xlu0 %v2442, 16
        %v2519 = vpop.permute.xlu0 %2518
        %2520 = vrot.lane.b32.xlu0 %v2463, 16
        %v2521 = vpop.permute.xlu0 %2520
        %2526 = vrot.lane.b32.xlu0 %v2484, 24
        %v2527 = vpop.permute.xlu0 %2526
        %2528 = vrot.lane.b32.xlu0 %v2505, 24
        %v2529 = vpop.permute.xlu0 %2528
        %v2532 = vsel %vm463, %v2358, %v2511
        %v2533 = vsel %vm463, %v2379, %v2513
        %v2534 = vsel %vm950, %v2532, %v2519
        %v2535 = vsel %vm950, %v2533, %v2521
        %v2536 = vsel %vm953, %v2534, %v2527
        %v2537 = vsel %vm953, %v2535, %v2529
        %v2538 = vpack.c.bf16 %v2537, %v2536
        %2539 = vrot.lane.b32.xlu0 %v1995, 32
        %v2540 = vpop.permute.xlu0 %2539
        %2541 = vrot.lane.b32.xlu0 %v1996, 32
        %v2542 = vpop.permute.xlu0 %2541
        %v2546 = vsel %vm250, %v2538, 0
        %2548 = vmatpush.bf16.msra.mxu0 0
        %2549 = vmatpush.bf16.msra.mxu0 0
        %2550 = vmatpush.bf16.msra.mxu0 0
        %2551 = vmatpush.bf16.msra.mxu0 0
        %2552 = vmatpush.bf16.msra.mxu0 0
        %2553 = vmatpush.bf16.msra.mxu0 0
        %2554 = vmatpush.bf16.msra.mxu0 %v2542
        %2555 = vmatpush.bf16.msra.mxu0 %v2540
        %2556 = vmatmul.bf16.gmra.mxu0 %v2546
        %v2557 = vpop.f32.mrf.mxu0
        %v2558 = vadd.f32 0.0, %v2557
        %v2559 = vpop.f32.mrf.mxu0
        %v2560 = vadd.f32 0.0, %v2559
        %2561 = vdwg.mxu0
        %v2562 = vadd.f32 %v1922, %v2558
        %v2563 = vadd.f32 %v1923, %v2560
        %2565 = vrot.lane.b32.xlu0 %v1986, 32
        %v2566 = vpop.permute.xlu0 %2565
        %v2568 = vadd.f32 %v2562, %v2566
        %v2569 = vadd.f32 %v2563, %v2566
        %v2570 = vsel %vm250, %v2568, 0.0
        %2571 = vadd.xlane.f32.xlu0 %v2570
        %v2572 = vpop.xlane.xlu0 %2571
        %v2573 = vsel %vm250, %v2569, 0.0
        %2574 = vadd.xlane.f32.xlu0 %v2573
        %v2575 = vpop.xlane.xlu0 %2574
        %v2576 = vmul.f32 %v2572, %v347
        %v2577 = vmul.f32 %v2575, %v347
        %v2578 = vsub.f32 %v2568, %v2576
        %v2579 = vsub.f32 %v2569, %v2577
        %v2580 = vmul.f32 %v2578, %v2578
        %v2581 = vmul.f32 %v2579, %v2579
        %v2582 = vsel %vm250, %v2580, 0.0
        %2583 = vadd.xlane.f32.xlu0 %v2582
        %v2584 = vpop.xlane.xlu0 %2583
        %v2585 = vsel %vm250, %v2581, 0.0
        %2586 = vadd.xlane.f32.xlu0 %v2585
        %v2587 = vpop.xlane.xlu0 %2586
        %v2588 = vmul.f32 %v2584, %v347
        %v2589 = vmul.f32 %v2587, %v347
        %v2590 = vadd.f32 %v2588, 1e-05
        %v2591 = vadd.f32 %v2589, 1e-05
        %v2592 = vrsqrt.pop %v2590
        %v2593 = vmul.f32 %v2592, %v2590
        %v2594 = vmul.f32 %v2593, %v2592
        %v2595 = vmul.f32 0.5, %v2594
        %v2596 = vsub.f32 1.5, %v2595
        %v2597 = vmul.f32 %v2592, %v2596
        %vm2598 = vweird.f32 %v2590
        %vm2599 = vweird.f32 %v2592
        %vm2600 = vmor %vm2598, %vm2599
        %v2601 = vsel %vm2600, %v2592, %v2597
        %v2602 = vrsqrt.pop %v2591
        %v2603 = vmul.f32 %v2602, %v2591
        %v2604 = vmul.f32 %v2603, %v2602
        %v2605 = vmul.f32 0.5, %v2604
        %v2606 = vsub.f32 1.5, %v2605
        %v2607 = vmul.f32 %v2602, %v2606
        %vm2608 = vweird.f32 %v2591
        %vm2609 = vweird.f32 %v2602
        %vm2610 = vmor %vm2608, %vm2609
        %v2611 = vsel %vm2610, %v2602, %v2607
        %v2612 = vmul.f32 %v2578, %v2601
        %v2613 = vmul.f32 %v2579, %v2611
        %v2614 = vperm.slane %v1034, 2
        %v2615 = vmul.f32 %v2612, %v2614
        %v2616 = vmul.f32 %v2613, %v2614
        %v2617 = vperm.slane %v1041, 2
        %v2618 = vadd.f32 %v2615, %v2617
        %v2619 = vadd.f32 %v2616, %v2617
        %v2620 = vpack.c.bf16 %v2619, %v2618
        %v2621 = vperm.slane %v323, 2
        %v2622 = vperm.slane %v323, 6
        %v2625 = vperm.slane %v2621, 2
        %v2626 = vperm.slane %v2622, 2
        %v2627 = vunpack.c.h.b16 %v1927
        %v2628 = vunpack.c.h.b16 %v1929
        %v2629 = vunpack.c.h.b16 %v1931
        %v2630 = vunpack.c.h.b16 %v1933
        %v2631 = vpack.c.b16 %v2628, %v2627
        %v2632 = vpack.c.b16 %v2630, %v2629
        %2637 = vrot.lane.b32.xlu0 %v2625, 96
        %v2638 = vpop.permute.xlu0 %2637
        %2639 = vrot.lane.b32.xlu0 %v2626, 96
        %v2640 = vpop.permute.xlu0 %2639
        %v2641 = vsel %vm1068, %v2638, %v2640
        %v2644 = vsel %vm250, %v2620, 0
        %2646 = vmatpush.bf16.msra.mxu0 0
        %2647 = vmatpush.bf16.msra.mxu0 0
        %2648 = vmatpush.bf16.msra.mxu0 0
        %2649 = vmatpush.bf16.msra.mxu0 0
        %2650 = vmatpush.bf16.msra.mxu0 0
        %2651 = vmatpush.bf16.msra.mxu0 0
        %2652 = vmatpush.bf16.msra.mxu0 %v2632
        %2653 = vmatpush.bf16.msra.mxu0 %v2631
        %2654 = vmatmul.bf16.gmra.mxu0 %v2644
        %v2655 = vpop.f32.mrf.mxu0
        %v2656 = vadd.f32 %v2641, %v2655
        %v2657 = vpop.f32.mrf.mxu0
        %v2658 = vadd.f32 %v2641, %v2657
        %2659 = vdwg.mxu0
        %v2660 = vmul.f32 %v2656, %v2656
        %v2661 = vmul.f32 %v2658, %v2658
        %v2662 = vmul.f32 %v2656, %v2660
        %v2663 = vmul.f32 %v2658, %v2661
        %v2664 = vmul.f32 %v2662, 0.044715
        %v2665 = vmul.f32 %v2663, 0.044715
        %v2666 = vadd.f32 %v2656, %v2664
        %v2667 = vadd.f32 %v2658, %v2665
        %v2668 = vmul.f32 %v2666, 0.7978846
        %v2669 = vmul.f32 %v2667, 0.7978846
        %v2670 = vtanh.pop %v2668
        %v2671 = vtanh.pop %v2669
        %v2672 = vadd.f32 %v2670, 1.0
        %v2673 = vadd.f32 %v2671, 1.0
        %v2674 = vmul.f32 %v2672, 0.5
        %v2675 = vmul.f32 %v2673, 0.5
        %v2676 = vmul.f32 %v2656, %v2674
        %v2677 = vmul.f32 %v2658, %v2675
        %v2678 = vpack.c.bf16 %v2677, %v2676
        %v2683 = vunpack.c.l.b16 %v1928
        %v2684 = vunpack.c.l.b16 %v1930
        %v2685 = vunpack.c.l.b16 %v1932
        %v2686 = vunpack.c.l.b16 %v1934
        %v2687 = vpack.c.b16 %v2684, %v2683
        %v2688 = vpack.c.b16 %v2686, %v2685
        %2691 = vmatpush.bf16.xpose.msra.mxu0 0
        %2692 = vmatpush.bf16.xpose.msra.mxu0 0
        %2693 = vmatpush.bf16.xpose.msra.mxu0 0
        %2694 = vmatpush.bf16.xpose.msra.mxu0 0
        %2695 = vmatpush.bf16.xpose.msra.mxu0 0
        %2696 = vmatpush.bf16.xpose.msra.mxu0 0
        %2697 = vmatpush.bf16.xpose.msra.mxu0 %v2688
        %2698 = vmatpush.bf16.xpose.msra.mxu0 %v2687
        %2699 = vmatmul.bf16.gmra.mxu0 %v2678
        %v2700 = vpop.f32.mrf.mxu0
        %v2701 = vadd.f32 0.0, %v2700
        %v2702 = vpop.f32.mrf.mxu0
        %v2703 = vadd.f32 0.0, %v2702
        %2704 = vdwg.mxu0
        %v2705 = vadd.f32 %v2568, %v2701
        %v2706 = vadd.f32 %v2569, %v2703
        %v2707 = vperm.slane %v323, 2
        %v2708 = vadd.f32 %v2705, %v2707
        %v2709 = vadd.f32 %v2706, %v2707
        %s2710 = sadd.s32 36, %s324
        %s2711 = smul.addr %s2710, 4
        %s2712 = scalar_lea.vmem [#allocation5], %s2711
        %v2713 = vld [vmem:[%s2712] sm:$0xff]
        %v2714 = vld [vmem:[%s2712 + $0x8] sm:$0xf]
        %v2715 = vld [vmem:[%s2712 + $0xc] sm:$0xff]
        %v2716 = vld [vmem:[%s2712 + $0x14] sm:$0xf]
        %v2717 = vld [vmem:[%s2712 + $0x18] sm:$0xff]
        %v2718 = vld [vmem:[%s2712 + $0x20] sm:$0xf]
        %v2719 = vld [vmem:[%s2712 + $0x24] sm:$0xff]
        %v2720 = vld [vmem:[%s2712 + $0x2c] sm:$0xf]
        %v2721 = vsel %vm250, %v2708, 0.0
        %2722 = vadd.xlane.f32.xlu0 %v2721
        %v2723 = vpop.xlane.xlu0 %2722
        %v2724 = vsel %vm250, %v2709, 0.0
        %2725 = vadd.xlane.f32.xlu0 %v2724
        %v2726 = vpop.xlane.xlu0 %2725
        %v2727 = vmul.f32 %v2723, %v347
        %v2728 = vmul.f32 %v2726, %v347
        %v2729 = vsub.f32 %v2708, %v2727
        %v2730 = vsub.f32 %v2709, %v2728
        %v2731 = vmul.f32 %v2729, %v2729
        %v2732 = vmul.f32 %v2730, %v2730
        %v2733 = vsel %vm250, %v2731, 0.0
        %2734 = vadd.xlane.f32.xlu0 %v2733
        %v2735 = vpop.xlane.xlu0 %2734
        %v2736 = vsel %vm250, %v2732, 0.0
        %2737 = vadd.xlane.f32.xlu0 %v2736
        %v2738 = vpop.xlane.xlu0 %2737
        %v2739 = vmul.f32 %v2735, %v347
        %v2740 = vmul.f32 %v2738, %v347
        %v2741 = vadd.f32 %v2739, 1e-05
        %v2742 = vadd.f32 %v2740, 1e-05
        %v2743 = vrsqrt.pop %v2741
        %v2744 = vmul.f32 %v2743, %v2741
        %v2745 = vmul.f32 %v2744, %v2743
        %v2746 = vmul.f32 0.5, %v2745
        %v2747 = vsub.f32 1.5, %v2746
        %v2748 = vmul.f32 %v2743, %v2747
        %vm2749 = vweird.f32 %v2741
        %vm2750 = vweird.f32 %v2743
        %vm2751 = vmor %vm2749, %vm2750
        %v2752 = vsel %vm2751, %v2743, %v2748
        %v2753 = vrsqrt.pop %v2742
        %v2754 = vmul.f32 %v2753, %v2742
        %v2755 = vmul.f32 %v2754, %v2753
        %v2756 = vmul.f32 0.5, %v2755
        %v2757 = vsub.f32 1.5, %v2756
        %v2758 = vmul.f32 %v2753, %v2757
        %vm2759 = vweird.f32 %v2742
        %vm2760 = vweird.f32 %v2753
        %vm2761 = vmor %vm2759, %vm2760
        %v2762 = vsel %vm2761, %v2753, %v2758
        %v2763 = vmul.f32 %v2729, %v2752
        %v2764 = vmul.f32 %v2730, %v2762
        %v2765 = vperm.slane %v387, 3
        %v2766 = vmul.f32 %v2763, %v2765
        %v2767 = vmul.f32 %v2764, %v2765
        %v2768 = vperm.slane %v394, 3
        %v2769 = vadd.f32 %v2766, %v2768
        %v2770 = vadd.f32 %v2767, %v2768
        %v2771 = vpack.c.bf16 %v2770, %v2769
        %v2772 = vperm.slane %v322, 3
        %v2777 = vunpack.c.l.b16 %v2713
        %v2778 = vunpack.c.l.b16 %v2715
        %v2779 = vunpack.c.l.b16 %v2717
        %v2780 = vunpack.c.l.b16 %v2719
        %v2781 = vpack.c.b16 %v2778, %v2777
        %v2782 = vpack.c.b16 %v2780, %v2779
        %v2786 = vsel %vm250, %v2771, 0
        %2788 = vmatpush.bf16.msra.mxu0 0
        %2789 = vmatpush.bf16.msra.mxu0 0
        %2790 = vmatpush.bf16.msra.mxu0 0
        %2791 = vmatpush.bf16.msra.mxu0 0
        %2792 = vmatpush.bf16.msra.mxu0 0
        %2793 = vmatpush.bf16.msra.mxu0 0
        %2794 = vmatpush.bf16.msra.mxu0 %v2782
        %2795 = vmatpush.bf16.msra.mxu0 %v2781
        %2796 = vmatmul.bf16.gmra.mxu0 %v2786
        %v2797 = vpop.f32.mrf.mxu0
        %v2798 = vadd.f32 %v2772, %v2797
        %v2799 = vpop.f32.mrf.mxu0
        %v2800 = vadd.f32 %v2772, %v2799
        %2801 = vdwg.mxu0
        %2804 = vrot.lane.b32.xlu0 %v2798, 120
        %v2805 = vpop.permute.xlu0 %2804
        %2806 = vrot.lane.b32.xlu0 %v2800, 120
        %v2807 = vpop.permute.xlu0 %2806
        %2810 = vrot.lane.b32.xlu0 %v2798, 112
        %v2811 = vpop.permute.xlu0 %2810
        %2812 = vrot.lane.b32.xlu0 %v2800, 112
        %v2813 = vpop.permute.xlu0 %2812
        %2816 = vrot.lane.b32.xlu0 %v2798, 104
        %v2817 = vpop.permute.xlu0 %2816
        %2818 = vrot.lane.b32.xlu0 %v2800, 104
        %v2819 = vpop.permute.xlu0 %2818
        %v2822 = vpack.c.bf16 %v2798, %v2798
        %v2823 = vpack.c.bf16 %v2800, %v2800
        %v2824 = vpack.c.bf16 %v2805, %v2805
        %v2825 = vpack.c.bf16 %v2807, %v2807
        %v2826 = vpack.c.bf16 %v2811, %v2811
        %v2827 = vpack.c.bf16 %v2813, %v2813
        %v2828 = vpack.c.bf16 %v2817, %v2817
        %v2829 = vpack.c.bf16 %v2819, %v2819
        %v2831 = vunpack.c.l.b16 %v2822
        %v2832 = vpack.c.b16 %v2831, %v2831
        %2833 = vrot.lane.b32.xlu0 %v2832, 96
        %v2834 = vpop.permute.xlu0 %2833
        %v2836 = vsel %vm463, %v2822, 0
        %v2839 = vsel %vm463, %v2834, 0
        %2841 = vmatpush.bf16.xpose.msra.mxu0 0
        %2842 = vmatpush.bf16.xpose.msra.mxu0 0
        %2843 = vmatpush.bf16.xpose.msra.mxu0 0
        %2844 = vmatpush.bf16.xpose.msra.mxu0 0
        %2845 = vmatpush.bf16.xpose.msra.mxu0 0
        %2846 = vmatpush.bf16.xpose.msra.mxu0 0
        %2847 = vmatpush.bf16.xpose.msra.mxu0 0
        %2848 = vmatpush.bf16.xpose.msra.mxu0 %v2839
        %2849 = vmatmul.bf16.gmra.mxu0 %v2836
        %v2850 = vpop.f32.mrf.mxu0
        %v2851 = vadd.f32 0.0, %v2850
        %v2852 = vpop.f32.mrf.mxu0
        %2853 = vdwg.mxu0
        %v2855 = vunpack.c.l.b16 %v2823
        %v2856 = vpack.c.b16 %v2855, %v2855
        %2857 = vrot.lane.b32.xlu0 %v2856, 96
        %v2858 = vpop.permute.xlu0 %2857
        %v2860 = vsel %vm463, %v2823, 0
        %v2863 = vsel %vm463, %v2858, 0
        %2865 = vmatpush.bf16.xpose.msra.mxu0 0
        %2866 = vmatpush.bf16.xpose.msra.mxu0 0
        %2867 = vmatpush.bf16.xpose.msra.mxu0 0
        %2868 = vmatpush.bf16.xpose.msra.mxu0 0
        %2869 = vmatpush.bf16.xpose.msra.mxu0 0
        %2870 = vmatpush.bf16.xpose.msra.mxu0 0
        %2871 = vmatpush.bf16.xpose.msra.mxu0 0
        %2872 = vmatpush.bf16.xpose.msra.mxu0 %v2863
        %2873 = vmatmul.bf16.gmra.mxu0 %v2860
        %v2874 = vpop.f32.mrf.mxu0
        %v2875 = vadd.f32 0.0, %v2874
        %v2876 = vpop.f32.mrf.mxu0
        %2877 = vdwg.mxu0
        %v2879 = vunpack.c.l.b16 %v2824
        %v2880 = vpack.c.b16 %v2879, %v2879
        %2881 = vrot.lane.b32.xlu0 %v2880, 96
        %v2882 = vpop.permute.xlu0 %2881
        %v2884 = vsel %vm463, %v2824, 0
        %v2887 = vsel %vm463, %v2882, 0
        %2889 = vmatpush.bf16.xpose.msra.mxu0 0
        %2890 = vmatpush.bf16.xpose.msra.mxu0 0
        %2891 = vmatpush.bf16.xpose.msra.mxu0 0
        %2892 = vmatpush.bf16.xpose.msra.mxu0 0
        %2893 = vmatpush.bf16.xpose.msra.mxu0 0
        %2894 = vmatpush.bf16.xpose.msra.mxu0 0
        %2895 = vmatpush.bf16.xpose.msra.mxu0 0
        %2896 = vmatpush.bf16.xpose.msra.mxu0 %v2887
        %2897 = vmatmul.bf16.gmra.mxu0 %v2884
        %v2898 = vpop.f32.mrf.mxu0
        %v2899 = vadd.f32 0.0, %v2898
        %v2900 = vpop.f32.mrf.mxu0
        %2901 = vdwg.mxu0
        %v2903 = vunpack.c.l.b16 %v2825
        %v2904 = vpack.c.b16 %v2903, %v2903
        %2905 = vrot.lane.b32.xlu0 %v2904, 96
        %v2906 = vpop.permute.xlu0 %2905
        %v2908 = vsel %vm463, %v2825, 0
        %v2911 = vsel %vm463, %v2906, 0
        %2913 = vmatpush.bf16.xpose.msra.mxu0 0
        %2914 = vmatpush.bf16.xpose.msra.mxu0 0
        %2915 = vmatpush.bf16.xpose.msra.mxu0 0
        %2916 = vmatpush.bf16.xpose.msra.mxu0 0
        %2917 = vmatpush.bf16.xpose.msra.mxu0 0
        %2918 = vmatpush.bf16.xpose.msra.mxu0 0
        %2919 = vmatpush.bf16.xpose.msra.mxu0 0
        %2920 = vmatpush.bf16.xpose.msra.mxu0 %v2911
        %2921 = vmatmul.bf16.gmra.mxu0 %v2908
        %v2922 = vpop.f32.mrf.mxu0
        %v2923 = vadd.f32 0.0, %v2922
        %v2924 = vpop.f32.mrf.mxu0
        %2925 = vdwg.mxu0
        %v2927 = vunpack.c.l.b16 %v2826
        %v2928 = vpack.c.b16 %v2927, %v2927
        %2929 = vrot.lane.b32.xlu0 %v2928, 96
        %v2930 = vpop.permute.xlu0 %2929
        %v2932 = vsel %vm463, %v2826, 0
        %v2935 = vsel %vm463, %v2930, 0
        %2937 = vmatpush.bf16.xpose.msra.mxu0 0
        %2938 = vmatpush.bf16.xpose.msra.mxu0 0
        %2939 = vmatpush.bf16.xpose.msra.mxu0 0
        %2940 = vmatpush.bf16.xpose.msra.mxu0 0
        %2941 = vmatpush.bf16.xpose.msra.mxu0 0
        %2942 = vmatpush.bf16.xpose.msra.mxu0 0
        %2943 = vmatpush.bf16.xpose.msra.mxu0 0
        %2944 = vmatpush.bf16.xpose.msra.mxu0 %v2935
        %2945 = vmatmul.bf16.gmra.mxu0 %v2932
        %v2946 = vpop.f32.mrf.mxu0
        %v2947 = vadd.f32 0.0, %v2946
        %v2948 = vpop.f32.mrf.mxu0
        %2949 = vdwg.mxu0
        %v2951 = vunpack.c.l.b16 %v2827
        %v2952 = vpack.c.b16 %v2951, %v2951
        %2953 = vrot.lane.b32.xlu0 %v2952, 96
        %v2954 = vpop.permute.xlu0 %2953
        %v2956 = vsel %vm463, %v2827, 0
        %v2959 = vsel %vm463, %v2954, 0
        %2961 = vmatpush.bf16.xpose.msra.mxu0 0
        %2962 = vmatpush.bf16.xpose.msra.mxu0 0
        %2963 = vmatpush.bf16.xpose.msra.mxu0 0
        %2964 = vmatpush.bf16.xpose.msra.mxu0 0
        %2965 = vmatpush.bf16.xpose.msra.mxu0 0
        %2966 = vmatpush.bf16.xpose.msra.mxu0 0
        %2967 = vmatpush.bf16.xpose.msra.mxu0 0
        %2968 = vmatpush.bf16.xpose.msra.mxu0 %v2959
        %2969 = vmatmul.bf16.gmra.mxu0 %v2956
        %v2970 = vpop.f32.mrf.mxu0
        %v2971 = vadd.f32 0.0, %v2970
        %v2972 = vpop.f32.mrf.mxu0
        %2973 = vdwg.mxu0
        %v2975 = vunpack.c.l.b16 %v2828
        %v2976 = vpack.c.b16 %v2975, %v2975
        %2977 = vrot.lane.b32.xlu0 %v2976, 96
        %v2978 = vpop.permute.xlu0 %2977
        %v2980 = vsel %vm463, %v2828, 0
        %v2983 = vsel %vm463, %v2978, 0
        %2985 = vmatpush.bf16.xpose.msra.mxu0 0
        %2986 = vmatpush.bf16.xpose.msra.mxu0 0
        %2987 = vmatpush.bf16.xpose.msra.mxu0 0
        %2988 = vmatpush.bf16.xpose.msra.mxu0 0
        %2989 = vmatpush.bf16.xpose.msra.mxu0 0
        %2990 = vmatpush.bf16.xpose.msra.mxu0 0
        %2991 = vmatpush.bf16.xpose.msra.mxu0 0
        %2992 = vmatpush.bf16.xpose.msra.mxu0 %v2983
        %2993 = vmatmul.bf16.gmra.mxu0 %v2980
        %v2994 = vpop.f32.mrf.mxu0
        %v2995 = vadd.f32 0.0, %v2994
        %v2996 = vpop.f32.mrf.mxu0
        %2997 = vdwg.mxu0
        %v2999 = vunpack.c.l.b16 %v2829
        %v3000 = vpack.c.b16 %v2999, %v2999
        %3001 = vrot.lane.b32.xlu0 %v3000, 96
        %v3002 = vpop.permute.xlu0 %3001
        %v3004 = vsel %vm463, %v2829, 0
        %v3007 = vsel %vm463, %v3002, 0
        %3009 = vmatpush.bf16.xpose.msra.mxu0 0
        %3010 = vmatpush.bf16.xpose.msra.mxu0 0
        %3011 = vmatpush.bf16.xpose.msra.mxu0 0
        %3012 = vmatpush.bf16.xpose.msra.mxu0 0
        %3013 = vmatpush.bf16.xpose.msra.mxu0 0
        %3014 = vmatpush.bf16.xpose.msra.mxu0 0
        %3015 = vmatpush.bf16.xpose.msra.mxu0 0
        %3016 = vmatpush.bf16.xpose.msra.mxu0 %v3007
        %3017 = vmatmul.bf16.gmra.mxu0 %v3004
        %v3018 = vpop.f32.mrf.mxu0
        %v3019 = vadd.f32 0.0, %v3018
        %v3020 = vpop.f32.mrf.mxu0
        %3021 = vdwg.mxu0
        %v3022 = vmul.f32 %v2851, 0.35355338
        %v3023 = vmul.f32 %v2875, 0.35355338
        %v3024 = vmul.f32 %v2899, 0.35355338
        %v3025 = vmul.f32 %v2923, 0.35355338
        %v3026 = vmul.f32 %v2947, 0.35355338
        %v3027 = vmul.f32 %v2971, 0.35355338
        %v3028 = vmul.f32 %v2995, 0.35355338
        %v3029 = vmul.f32 %v3019, 0.35355338
        %v3030 = vsel %vm463, %v3022, -inf
        %3031 = vmax.xlane.f32.xlu0 %v3030
        %v3032 = vpop.xlane.xlu0 %3031
        %v3033 = vsel %vm463, %v3023, -inf
        %3034 = vmax.xlane.f32.xlu0 %v3033
        %v3035 = vpop.xlane.xlu0 %3034
        %v3036 = vsel %vm463, %v3024, -inf
        %3037 = vmax.xlane.f32.xlu0 %v3036
        %v3038 = vpop.xlane.xlu0 %3037
        %v3039 = vsel %vm463, %v3025, -inf
        %3040 = vmax.xlane.f32.xlu0 %v3039
        %v3041 = vpop.xlane.xlu0 %3040
        %v3042 = vsel %vm463, %v3026, -inf
        %3043 = vmax.xlane.f32.xlu0 %v3042
        %v3044 = vpop.xlane.xlu0 %3043
        %v3045 = vsel %vm463, %v3027, -inf
        %3046 = vmax.xlane.f32.xlu0 %v3045
        %v3047 = vpop.xlane.xlu0 %3046
        %v3048 = vsel %vm463, %v3028, -inf
        %3049 = vmax.xlane.f32.xlu0 %v3048
        %v3050 = vpop.xlane.xlu0 %3049
        %v3051 = vsel %vm463, %v3029, -inf
        %3052 = vmax.xlane.f32.xlu0 %v3051
        %v3053 = vpop.xlane.xlu0 %3052
        %v3054 = vsub.f32 %v3022, %v3032
        %v3055 = vsub.f32 %v3023, %v3035
        %v3056 = vsub.f32 %v3024, %v3038
        %v3057 = vsub.f32 %v3025, %v3041
        %v3058 = vsub.f32 %v3026, %v3044
        %v3059 = vsub.f32 %v3027, %v3047
        %v3060 = vsub.f32 %v3028, %v3050
        %v3061 = vsub.f32 %v3029, %v3053
        %v3062 = vmul.f32 %v3054, 1.442695
        %v3063 = vpow.pop %v3062
        %v3064 = vmul.f32 %v3055, 1.442695
        %v3065 = vpow.pop %v3064
        %v3066 = vmul.f32 %v3056, 1.442695
        %v3067 = vpow.pop %v3066
        %v3068 = vmul.f32 %v3057, 1.442695
        %v3069 = vpow.pop %v3068
        %v3070 = vmul.f32 %v3058, 1.442695
        %v3071 = vpow.pop %v3070
        %v3072 = vmul.f32 %v3059, 1.442695
        %v3073 = vpow.pop %v3072
        %v3074 = vmul.f32 %v3060, 1.442695
        %v3075 = vpow.pop %v3074
        %v3076 = vmul.f32 %v3061, 1.442695
        %v3077 = vpow.pop %v3076
        %v3078 = vsel %vm463, %v3063, 0.0
        %3079 = vadd.xlane.f32.xlu0 %v3078
        %v3080 = vpop.xlane.xlu0 %3079
        %v3081 = vsel %vm463, %v3065, 0.0
        %3082 = vadd.xlane.f32.xlu0 %v3081
        %v3083 = vpop.xlane.xlu0 %3082
        %v3084 = vsel %vm463, %v3067, 0.0
        %3085 = vadd.xlane.f32.xlu0 %v3084
        %v3086 = vpop.xlane.xlu0 %3085
        %v3087 = vsel %vm463, %v3069, 0.0
        %3088 = vadd.xlane.f32.xlu0 %v3087
        %v3089 = vpop.xlane.xlu0 %3088
        %v3090 = vsel %vm463, %v3071, 0.0
        %3091 = vadd.xlane.f32.xlu0 %v3090
        %v3092 = vpop.xlane.xlu0 %3091
        %v3093 = vsel %vm463, %v3073, 0.0
        %3094 = vadd.xlane.f32.xlu0 %v3093
        %v3095 = vpop.xlane.xlu0 %3094
        %v3096 = vsel %vm463, %v3075, 0.0
        %3097 = vadd.xlane.f32.xlu0 %v3096
        %v3098 = vpop.xlane.xlu0 %3097
        %v3099 = vsel %vm463, %v3077, 0.0
        %3100 = vadd.xlane.f32.xlu0 %v3099
        %v3101 = vpop.xlane.xlu0 %3100
        %v3102 = vrcp.pop %v3080
        %v3103 = vrcp.pop %v3083
        %v3104 = vrcp.pop %v3086
        %v3105 = vrcp.pop %v3089
        %v3106 = vrcp.pop %v3092
        %v3107 = vrcp.pop %v3095
        %v3108 = vrcp.pop %v3098
        %v3109 = vrcp.pop %v3101
        %v3110 = vmul.f32 %v3063, %v3102
        %v3111 = vmul.f32 %v3065, %v3103
        %v3112 = vmul.f32 %v3067, %v3104
        %v3113 = vmul.f32 %v3069, %v3105
        %v3114 = vmul.f32 %v3071, %v3106
        %v3115 = vmul.f32 %v3073, %v3107
        %v3116 = vmul.f32 %v3075, %v3108
        %v3117 = vmul.f32 %v3077, %v3109
        %v3118 = vpack.c.bf16 %v3110, %v3110
        %v3119 = vpack.c.bf16 %v3111, %v3111
        %v3120 = vpack.c.bf16 %v3112, %v3112
        %v3121 = vpack.c.bf16 %v3113, %v3113
        %v3122 = vpack.c.bf16 %v3114, %v3114
        %v3123 = vpack.c.bf16 %v3115, %v3115
        %v3124 = vpack.c.bf16 %v3116, %v3116
        %v3125 = vpack.c.bf16 %v3117, %v3117
        %3126 = vrot.lane.b32.xlu0 %v2832, 64
        %v3127 = vpop.permute.xlu0 %3126
        %v3129 = vsel %vm463, %v3118, 0
        %v3132 = vsel %vm760, %v3127, 0
        %3134 = vmatpush.bf16.msra.mxu0 0
        %3135 = vmatpush.bf16.msra.mxu0 0
        %3136 = vmatpush.bf16.msra.mxu0 0
        %3137 = vmatpush.bf16.msra.mxu0 0
        %3138 = vmatpush.bf16.msra.mxu0 0
        %3139 = vmatpush.bf16.msra.mxu0 0
        %3140 = vmatpush.bf16.msra.mxu0 0
        %3141 = vmatpush.bf16.msra.mxu0 %v3132
        %3142 = vmatmul.bf16.gmra.mxu0 %v3129
        %v3143 = vpop.f32.mrf.mxu0
        %v3144 = vadd.f32 0.0, %v3143
        %v3145 = vpop.f32.mrf.mxu0
        %3146 = vdwg.mxu0
        %3147 = vrot.lane.b32.xlu0 %v2856, 64
        %v3148 = vpop.permute.xlu0 %3147
        %v3150 = vsel %vm463, %v3119, 0
        %v3153 = vsel %vm760, %v3148, 0
        %3155 = vmatpush.bf16.msra.mxu0 0
        %3156 = vmatpush.bf16.msra.mxu0 0
        %3157 = vmatpush.bf16.msra.mxu0 0
        %3158 = vmatpush.bf16.msra.mxu0 0
        %3159 = vmatpush.bf16.msra.mxu0 0
        %3160 = vmatpush.bf16.msra.mxu0 0
        %3161 = vmatpush.bf16.msra.mxu0 0
        %3162 = vmatpush.bf16.msra.mxu0 %v3153
        %3163 = vmatmul.bf16.gmra.mxu0 %v3150
        %v3164 = vpop.f32.mrf.mxu0
        %v3165 = vadd.f32 0.0, %v3164
        %v3166 = vpop.f32.mrf.mxu0
        %3167 = vdwg.mxu0
        %3168 = vrot.lane.b32.xlu0 %v2880, 64
        %v3169 = vpop.permute.xlu0 %3168
        %v3171 = vsel %vm463, %v3120, 0
        %v3174 = vsel %vm760, %v3169, 0
        %3176 = vmatpush.bf16.msra.mxu0 0
        %3177 = vmatpush.bf16.msra.mxu0 0
        %3178 = vmatpush.bf16.msra.mxu0 0
        %3179 = vmatpush.bf16.msra.mxu0 0
        %3180 = vmatpush.bf16.msra.mxu0 0
        %3181 = vmatpush.bf16.msra.mxu0 0
        %3182 = vmatpush.bf16.msra.mxu0 0
        %3183 = vmatpush.bf16.msra.mxu0 %v3174
        %3184 = vmatmul.bf16.gmra.mxu0 %v3171
        %v3185 = vpop.f32.mrf.mxu0
        %v3186 = vadd.f32 0.0, %v3185
        %v3187 = vpop.f32.mrf.mxu0
        %3188 = vdwg.mxu0
        %3189 = vrot.lane.b32.xlu0 %v2904, 64
        %v3190 = vpop.permute.xlu0 %3189
        %v3192 = vsel %vm463, %v3121, 0
        %v3195 = vsel %vm760, %v3190, 0
        %3197 = vmatpush.bf16.msra.mxu0 0
        %3198 = vmatpush.bf16.msra.mxu0 0
        %3199 = vmatpush.bf16.msra.mxu0 0
        %3200 = vmatpush.bf16.msra.mxu0 0
        %3201 = vmatpush.bf16.msra.mxu0 0
        %3202 = vmatpush.bf16.msra.mxu0 0
        %3203 = vmatpush.bf16.msra.mxu0 0
        %3204 = vmatpush.bf16.msra.mxu0 %v3195
        %3205 = vmatmul.bf16.gmra.mxu0 %v3192
        %v3206 = vpop.f32.mrf.mxu0
        %v3207 = vadd.f32 0.0, %v3206
        %v3208 = vpop.f32.mrf.mxu0
        %3209 = vdwg.mxu0
        %3210 = vrot.lane.b32.xlu0 %v2928, 64
        %v3211 = vpop.permute.xlu0 %3210
        %v3213 = vsel %vm463, %v3122, 0
        %v3216 = vsel %vm760, %v3211, 0
        %3218 = vmatpush.bf16.msra.mxu0 0
        %3219 = vmatpush.bf16.msra.mxu0 0
        %3220 = vmatpush.bf16.msra.mxu0 0
        %3221 = vmatpush.bf16.msra.mxu0 0
        %3222 = vmatpush.bf16.msra.mxu0 0
        %3223 = vmatpush.bf16.msra.mxu0 0
        %3224 = vmatpush.bf16.msra.mxu0 0
        %3225 = vmatpush.bf16.msra.mxu0 %v3216
        %3226 = vmatmul.bf16.gmra.mxu0 %v3213
        %v3227 = vpop.f32.mrf.mxu0
        %v3228 = vadd.f32 0.0, %v3227
        %v3229 = vpop.f32.mrf.mxu0
        %3230 = vdwg.mxu0
        %3231 = vrot.lane.b32.xlu0 %v2952, 64
        %v3232 = vpop.permute.xlu0 %3231
        %v3234 = vsel %vm463, %v3123, 0
        %v3237 = vsel %vm760, %v3232, 0
        %3239 = vmatpush.bf16.msra.mxu0 0
        %3240 = vmatpush.bf16.msra.mxu0 0
        %3241 = vmatpush.bf16.msra.mxu0 0
        %3242 = vmatpush.bf16.msra.mxu0 0
        %3243 = vmatpush.bf16.msra.mxu0 0
        %3244 = vmatpush.bf16.msra.mxu0 0
        %3245 = vmatpush.bf16.msra.mxu0 0
        %3246 = vmatpush.bf16.msra.mxu0 %v3237
        %3247 = vmatmul.bf16.gmra.mxu0 %v3234
        %v3248 = vpop.f32.mrf.mxu0
        %v3249 = vadd.f32 0.0, %v3248
        %v3250 = vpop.f32.mrf.mxu0
        %3251 = vdwg.mxu0
        %3252 = vrot.lane.b32.xlu0 %v2976, 64
        %v3253 = vpop.permute.xlu0 %3252
        %v3255 = vsel %vm463, %v3124, 0
        %v3258 = vsel %vm760, %v3253, 0
        %3260 = vmatpush.bf16.msra.mxu0 0
        %3261 = vmatpush.bf16.msra.mxu0 0
        %3262 = vmatpush.bf16.msra.mxu0 0
        %3263 = vmatpush.bf16.msra.mxu0 0
        %3264 = vmatpush.bf16.msra.mxu0 0
        %3265 = vmatpush.bf16.msra.mxu0 0
        %3266 = vmatpush.bf16.msra.mxu0 0
        %3267 = vmatpush.bf16.msra.mxu0 %v3258
        %3268 = vmatmul.bf16.gmra.mxu0 %v3255
        %v3269 = vpop.f32.mrf.mxu0
        %v3270 = vadd.f32 0.0, %v3269
        %v3271 = vpop.f32.mrf.mxu0
        %3272 = vdwg.mxu0
        %3273 = vrot.lane.b32.xlu0 %v3000, 64
        %v3274 = vpop.permute.xlu0 %3273
        %v3276 = vsel %vm463, %v3125, 0
        %v3279 = vsel %vm760, %v3274, 0
        %3281 = vmatpush.bf16.msra.mxu0 0
        %3282 = vmatpush.bf16.msra.mxu0 0
        %3283 = vmatpush.bf16.msra.mxu0 0
        %3284 = vmatpush.bf16.msra.mxu0 0
        %3285 = vmatpush.bf16.msra.mxu0 0
        %3286 = vmatpush.bf16.msra.mxu0 0
        %3287 = vmatpush.bf16.msra.mxu0 0
        %3288 = vmatpush.bf16.msra.mxu0 %v3279
        %3289 = vmatmul.bf16.gmra.mxu0 %v3276
        %v3290 = vpop.f32.mrf.mxu0
        %v3291 = vadd.f32 0.0, %v3290
        %v3292 = vpop.f32.mrf.mxu0
        %3293 = vdwg.mxu0
        %3296 = vrot.lane.b32.xlu0 %v3186, 8
        %v3297 = vpop.permute.xlu0 %3296
        %3298 = vrot.lane.b32.xlu0 %v3207, 8
        %v3299 = vpop.permute.xlu0 %3298
        %3304 = vrot.lane.b32.xlu0 %v3228, 16
        %v3305 = vpop.permute.xlu0 %3304
        %3306 = vrot.lane.b32.xlu0 %v3249, 16
        %v3307 = vpop.permute.xlu0 %3306
        %3312 = vrot.lane.b32.xlu0 %v3270, 24
        %v3313 = vpop.permute.xlu0 %3312
        %3314 = vrot.lane.b32.xlu0 %v3291, 24
        %v3315 = vpop.permute.xlu0 %3314
        %v3318 = vsel %vm463, %v3144, %v3297
        %v3319 = vsel %vm463, %v3165, %v3299
        %v3320 = vsel %vm950, %v3318, %v3305
        %v3321 = vsel %vm950, %v3319, %v3307
        %v3322 = vsel %vm953, %v3320, %v3313
        %v3323 = vsel %vm953, %v3321, %v3315
        %v3324 = vpack.c.bf16 %v3323, %v3322
        %3325 = vrot.lane.b32.xlu0 %v2781, 32
        %v3326 = vpop.permute.xlu0 %3325
        %3327 = vrot.lane.b32.xlu0 %v2782, 32
        %v3328 = vpop.permute.xlu0 %3327
        %v3332 = vsel %vm250, %v3324, 0
        %3334 = vmatpush.bf16.msra.mxu0 0
        %3335 = vmatpush.bf16.msra.mxu0 0
        %3336 = vmatpush.bf16.msra.mxu0 0
        %3337 = vmatpush.bf16.msra.mxu0 0
        %3338 = vmatpush.bf16.msra.mxu0 0
        %3339 = vmatpush.bf16.msra.mxu0 0
        %3340 = vmatpush.bf16.msra.mxu0 %v3328
        %3341 = vmatpush.bf16.msra.mxu0 %v3326
        %3342 = vmatmul.bf16.gmra.mxu0 %v3332
        %v3343 = vpop.f32.mrf.mxu0
        %v3344 = vadd.f32 0.0, %v3343
        %v3345 = vpop.f32.mrf.mxu0
        %v3346 = vadd.f32 0.0, %v3345
        %3347 = vdwg.mxu0
        %v3348 = vadd.f32 %v2708, %v3344
        %v3349 = vadd.f32 %v2709, %v3346
        %3351 = vrot.lane.b32.xlu0 %v2772, 32
        %v3352 = vpop.permute.xlu0 %3351
        %v3354 = vadd.f32 %v3348, %v3352
        %v3355 = vadd.f32 %v3349, %v3352
        %v3356 = vsel %vm250, %v3354, 0.0
        %3357 = vadd.xlane.f32.xlu0 %v3356
        %v3358 = vpop.xlane.xlu0 %3357
        %v3359 = vsel %vm250, %v3355, 0.0
        %3360 = vadd.xlane.f32.xlu0 %v3359
        %v3361 = vpop.xlane.xlu0 %3360
        %v3362 = vmul.f32 %v3358, %v347
        %v3363 = vmul.f32 %v3361, %v347
        %v3364 = vsub.f32 %v3354, %v3362
        %v3365 = vsub.f32 %v3355, %v3363
        %v3366 = vmul.f32 %v3364, %v3364
        %v3367 = vmul.f32 %v3365, %v3365
        %v3368 = vsel %vm250, %v3366, 0.0
        %3369 = vadd.xlane.f32.xlu0 %v3368
        %v3370 = vpop.xlane.xlu0 %3369
        %v3371 = vsel %vm250, %v3367, 0.0
        %3372 = vadd.xlane.f32.xlu0 %v3371
        %v3373 = vpop.xlane.xlu0 %3372
        %v3374 = vmul.f32 %v3370, %v347
        %v3375 = vmul.f32 %v3373, %v347
        %v3376 = vadd.f32 %v3374, 1e-05
        %v3377 = vadd.f32 %v3375, 1e-05
        %v3378 = vrsqrt.pop %v3376
        %v3379 = vmul.f32 %v3378, %v3376
        %v3380 = vmul.f32 %v3379, %v3378
        %v3381 = vmul.f32 0.5, %v3380
        %v3382 = vsub.f32 1.5, %v3381
        %v3383 = vmul.f32 %v3378, %v3382
        %vm3384 = vweird.f32 %v3376
        %vm3385 = vweird.f32 %v3378
        %vm3386 = vmor %vm3384, %vm3385
        %v3387 = vsel %vm3386, %v3378, %v3383
        %v3388 = vrsqrt.pop %v3377
        %v3389 = vmul.f32 %v3388, %v3377
        %v3390 = vmul.f32 %v3389, %v3388
        %v3391 = vmul.f32 0.5, %v3390
        %v3392 = vsub.f32 1.5, %v3391
        %v3393 = vmul.f32 %v3388, %v3392
        %vm3394 = vweird.f32 %v3377
        %vm3395 = vweird.f32 %v3388
        %vm3396 = vmor %vm3394, %vm3395
        %v3397 = vsel %vm3396, %v3388, %v3393
        %v3398 = vmul.f32 %v3364, %v3387
        %v3399 = vmul.f32 %v3365, %v3397
        %v3400 = vperm.slane %v1034, 3
        %v3401 = vmul.f32 %v3398, %v3400
        %v3402 = vmul.f32 %v3399, %v3400
        %v3403 = vperm.slane %v1041, 3
        %v3404 = vadd.f32 %v3401, %v3403
        %v3405 = vadd.f32 %v3402, %v3403
        %v3406 = vpack.c.bf16 %v3405, %v3404
        %v3407 = vperm.slane %v323, 3
        %v3408 = vperm.slane %v323, 7
        %v3411 = vperm.slane %v3407, 3
        %v3412 = vperm.slane %v3408, 3
        %v3413 = vunpack.c.h.b16 %v2713
        %v3414 = vunpack.c.h.b16 %v2715
        %v3415 = vunpack.c.h.b16 %v2717
        %v3416 = vunpack.c.h.b16 %v2719
        %v3417 = vpack.c.b16 %v3414, %v3413
        %v3418 = vpack.c.b16 %v3416, %v3415
        %3423 = vrot.lane.b32.xlu0 %v3411, 96
        %v3424 = vpop.permute.xlu0 %3423
        %3425 = vrot.lane.b32.xlu0 %v3412, 96
        %v3426 = vpop.permute.xlu0 %3425
        %v3427 = vsel %vm1068, %v3424, %v3426
        %v3430 = vsel %vm250, %v3406, 0
        %3432 = vmatpush.bf16.msra.mxu0 0
        %3433 = vmatpush.bf16.msra.mxu0 0
        %3434 = vmatpush.bf16.msra.mxu0 0
        %3435 = vmatpush.bf16.msra.mxu0 0
        %3436 = vmatpush.bf16.msra.mxu0 0
        %3437 = vmatpush.bf16.msra.mxu0 0
        %3438 = vmatpush.bf16.msra.mxu0 %v3418
        %3439 = vmatpush.bf16.msra.mxu0 %v3417
        %3440 = vmatmul.bf16.gmra.mxu0 %v3430
        %v3441 = vpop.f32.mrf.mxu0
        %v3442 = vadd.f32 %v3427, %v3441
        %v3443 = vpop.f32.mrf.mxu0
        %v3444 = vadd.f32 %v3427, %v3443
        %3445 = vdwg.mxu0
        %v3446 = vmul.f32 %v3442, %v3442
        %v3447 = vmul.f32 %v3444, %v3444
        %v3448 = vmul.f32 %v3442, %v3446
        %v3449 = vmul.f32 %v3444, %v3447
        %v3450 = vmul.f32 %v3448, 0.044715
        %v3451 = vmul.f32 %v3449, 0.044715
        %v3452 = vadd.f32 %v3442, %v3450
        %v3453 = vadd.f32 %v3444, %v3451
        %v3454 = vmul.f32 %v3452, 0.7978846
        %v3455 = vmul.f32 %v3453, 0.7978846
        %v3456 = vtanh.pop %v3454
        %v3457 = vtanh.pop %v3455
        %v3458 = vadd.f32 %v3456, 1.0
        %v3459 = vadd.f32 %v3457, 1.0
        %v3460 = vmul.f32 %v3458, 0.5
        %v3461 = vmul.f32 %v3459, 0.5
        %v3462 = vmul.f32 %v3442, %v3460
        %v3463 = vmul.f32 %v3444, %v3461
        %v3464 = vpack.c.bf16 %v3463, %v3462
        %v3469 = vunpack.c.l.b16 %v2714
        %v3470 = vunpack.c.l.b16 %v2716
        %v3471 = vunpack.c.l.b16 %v2718
        %v3472 = vunpack.c.l.b16 %v2720
        %v3473 = vpack.c.b16 %v3470, %v3469
        %v3474 = vpack.c.b16 %v3472, %v3471
        %3477 = vmatpush.bf16.xpose.msra.mxu0 0
        %3478 = vmatpush.bf16.xpose.msra.mxu0 0
        %3479 = vmatpush.bf16.xpose.msra.mxu0 0
        %3480 = vmatpush.bf16.xpose.msra.mxu0 0
        %3481 = vmatpush.bf16.xpose.msra.mxu0 0
        %3482 = vmatpush.bf16.xpose.msra.mxu0 0
        %3483 = vmatpush.bf16.xpose.msra.mxu0 %v3474
        %3484 = vmatpush.bf16.xpose.msra.mxu0 %v3473
        %3485 = vmatmul.bf16.gmra.mxu0 %v3464
        %v3486 = vpop.f32.mrf.mxu0
        %v3487 = vadd.f32 0.0, %v3486
        %v3488 = vpop.f32.mrf.mxu0
        %v3489 = vadd.f32 0.0, %v3488
        %3490 = vdwg.mxu0
        %v3491 = vadd.f32 %v3354, %v3487
        %v3492 = vadd.f32 %v3355, %v3489
        %v3493 = vperm.slane %v323, 3
        %v3494 = vadd.f32 %v3491, %v3493
        %v3495 = vadd.f32 %v3492, %v3493
        %p3496 = scmp.eq.s32.totalorder %s240, 1
        // Predicated region
        $region49: #{forward.1} parent=35 // pred_check
          %p3497 = pneg %p3496
        $region50: #{forward.1} parent=35 // pred_check_branch
          %3499 = sbr.rel (%p3497) target = $region52
        $region51: #{forward.1} parent=35 // pred_region
          %s3500 = smul.u32 %s234, 16
          %s3501 = scalar_lea.vmem [#allocation2], %s3500
          %3502 = vst.msk [vmem:[%s3501] sm:$0xff] %vm250, %v3494
          %3503 = vst.msk [vmem:[%s3501 + $0x8] sm:$0xff] %vm250, %v3495
        $region52: #{forward.1} parent=35 // pred_fallthru
          _
        %3504 = vst.msk [vmem:[%s220] sm:$0xff] %vm250, %v3494
        %3505 = vst.msk [vmem:[%s220 + $0x8] sm:$0xff] %vm250, %v3495
        %p3506 = scmp.lt.s32.totalorder %s26, 7
        %s3507 = scalar_select %p3506, %s26, 7
        %s3508 = smul.addr %s3507, 2
        %s3509 = smul.addr %s3508, 8
        %s3510 = scalar_lea.vmem %s5, %s3509
        // Predicated region
        $region53: #{forward.1} parent=35 // pred_check
          %p3511 = pneg %p128
        $region54: #{forward.1} parent=35 // pred_check_branch
          %3513 = sbr.rel (%p3511) target = $region56
        $region55: #{forward.1} parent=35 // pred_region
          _
        $region56: #{forward.1} parent=35 // pred_fallthru
          _
      $region36: #{forward.1} parent=5 // pred_fallthru
        _
      %p3514 = scmp.le.s32.totalorder 2, %s21
      // Predicated region
      $region57: #{forward.1} parent=5 // pred_check
        %p3515 = pneg %p3514
      $region58: #{forward.1} parent=5 // pred_check_branch
        %3517 = sbr.rel (%p3515) target = $region60
      $region59: #{forward.1} parent=5 // pred_region
        %s3518 = ssub.s32 %s21, 2
        // Predicated region
        $region61: #{forward.1} parent=59 // pred_check
          %p3519 = pneg %p134
        $region62: #{forward.1} parent=59 // pred_check_branch
          %3521 = sbr.rel (%p3519) target = $region64
        $region63: #{forward.1} parent=59 // pred_region
          %p3522 = scmp.lt.s32.totalorder %s27, 7
          %s3523 = scalar_select %p3522, %s27, 7
          %s3524 = smul.addr %s3523, 2
          %s3525 = smul.addr %s3524, 8
          %s3526 = scalar_lea.vmem %s5, %s3525
        $region64: #{forward.1} parent=59 // pred_fallthru
          _
      $region60: #{forward.1} parent=5 // pred_fallthru
        _
    $region6: #{forward.1} parent=1 // loop_footer
      %s25 = sadd.s32 1, %s21
    $region7: #{forward.1} parent=1 // loop_footer_branch
      %20 = sbr.rel target = $region3
    $region8: #{forward.1} parent=1 // loop_exit
      _
    %3527 = vsyncpa [#allocation6], 1
    %s3528 = scalar_lea.sflag [#allocation6], 1
    %3529 = vsyncpa %s3528, 1
    %3530 = vsyncpa [#allocation8], 1

</llo_original>
